<compile_context>
chip_gen: v7x
topology: tpu7x:2x2x1
jax: 0.10.0
libtpu: 0.0.40
codegen_flags: <defaults>
</compile_context>

<pallas_src>
import functools
import math

import jax
import jax.numpy as jnp
from jax import lax
from jax.experimental import pallas as pl
from jax.experimental.pallas import tpu as pltpu


_EPS = 1e-5


# ---------------------------------------------------------------------------
# Generation-aware knobs
# ---------------------------------------------------------------------------
def _query_vmem_capacity():
    try:
        return int(pltpu.get_tpu_info().vmem_capacity_bytes)
    except Exception:
        return 64 << 20            # conservative (v7x per-TensorCore VMEM)


_VMEM_CAPACITY = _query_vmem_capacity()
# Never request the whole physical VMEM; leave >=16 MiB headroom for Mosaic
# internal scratch / semaphores (review: cap ~48 MiB on v7x, ~100 MiB on v5e/v6e).
_VMEM_CAP_LIMIT = int(min(max(_VMEM_CAPACITY - (16 << 20), 32 << 20), 100 << 20))
_TM_CAP = 1024 if _VMEM_CAPACITY >= (100 << 20) else 512
_FULL_N_OK = _VMEM_CAPACITY >= (100 << 20)     # v5e/v6e keep full-N weight blocks


def _vmem_limit(*block_bytes):
    """Rough double-buffered VMEM budget; None -> compiler default is plenty."""
    need = 2 * sum(int(b) for b in block_bytes) + (4 << 20)
    if need <= (16 << 20):          # fits even v5e's default scoped VMEM
        return None
    return int(min(need, _VMEM_CAP_LIMIT))


def _probe_buffered_single():
    """Check once whether pl.Buffered(1) (single-buffered invariant blocks) works."""
    try:
        def k(x_ref, c_ref, o_ref):
            o_ref[...] = x_ref[...] + c_ref[...]

        f = pl.pallas_call(
            k,
            out_shape=jax.ShapeDtypeStruct((16, 128), jnp.float32),
            grid=(2,),
            in_specs=[pl.BlockSpec((8, 128), lambda i: (i, 0)),
                      pl.BlockSpec((8, 128), lambda i: (0, 0),
                                   pipeline_mode=pl.Buffered(1))],
            out_specs=pl.BlockSpec((8, 128), lambda i: (i, 0)),
        )
        x = jnp.arange(16 * 128, dtype=jnp.float32).reshape(16, 128)
        c = jnp.ones((8, 128), jnp.float32)
        y = jax.block_until_ready(f(x, c))
        return bool(jnp.allclose(y, x + 1.0))
    except Exception:
        return False


_BUFFERED_SINGLE = _probe_buffered_single()


def _invariant_spec(block_shape, index_map):
    """BlockSpec for a grid-invariant operand; single-buffered when supported."""
    if _BUFFERED_SINGLE:
        return pl.BlockSpec(block_shape, index_map, pipeline_mode=pl.Buffered(1))
    return pl.BlockSpec(block_shape, index_map)


# ---------------------------------------------------------------------------
# Pallas kernels
# ---------------------------------------------------------------------------
def _matmul_bias_kernel(x_ref, w_ref, b_ref, o_ref, *, apply_relu):
    acc = jnp.dot(x_ref[...], w_ref[...], preferred_element_type=jnp.float32)
    acc = acc + b_ref[...]
    if apply_relu:
        acc = jnp.maximum(acc, 0.0)
    o_ref[...] = acc.astype(o_ref.dtype)


def _matmul_bias_res_kernel(x_ref, w_ref, r_ref, b_ref, o_ref, *, apply_relu):
    acc = jnp.dot(x_ref[...], w_ref[...], preferred_element_type=jnp.float32)
    acc = acc + b_ref[...] + r_ref[...].astype(jnp.float32)
    if apply_relu:
        acc = jnp.maximum(acc, 0.0)
    o_ref[...] = acc.astype(o_ref.dtype)


def _dual_matmul_bias_kernel(x_ref, w_ref, xs_ref, ws_ref, b_ref, o_ref, *, apply_relu):
    # conv3 and the downsample-shortcut 1x1 conv share the same output tile.
    acc = jnp.dot(x_ref[...], w_ref[...], preferred_element_type=jnp.float32)
    acc = acc + jnp.dot(xs_ref[...], ws_ref[...], preferred_element_type=jnp.float32)
    acc = acc + b_ref[...]
    if apply_relu:
        acc = jnp.maximum(acc, 0.0)
    o_ref[...] = acc.astype(o_ref.dtype)


def _conv3x3_kernel(x_ref, w_ref, b_ref, o_ref, xpad_ref, *, H, W, h_stride):
    """Direct 3x3 / pad-1 conv on one image, padded entirely in VMEM.

    x_ref    : (1, H, W, C)      unpadded image block (bf16)
    w_ref    : (3, 3*C, Cout)    BN-scale-folded taps; kw folded into contraction
    b_ref    : (1, Cout)         bias (f32)
    o_ref    : (1, H//h_stride, W, Cout)  (H decimated in-kernel for stride > 1)
    xpad_ref : (H+2, W+2, C)     VMEM scratch holding the zero-padded image
    """
    C = x_ref.shape[-1]
    Cout = o_ref.shape[-1]

    # Zero padding border + single interior copy: no HBM pad round trip.
    xpad_ref[...] = jnp.zeros_like(xpad_ref)
    xpad_ref[1:1 + H, 1:1 + W, :] = x_ref[0]

    acc = jnp.zeros((H * W, Cout), jnp.float32)
    for kh in range(3):
        # Width-only im2col in VMEM: the 3 kw taps become one K = 3*C contraction.
        win = jnp.concatenate(
            [xpad_ref[kh:kh + H, kw:kw + W, :] for kw in range(3)], axis=-1)
        acc = acc + jnp.dot(win.reshape(H * W, 3 * C), w_ref[kh],
                            preferred_element_type=jnp.float32)

    acc = jnp.maximum(acc + b_ref[...], 0.0)
    out = acc.reshape(H, W, Cout)
    if h_stride != 1:
        # Leading-dim reshape + index: free decimation of the row dimension.
        out = out.reshape(H // h_stride, h_stride, W, Cout)[:, 0]
    o_ref[0] = out.astype(o_ref.dtype)


# ---------------------------------------------------------------------------
# Kernel wrappers
# ---------------------------------------------------------------------------
def fused_matmul(x, w, bias, *, x_sc=None, w_sc=None, residual=None,
                 apply_relu=True, out_dtype=jnp.bfloat16):
    """act(x @ w [+ x_sc @ w_sc] [+ residual] + bias), tiled over rows (and cols)."""
    M, K = x.shape
    N = w.shape[1]
    tm = min(_TM_CAP, M)
    tn = N if (N <= 512 or _FULL_N_OK) else 512     # N-tiling only when VMEM is tight
    grid = (pl.cdiv(M, tm), pl.cdiv(N, tn))         # masked tails, no padded copies
    col_invariant = grid[1] == 1

    def const_spec(shape, index_map):
        return _invariant_spec(shape, index_map) if col_invariant \
            else pl.BlockSpec(shape, index_map)

    bias = jnp.asarray(bias, jnp.float32).reshape(1, N)

    x_spec = pl.BlockSpec((tm, K), lambda i, j: (i, 0))
    w_spec = const_spec((K, tn), lambda i, j: (0, j))
    b_spec = const_spec((1, tn), lambda i, j: (0, j))
    o_spec = pl.BlockSpec((tm, tn), lambda i, j: (i, j))

    operands = [x.astype(jnp.bfloat16), w.astype(jnp.bfloat16)]
    in_specs = [x_spec, w_spec]
    blk = [tm * K * 2, K * tn * 2, tm * tn * jnp.dtype(out_dtype).itemsize,
           tm * tn * 4, tn * 4]                     # incl. f32 accumulator

    if x_sc is not None:
        K2 = x_sc.shape[1]
        operands += [x_sc.astype(jnp.bfloat16), w_sc.astype(jnp.bfloat16)]
        in_specs += [pl.BlockSpec((tm, K2), lambda i, j: (i, 0)),
                     const_spec((K2, tn), lambda i, j: (0, j))]
        blk += [tm * K2 * 2, K2 * tn * 2]
        kernel = functools.partial(_dual_matmul_bias_kernel, apply_relu=apply_relu)
    elif residual is not None:
        operands += [residual.astype(jnp.bfloat16)]
        in_specs += [pl.BlockSpec((tm, tn), lambda i, j: (i, j))]
        blk += [tm * tn * 2]
        kernel = functools.partial(_matmul_bias_res_kernel, apply_relu=apply_relu)
    else:
        kernel = functools.partial(_matmul_bias_kernel, apply_relu=apply_relu)

    operands += [bias]
    in_specs += [b_spec]

    return pl.pallas_call(
        kernel,
        out_shape=jax.ShapeDtypeStruct((M, N), out_dtype),
        grid=grid,
        in_specs=in_specs,
        out_specs=o_spec,
        compiler_params=pltpu.CompilerParams(
            dimension_semantics=("parallel", "parallel"),
            vmem_limit_bytes=_vmem_limit(*blk)),
    )(*operands)


def conv3x3_direct(x_nhwc, w_taps, bias, *, stride=1, out_dtype=jnp.bfloat16):
    """3x3, pad 1 conv (+bias+ReLU), padding done in VMEM; H decimated for stride>1.

    For stride>1 the kernel keeps the W dimension dense (valid stride-1 columns);
    the W subsample is folded into the following 1x1 conv (see bottleneck_forward).
    """
    N, H, W, C = x_nhwc.shape
    Cout = w_taps.shape[-1]
    if stride != 1:
        # TODO(synk): odd spatial sizes with stride>1 would need a tail-row fixup.
        assert H % stride == 0 and W % stride == 0, "stride>1 requires even H, W"
    Hrows = H if stride == 1 else H // stride

    bias = jnp.asarray(bias, jnp.float32).reshape(1, Cout)
    kernel = functools.partial(_conv3x3_kernel, H=H, W=W, h_stride=stride)
    blk = [H * W * C * 2,                 # input block
          3 * 3 * C * Cout * 2,           # taps
          (H + 2) * (W + 2) * C * 2,      # padded VMEM scratch
          H * W * 3 * C * 2,              # widest in-kernel window
          H * W * Cout * 4,               # f32 accumulator
          Hrows * W * Cout * 2]           # output block

    # TODO(synk): for very small batch, row-band tiling (grid=(N, n_bands) with a
    #   haloed input window) would improve pipelining / v7x 2-TC utilization.
    return pl.pallas_call(
        kernel,
        out_shape=jax.ShapeDtypeStruct((N, Hrows, W, Cout), out_dtype),
        grid=(N,),
        in_specs=[pl.BlockSpec((1, H, W, C), lambda n: (n, 0, 0, 0)),
                  _invariant_spec((3, 3 * C, Cout), lambda n: (0, 0, 0)),
                  _invariant_spec((1, Cout), lambda n: (0, 0))],
        out_specs=pl.BlockSpec((1, Hrows, W, Cout), lambda n: (n, 0, 0, 0)),
        scratch_shapes=[pltpu.VMEM((H + 2, W + 2, C), jnp.bfloat16)],
        compiler_params=pltpu.CompilerParams(
            dimension_semantics=("parallel",),
            vmem_limit_bytes=_vmem_limit(*blk)),
    )(x_nhwc.astype(jnp.bfloat16), w_taps.astype(jnp.bfloat16), bias)


# ---------------------------------------------------------------------------
# Glue: BN folding, one-time weight prep, Bottleneck forward
# ---------------------------------------------------------------------------
def fold_bn(gamma, beta, mean, var, eps=_EPS):
    scale = gamma / jnp.sqrt(var + eps)
    bias = beta - mean * scale
    return scale, bias


def prepare_params(params, stride):
    """One-time weight prep: BN folding, transposes, bf16 casts (cached by caller)."""
    planes = params["w1"].shape[0]
    in_planes = params["w1"].shape[1]
    exp_planes = params["w3"].shape[0]
    prep = {}

    s1, b1 = fold_bn(params["bn1_g"], params["bn1_b"], params["bn1_m"], params["bn1_v"])
    prep["w1"] = (params["w1"].reshape(planes, in_planes).T * s1[None, :]).astype(jnp.bfloat16)
    prep["b1"] = b1.reshape(1, planes).astype(jnp.float32)

    s2, b2 = fold_bn(params["bn2_g"], params["bn2_b"], params["bn2_m"], params["bn2_v"])
    w2t = jnp.transpose(params["w2"], (2, 3, 1, 0)) * s2  # (kh, kw, Cin, Cout)
    prep["w2"] = w2t.reshape(3, 3 * planes, planes).astype(jnp.bfloat16)
    prep["b2"] = b2.reshape(1, planes).astype(jnp.float32)

    s3, b3 = fold_bn(params["bn3_g"], params["bn3_b"], params["bn3_m"], params["bn3_v"])
    w3 = params["w3"].reshape(exp_planes, planes).T * s3[None, :]
    if stride != 1:
        # Zero rows select the "even" dense-W columns: folds the stride-s W
        # subsample of conv2's output into conv3's contraction for free.
        w3 = jnp.concatenate([w3] + [jnp.zeros_like(w3)] * (stride - 1), axis=0)
    prep["w3"] = w3.astype(jnp.bfloat16)

    b3_total = b3
    if stride != 1 or in_planes != exp_planes:
        ss, bs = fold_bn(params["bns_g"], params["bns_b"], params["bns_m"], params["bns_v"])
        prep["ws"] = (params["ws"].reshape(exp_planes, in_planes).T * ss[None, :]).astype(jnp.bfloat16)
        b3_total = b3 + bs
    prep["b3"] = b3_total.reshape(1, exp_planes).astype(jnp.float32)
    return prep


def bottleneck_forward_nhwc(x_nhwc, prep, *, stride):
    """NHWC/bf16 forward (use this entry point when chaining blocks)."""
    N, H, W, Cin = x_nhwc.shape
    planes = prep["w2"].shape[-1]
    exp_planes = prep["w3"].shape[-1]
    x_nhwc = x_nhwc.astype(jnp.bfloat16)

    # conv1 (1x1) + bn1 + relu
    out = fused_matmul(x_nhwc.reshape(-1, Cin), prep["w1"], prep["b1"])
    out = out.reshape(N, H, W, planes)

    # conv2 (3x3, stride, pad 1) + bn2 + relu  (padding and striding handled in-kernel)
    out = conv3x3_direct(out, prep["w2"], prep["b2"], stride=stride)

    Hout = H if stride == 1 else H // stride
    Wout = W if stride == 1 else W // stride
    if stride == 1:
        x3 = out.reshape(-1, planes)
    else:
        # Free contiguous reshape: groups of `stride` adjacent dense-W columns
        # become extra channels; prep["w3"]'s zero rows pick the wanted column.
        x3 = out.reshape(N * Hout * Wout, stride * planes)

    # conv3 (1x1) + bn3 + shortcut/residual + relu, fused into one kernel call.
    if "ws" in prep:
        if stride == 1:
            xs = x_nhwc.reshape(-1, Cin)
        else:
            # TODO(synk): fold this strided gather into the dual-matmul x_sc
            #   BlockSpec index_map instead of an XLA-side copy.
            xs = x_nhwc[:, ::stride, ::stride, :].reshape(-1, Cin)
        out = fused_matmul(x3, prep["w3"], prep["b3"], x_sc=xs, w_sc=prep["ws"],
                           apply_relu=True, out_dtype=jnp.bfloat16)
    else:
        residual = x_nhwc.reshape(-1, exp_planes)
        out = fused_matmul(x3, prep["w3"], prep["b3"], residual=residual,
                           apply_relu=True, out_dtype=jnp.bfloat16)

    return out.reshape(N, Hout, Wout, exp_planes)


def bottleneck_forward(x_nchw, prep, *, stride):
    # TODO(synk): these boundary transposes disappear when activations stay NHWC
    #   across blocks (bottleneck_forward_nhwc).
    x = jnp.transpose(x_nchw, (0, 2, 3, 1))
    out = bottleneck_forward_nhwc(x, prep, stride=stride)
    return jnp.transpose(out, (0, 3, 1, 2))


# ---------------------------------------------------------------------------
# Deterministic parameter init (shapes match the PyTorch Bottleneck.__init__)
# ---------------------------------------------------------------------------
def init_params(key, in_planes, planes, stride):
    exp_planes = 4 * planes
    keys = jax.random.split(key, 24)
    ki = iter(keys)

    def conv_w(k, shape):
        fan_in = shape[1] * shape[2] * shape[3]
        return jax.random.normal(k, shape, jnp.float32) / math.sqrt(fan_in)

    p = {}
    p["w1"] = conv_w(next(ki), (planes, in_planes, 1, 1))
    p["w2"] = conv_w(next(ki), (planes, planes, 3, 3))
    p["w3"] = conv_w(next(ki), (exp_planes, planes, 1, 1))

    def bn(prefix, c):
        p[prefix + "_g"] = 1.0 + 0.1 * jax.random.normal(next(ki), (c,), jnp.float32)
        p[prefix + "_b"] = 0.1 * jax.random.normal(next(ki), (c,), jnp.float32)
        p[prefix + "_m"] = 0.1 * jax.random.normal(next(ki), (c,), jnp.float32)
        p[prefix + "_v"] = jnp.abs(1.0 + 0.1 * jax.random.normal(next(ki), (c,), jnp.float32))

    bn("bn1", planes)
    bn("bn2", planes)
    bn("bn3", exp_planes)
    if stride != 1 or in_planes != exp_planes:
        p["ws"] = conv_w(next(ki), (exp_planes, in_planes, 1, 1))
        bn("bns", exp_planes)
    return p


# ---------------------------------------------------------------------------
# Pure-JAX reference (f32 lax.conv) for verification
# ---------------------------------------------------------------------------
def ref_forward(x_nchw, params, stride):
    def conv(x, w, s, pad):
        return lax.conv_general_dilated(
            x, w, (s, s), pad, dimension_numbers=("NCHW", "OIHW", "NCHW"))

    def bn(x, prefix):
        g = params[prefix + "_g"][None, :, None, None]
        b = params[prefix + "_b"][None, :, None, None]
        m = params[prefix + "_m"][None, :, None, None]
        v = params[prefix + "_v"][None, :, None, None]
        return (x - m) / jnp.sqrt(v + _EPS) * g + b

    out = jax.nn.relu(bn(conv(x_nchw, params["w1"], 1, "VALID"), "bn1"))
    out = jax.nn.relu(bn(conv(out, params["w2"], stride, ((1, 1), (1, 1))), "bn2"))
    out = bn(conv(out, params["w3"], 1, "VALID"), "bn3")
    short = x_nchw
    if stride != 1 or x_nchw.shape[1] != params["w3"].shape[0]:
        short = bn(conv(x_nchw, params["ws"], stride, "VALID"), "bns")
    return jax.nn.relu(out + short)


# ---------------------------------------------------------------------------
if __name__ == "__main__":
    key = jax.random.PRNGKey(0)
    # (in_planes, planes, stride, spatial):
    #   case 0: projection shortcut (channel expansion), stride 1
    #   case 1: identity shortcut
    #   case 2: strided transition block (projection shortcut, stride 2)
    cases = [(4, 4, 1, 16), (16, 4, 1, 16), (8, 4, 2, 16)]

    for idx, (in_planes, planes, stride, hw) in enumerate(cases):
        k_x, k_p, key = jax.random.split(key, 3)
        x = jax.random.normal(k_x, (2, in_planes, hw, hw), jnp.float32)   # NCHW
        params = init_params(k_p, in_planes, planes, stride)
        prep = prepare_params(params, stride)      # one-time weight prep (cached)

        fwd = jax.jit(functools.partial(bottleneck_forward, stride=stride))
        out = jax.block_until_ready(fwd(x, prep))

        ref = jax.block_until_ready(ref_forward(x, params, stride))
        exp_h = hw if stride == 1 else hw // stride
        assert out.shape == ref.shape == (2, 4 * planes, exp_h, exp_h), f"shape, case {idx}"
        # bf16 MXU operands + bf16 output -> tolerance loosened vs the f32 reference.
        assert jnp.allclose(out, ref, rtol=3e-2, atol=3e-2), f"mismatch vs reference, case {idx}"

    print("KERNEL_OK")
</pallas_src>

<mosaic_0001>
module attributes {stable_mosaic.version = 11 : i64} {
  func.func @k(%arg0: i32, %arg1: memref<8x128xf32, #tpu.memory_space<vmem>>, %arg2: memref<8x128xf32, #tpu.memory_space<vmem>>, %arg3: memref<8x128xf32, #tpu.memory_space<vmem>>) attributes {dimension_semantics = [#tpu.dimension_semantics<arbitrary>], iteration_bounds = array<i64: 2>, scalar_prefetch = 0 : i64, scratch_operands = 0 : i64, tpu.core_type = #tpu.core_type<tc>, window_params = [{transform_indices = @transform_0, window_bounds = array<i64: 8, 128>}, {pipeline_mode = #tpu.pipeline_mode<synchronous>, transform_indices = @transform_1, window_bounds = array<i64: 8, 128>}, {transform_indices = @transform_2, window_bounds = array<i64: 8, 128>}]} {
    %c0 = arith.constant 0 : index
    %c0_0 = arith.constant 0 : index
    %0 = vector.load %arg1[%c0, %c0_0] : memref<8x128xf32, #tpu.memory_space<vmem>>, vector<8x128xf32>
    %c0_1 = arith.constant 0 : index
    %c0_2 = arith.constant 0 : index
    %1 = vector.load %arg2[%c0_1, %c0_2] : memref<8x128xf32, #tpu.memory_space<vmem>>, vector<8x128xf32>
    %2 = arith.addf %0, %1 : vector<8x128xf32>
    %c0_3 = arith.constant 0 : index
    %c0_4 = arith.constant 0 : index
    %3 = vector.load %arg3[%c0_3, %c0_4] : memref<8x128xf32, #tpu.memory_space<vmem>>, vector<8x128xf32>
    tpu.vector_store %arg3[%c0_3, %c0_4], %2 {strides = array<i32>} : memref<8x128xf32, #tpu.memory_space<vmem>>, vector<8x128xf32>,
    return
  }
  func.func @transform_0(%arg0: i32) -> (i32, i32) {
    %c0_i32 = arith.constant 0 : i32
    %c0_i32_0 = arith.constant 0 : i32
    return %arg0, %c0_i32 : i32, i32
  }
  func.func @transform_1(%arg0: i32) -> (i32, i32) {
    %c0_i32 = arith.constant 0 : i32
    %c0_i32_0 = arith.constant 0 : i32
    %c0_i32_1 = arith.constant 0 : i32
    return %c0_i32, %c0_i32_0 : i32, i32
  }
  func.func @transform_2(%arg0: i32) -> (i32, i32) {
    %c0_i32 = arith.constant 0 : i32
    %c0_i32_0 = arith.constant 0 : i32
    return %arg0, %c0_i32 : i32, i32
  }
}

module attributes {stable_mosaic.version = 11 : i64} {
  func.func @_matmul_bias_kernel(%arg0: i32, %arg1: i32, %arg2: memref<512x4xbf16, #tpu.memory_space<vmem>>, %arg3: memref<4x4xbf16, #tpu.memory_space<vmem>>, %arg4: memref<1x4xf32, #tpu.memory_space<vmem>>, %arg5: memref<512x4xbf16, #tpu.memory_space<vmem>>) attributes {dimension_semantics = [#tpu.dimension_semantics<parallel>, #tpu.dimension_semantics<parallel>], iteration_bounds = array<i64: 1, 1>, scalar_prefetch = 0 : i64, scratch_operands = 0 : i64, tpu.core_type = #tpu.core_type<tc>, window_params = [{transform_indices = @transform_0, window_bounds = array<i64: 512, 4>}, {transform_indices = @transform_1, window_bounds = array<i64: 4, 4>}, {transform_indices = @transform_2, window_bounds = array<i64: 1, 4>}, {transform_indices = @transform_3, window_bounds = array<i64: 512, 4>}]} {
    %c0 = arith.constant 0 : index
    %c0_0 = arith.constant 0 : index
    %0 = vector.load %arg2[%c0, %c0_0] : memref<512x4xbf16, #tpu.memory_space<vmem>>, vector<512x4xbf16>
    %c0_1 = arith.constant 0 : index
    %c0_2 = arith.constant 0 : index
    %1 = vector.load %arg3[%c0_1, %c0_2] : memref<4x4xbf16, #tpu.memory_space<vmem>>, vector<4x4xbf16>
    %cst = arith.constant dense<0.000000e+00> : vector<512x4xf32>
    %2 = tpu.matmul %0, %1, %cst {dimension_numbers = #tpu.dot_dimension_numbers<[1], [0], [0], [1], [0, 0, 1, 1], [], []>} : vector<512x4xbf16>, vector<4x4xbf16>, vector<512x4xf32> -> vector<512x4xf32>
    %c0_3 = arith.constant 0 : index
    %c0_4 = arith.constant 0 : index
    %3 = vector.load %arg4[%c0_3, %c0_4] : memref<1x4xf32, #tpu.memory_space<vmem>>, vector<1x4xf32>
    %4 = vector.broadcast %3 : vector<1x4xf32> to vector<512x4xf32>
    %5 = arith.addf %2, %4 : vector<512x4xf32>
    %cst_5 = arith.constant 0.000000e+00 : f32
    %6 = vector.broadcast %cst_5 : f32 to vector<512x4xf32>
    %7 = arith.maximumf %5, %6 : vector<512x4xf32>
    %8 = arith.truncf %7 : vector<512x4xf32> to vector<512x4xbf16>
    %c0_6 = arith.constant 0 : index
    %c0_7 = arith.constant 0 : index
    %9 = vector.load %arg5[%c0_6, %c0_7] : memref<512x4xbf16, #tpu.memory_space<vmem>>, vector<512x4xbf16>
    tpu.vector_store %arg5[%c0_6, %c0_7], %8 {strides = array<i32>} : memref<512x4xbf16, #tpu.memory_space<vmem>>, vector<512x4xbf16>,
    return
  }
  func.func @transform_0(%arg0: i32, %arg1: i32) -> (i32, i32) {
    %c0_i32 = arith.constant 0 : i32
    %c0_i32_0 = arith.constant 0 : i32
    return %arg0, %c0_i32 : i32, i32
  }
  func.func @transform_1(%arg0: i32, %arg1: i32) -> (i32, i32) {
    %c0_i32 = arith.constant 0 : i32
    %c0_i32_0 = arith.constant 0 : i32
    return %c0_i32, %arg1 : i32, i32
  }
  func.func @transform_2(%arg0: i32, %arg1: i32) -> (i32, i32) {
    %c0_i32 = arith.constant 0 : i32
    %c0_i32_0 = arith.constant 0 : i32
    return %c0_i32, %arg1 : i32, i32
  }
  func.func @transform_3(%arg0: i32, %arg1: i32) -> (i32, i32) {
    %c0_i32 = arith.constant 0 : i32
    return %arg0, %arg1 : i32, i32
  }
}

module attributes {stable_mosaic.version = 11 : i64} {
  func.func @_dual_matmul_bias_kernel(%arg0: i32, %arg1: i32, %arg2: memref<512x4xbf16, #tpu.memory_space<vmem>>, %arg3: memref<4x16xbf16, #tpu.memory_space<vmem>>, %arg4: memref<512x4xbf16, #tpu.memory_space<vmem>>, %arg5: memref<4x16xbf16, #tpu.memory_space<vmem>>, %arg6: memref<1x16xf32, #tpu.memory_space<vmem>>, %arg7: memref<512x16xbf16, #tpu.memory_space<vmem>>) attributes {dimension_semantics = [#tpu.dimension_semantics<parallel>, #tpu.dimension_semantics<parallel>], iteration_bounds = array<i64: 1, 1>, scalar_prefetch = 0 : i64, scratch_operands = 0 : i64, tpu.core_type = #tpu.core_type<tc>, window_params = [{transform_indices = @transform_0, window_bounds = array<i64: 512, 4>}, {transform_indices = @transform_1, window_bounds = array<i64: 4, 16>}, {transform_indices = @transform_2, window_bounds = array<i64: 512, 4>}, {transform_indices = @transform_3, window_bounds = array<i64: 4, 16>}, {transform_indices = @transform_4, window_bounds = array<i64: 1, 16>}, {transform_indices = @transform_5, window_bounds = array<i64: 512, 16>}]} {
    %c0 = arith.constant 0 : index
    %c0_0 = arith.constant 0 : index
    %0 = vector.load %arg2[%c0, %c0_0] : memref<512x4xbf16, #tpu.memory_space<vmem>>, vector<512x4xbf16>
    %c0_1 = arith.constant 0 : index
    %c0_2 = arith.constant 0 : index
    %1 = vector.load %arg3[%c0_1, %c0_2] : memref<4x16xbf16, #tpu.memory_space<vmem>>, vector<4x16xbf16>
    %cst = arith.constant dense<0.000000e+00> : vector<512x16xf32>
    %2 = tpu.matmul %0, %1, %cst {dimension_numbers = #tpu.dot_dimension_numbers<[1], [0], [0], [1], [0, 0, 1, 1], [], []>} : vector<512x4xbf16>, vector<4x16xbf16>, vector<512x16xf32> -> vector<512x16xf32>
    %c0_3 = arith.constant 0 : index
    %c0_4 = arith.constant 0 : index
    %3 = vector.load %arg4[%c0_3, %c0_4] : memref<512x4xbf16, #tpu.memory_space<vmem>>, vector<512x4xbf16>
    %c0_5 = arith.constant 0 : index
    %c0_6 = arith.constant 0 : index
    %4 = vector.load %arg5[%c0_5, %c0_6] : memref<4x16xbf16, #tpu.memory_space<vmem>>, vector<4x16xbf16>
    %cst_7 = arith.constant dense<0.000000e+00> : vector<512x16xf32>
    %5 = tpu.matmul %3, %4, %cst_7 {dimension_numbers = #tpu.dot_dimension_numbers<[1], [0], [0], [1], [0, 0, 1, 1], [], []>} : vector<512x4xbf16>, vector<4x16xbf16>, vector<512x16xf32> -> vector<512x16xf32>
    %6 = arith.addf %2, %5 : vector<512x16xf32>
    %c0_8 = arith.constant 0 : index
    %c0_9 = arith.constant 0 : index
    %7 = vector.load %arg6[%c0_8, %c0_9] : memref<1x16xf32, #tpu.memory_space<vmem>>, vector<1x16xf32>
    %8 = vector.broadcast %7 : vector<1x16xf32> to vector<512x16xf32>
    %9 = arith.addf %6, %8 : vector<512x16xf32>
    %cst_10 = arith.constant 0.000000e+00 : f32
    %10 = vector.broadcast %cst_10 : f32 to vector<512x16xf32>
    %11 = arith.maximumf %9, %10 : vector<512x16xf32>
    %12 = arith.truncf %11 : vector<512x16xf32> to vector<512x16xbf16>
    %c0_11 = arith.constant 0 : index
    %c0_12 = arith.constant 0 : index
    %13 = vector.load %arg7[%c0_11, %c0_12] : memref<512x16xbf16, #tpu.memory_space<vmem>>, vector<512x16xbf16>
    tpu.vector_store %arg7[%c0_11, %c0_12], %12 {strides = array<i32>} : memref<512x16xbf16, #tpu.memory_space<vmem>>, vector<512x16xbf16>,
    return
  }
  func.func @transform_0(%arg0: i32, %arg1: i32) -> (i32, i32) {
    %c0_i32 = arith.constant 0 : i32
    %c0_i32_0 = arith.constant 0 : i32
    return %arg0, %c0_i32 : i32, i32
  }
  func.func @transform_1(%arg0: i32, %arg1: i32) -> (i32, i32) {
    %c0_i32 = arith.constant 0 : i32
    %c0_i32_0 = arith.constant 0 : i32
    return %c0_i32, %arg1 : i32, i32
  }
  func.func @transform_2(%arg0: i32, %arg1: i32) -> (i32, i32) {
    %c0_i32 = arith.constant 0 : i32
    %c0_i32_0 = arith.constant 0 : i32
    return %arg0, %c0_i32 : i32, i32
  }
  func.func @transform_3(%arg0: i32, %arg1: i32) -> (i32, i32) {
    %c0_i32 = arith.constant 0 : i32
    %c0_i32_0 = arith.constant 0 : i32
    return %c0_i32, %arg1 : i32, i32
  }
  func.func @transform_4(%arg0: i32, %arg1: i32) -> (i32, i32) {
    %c0_i32 = arith.constant 0 : i32
    %c0_i32_0 = arith.constant 0 : i32
    return %c0_i32, %arg1 : i32, i32
  }
  func.func @transform_5(%arg0: i32, %arg1: i32) -> (i32, i32) {
    %c0_i32 = arith.constant 0 : i32
    return %arg0, %arg1 : i32, i32
  }
}

module attributes {stable_mosaic.version = 11 : i64} {
  func.func @_conv3x3_kernel(%arg0: i32, %arg1: memref<1x16x16x4xbf16, #tpu.memory_space<vmem>>, %arg2: memref<3x12x4xbf16, #tpu.memory_space<vmem>>, %arg3: memref<1x4xf32, #tpu.memory_space<vmem>>, %arg4: memref<1x16x16x4xbf16, #tpu.memory_space<vmem>>, %arg5: memref<18x18x4xbf16, #tpu.memory_space<vmem>>) attributes {dimension_semantics = [#tpu.dimension_semantics<parallel>], iteration_bounds = array<i64: 2>, scalar_prefetch = 0 : i64, scratch_operands = 1 : i64, tpu.core_type = #tpu.core_type<tc>, window_params = [{transform_indices = @transform_0, window_bounds = array<i64: 1, 16, 16, 4>}, {pipeline_mode = #tpu.pipeline_mode<synchronous>, transform_indices = @transform_1, window_bounds = array<i64: 3, 12, 4>}, {pipeline_mode = #tpu.pipeline_mode<synchronous>, transform_indices = @transform_2, window_bounds = array<i64: 1, 4>}, {transform_indices = @transform_3, window_bounds = array<i64: 1, 16, 16, 4>}]} {
    %cst = arith.constant 0.000000e+00 : bf16
    %0 = vector.broadcast %cst : bf16 to vector<18x18x4xbf16>
    %c0 = arith.constant 0 : index
    %c0_0 = arith.constant 0 : index
    %c0_1 = arith.constant 0 : index
    %1 = vector.load %arg5[%c0, %c0_0, %c0_1] : memref<18x18x4xbf16, #tpu.memory_space<vmem>>, vector<18x18x4xbf16>
    tpu.vector_store %arg5[%c0, %c0_0, %c0_1], %0 {strides = array<i32>} : memref<18x18x4xbf16, #tpu.memory_space<vmem>>, vector<18x18x4xbf16>,
    %c0_2 = arith.constant 0 : index
    %c0_3 = arith.constant 0 : index
    %c0_4 = arith.constant 0 : index
    %c0_5 = arith.constant 0 : index
    %2 = vector.load %arg1[%c0_2, %c0_3, %c0_4, %c0_5] : memref<1x16x16x4xbf16, #tpu.memory_space<vmem>>, vector<1x16x16x4xbf16>
    %3 = vector.shape_cast %2 : vector<1x16x16x4xbf16> to vector<16x16x4xbf16>
    %c1 = arith.constant 1 : index
    %c1_6 = arith.constant 1 : index
    %c0_7 = arith.constant 0 : index
    %4 = vector.load %arg5[%c1, %c1_6, %c0_7] : memref<18x18x4xbf16, #tpu.memory_space<vmem>>, vector<16x16x4xbf16>
    tpu.vector_store %arg5[%c1, %c1_6, %c0_7], %3 {strides = array<i32>} : memref<18x18x4xbf16, #tpu.memory_space<vmem>>, vector<16x16x4xbf16>,
    %cst_8 = arith.constant 0.000000e+00 : f32
    %5 = vector.broadcast %cst_8 : f32 to vector<256x4xf32>
    %c0_9 = arith.constant 0 : index
    %c0_10 = arith.constant 0 : index
    %c0_11 = arith.constant 0 : index
    %6 = vector.load %arg5[%c0_9, %c0_10, %c0_11] : memref<18x18x4xbf16, #tpu.memory_space<vmem>>, vector<16x16x4xbf16>
    %c0_12 = arith.constant 0 : index
    %c1_13 = arith.constant 1 : index
    %c0_14 = arith.constant 0 : index
    %7 = vector.load %arg5[%c0_12, %c1_13, %c0_14] : memref<18x18x4xbf16, #tpu.memory_space<vmem>>, vector<16x16x4xbf16>
    %c0_15 = arith.constant 0 : index
    %c2 = arith.constant 2 : index
    %c0_16 = arith.constant 0 : index
    %8 = vector.load %arg5[%c0_15, %c2, %c0_16] : memref<18x18x4xbf16, #tpu.memory_space<vmem>>, vector<16x16x4xbf16>
    %9 = tpu.concatenate %6, %7, %8 in 2 : vector<16x16x4xbf16>, vector<16x16x4xbf16>, vector<16x16x4xbf16> -> vector<16x16x12xbf16>
    %10 = vector.shape_cast %9 : vector<16x16x12xbf16> to vector<256x12xbf16>
    %c0_17 = arith.constant 0 : index
    %c0_18 = arith.constant 0 : index
    %c0_19 = arith.constant 0 : index
    %11 = vector.load %arg2[%c0_17, %c0_18, %c0_19] : memref<3x12x4xbf16, #tpu.memory_space<vmem>>, vector<1x12x4xbf16>
    %12 = vector.shape_cast %11 : vector<1x12x4xbf16> to vector<12x4xbf16>
    %cst_20 = arith.constant dense<0.000000e+00> : vector<256x4xf32>
    %13 = tpu.matmul %10, %12, %cst_20 {dimension_numbers = #tpu.dot_dimension_numbers<[1], [0], [0], [1], [0, 0, 1, 1], [], []>} : vector<256x12xbf16>, vector<12x4xbf16>, vector<256x4xf32> -> vector<256x4xf32>
    %14 = arith.addf %5, %13 : vector<256x4xf32>
    %c1_21 = arith.constant 1 : index
    %c0_22 = arith.constant 0 : index
    %c0_23 = arith.constant 0 : index
    %15 = vector.load %arg5[%c1_21, %c0_22, %c0_23] : memref<18x18x4xbf16, #tpu.memory_space<vmem>>, vector<16x16x4xbf16>
    %c1_24 = arith.constant 1 : index
    %c1_25 = arith.constant 1 : index
    %c0_26 = arith.constant 0 : index
    %16 = vector.load %arg5[%c1_24, %c1_25, %c0_26] : memref<18x18x4xbf16, #tpu.memory_space<vmem>>, vector<16x16x4xbf16>
    %c1_27 = arith.constant 1 : index
    %c2_28 = arith.constant 2 : index
    %c0_29 = arith.constant 0 : index
    %17 = vector.load %arg5[%c1_27, %c2_28, %c0_29] : memref<18x18x4xbf16, #tpu.memory_space<vmem>>, vector<16x16x4xbf16>
    %18 = tpu.concatenate %15, %16, %17 in 2 : vector<16x16x4xbf16>, vector<16x16x4xbf16>, vector<16x16x4xbf16> -> vector<16x16x12xbf16>
    %19 = vector.shape_cast %18 : vector<16x16x12xbf16> to vector<256x12xbf16>
    %c1_30 = arith.constant 1 : index
    %c0_31 = arith.constant 0 : index
    %c0_32 = arith.constant 0 : index
    %20 = vector.load %arg2[%c1_30, %c0_31, %c0_32] : memref<3x12x4xbf16, #tpu.memory_space<vmem>>, vector<1x12x4xbf16>
    %21 = vector.shape_cast %20 : vector<1x12x4xbf16> to vector<12x4xbf16>
    %cst_33 = arith.constant dense<0.000000e+00> : vector<256x4xf32>
    %22 = tpu.matmul %19, %21, %cst_33 {dimension_numbers = #tpu.dot_dimension_numbers<[1], [0], [0], [1], [0, 0, 1, 1], [], []>} : vector<256x12xbf16>, vector<12x4xbf16>, vector<256x4xf32> -> vector<256x4xf32>
    %23 = arith.addf %14, %22 : vector<256x4xf32>
    %c2_34 = arith.constant 2 : index
    %c0_35 = arith.constant 0 : index
    %c0_36 = arith.constant 0 : index
    %24 = vector.load %arg5[%c2_34, %c0_35, %c0_36] : memref<18x18x4xbf16, #tpu.memory_space<vmem>>, vector<16x16x4xbf16>
    %c2_37 = arith.constant 2 : index
    %c1_38 = arith.constant 1 : index
    %c0_39 = arith.constant 0 : index
    %25 = vector.load %arg5[%c2_37, %c1_38, %c0_39] : memref<18x18x4xbf16, #tpu.memory_space<vmem>>, vector<16x16x4xbf16>
    %c2_40 = arith.constant 2 : index
    %c2_41 = arith.constant 2 : index
    %c0_42 = arith.constant 0 : index
    %26 = vector.load %arg5[%c2_40, %c2_41, %c0_42] : memref<18x18x4xbf16, #tpu.memory_space<vmem>>, vector<16x16x4xbf16>
    %27 = tpu.concatenate %24, %25, %26 in 2 : vector<16x16x4xbf16>, vector<16x16x4xbf16>, vector<16x16x4xbf16> -> vector<16x16x12xbf16>
    %28 = vector.shape_cast %27 : vector<16x16x12xbf16> to vector<256x12xbf16>
    %c2_43 = arith.constant 2 : index
    %c0_44 = arith.constant 0 : index
    %c0_45 = arith.constant 0 : index
    %29 = vector.load %arg2[%c2_43, %c0_44, %c0_45] : memref<3x12x4xbf16, #tpu.memory_space<vmem>>, vector<1x12x4xbf16>
    %30 = vector.shape_cast %29 : vector<1x12x4xbf16> to vector<12x4xbf16>
    %cst_46 = arith.constant dense<0.000000e+00> : vector<256x4xf32>
    %31 = tpu.matmul %28, %30, %cst_46 {dimension_numbers = #tpu.dot_dimension_numbers<[1], [0], [0], [1], [0, 0, 1, 1], [], []>} : vector<256x12xbf16>, vector<12x4xbf16>, vector<256x4xf32> -> vector<256x4xf32>
    %32 = arith.addf %23, %31 : vector<256x4xf32>
    %c0_47 = arith.constant 0 : index
    %c0_48 = arith.constant 0 : index
    %33 = vector.load %arg3[%c0_47, %c0_48] : memref<1x4xf32, #tpu.memory_space<vmem>>, vector<1x4xf32>
    %34 = vector.broadcast %33 : vector<1x4xf32> to vector<256x4xf32>
    %35 = arith.addf %32, %34 : vector<256x4xf32>
    %cst_49 = arith.constant 0.000000e+00 : f32
    %36 = vector.broadcast %cst_49 : f32 to vector<256x4xf32>
    %37 = arith.maximumf %35, %36 : vector<256x4xf32>
    %38 = vector.shape_cast %37 : vector<256x4xf32> to vector<16x16x4xf32>
    %39 = arith.truncf %38 : vector<16x16x4xf32> to vector<16x16x4xbf16>
    %c0_50 = arith.constant 0 : index
    %c0_51 = arith.constant 0 : index
    %c0_52 = arith.constant 0 : index
    %c0_53 = arith.constant 0 : index
    %40 = vector.load %arg4[%c0_50, %c0_51, %c0_52, %c0_53] : memref<1x16x16x4xbf16, #tpu.memory_space<vmem>>, vector<1x16x16x4xbf16>
    %41 = vector.shape_cast %40 : vector<1x16x16x4xbf16> to vector<16x16x4xbf16>
    %42 = vector.shape_cast %39 : vector<16x16x4xbf16> to vector<1x16x16x4xbf16>
    tpu.vector_store %arg4[%c0_50, %c0_51, %c0_52, %c0_53], %42 {strides = array<i32>} : memref<1x16x16x4xbf16, #tpu.memory_space<vmem>>, vector<1x16x16x4xbf16>,
    return
  }
  func.func @transform_0(%arg0: i32) -> (i32, i32, i32, i32) {
    %c0_i32 = arith.constant 0 : i32
    %c0_i32_0 = arith.constant 0 : i32
    %c0_i32_1 = arith.constant 0 : i32
    %c0_i32_2 = arith.constant 0 : i32
    return %arg0, %c0_i32, %c0_i32_0, %c0_i32_1 : i32, i32, i32, i32
  }
  func.func @transform_1(%arg0: i32) -> (i32, i32, i32) {
    %c0_i32 = arith.constant 0 : i32
    %c0_i32_0 = arith.constant 0 : i32
    %c0_i32_1 = arith.constant 0 : i32
    %c0_i32_2 = arith.constant 0 : i32
    return %c0_i32, %c0_i32_0, %c0_i32_1 : i32, i32, i32
  }
  func.func @transform_2(%arg0: i32) -> (i32, i32) {
    %c0_i32 = arith.constant 0 : i32
    %c0_i32_0 = arith.constant 0 : i32
    %c0_i32_1 = arith.constant 0 : i32
    return %c0_i32, %c0_i32_0 : i32, i32
  }
  func.func @transform_3(%arg0: i32) -> (i32, i32, i32, i32) {
    %c0_i32 = arith.constant 0 : i32
    %c0_i32_0 = arith.constant 0 : i32
    %c0_i32_1 = arith.constant 0 : i32
    %c0_i32_2 = arith.constant 0 : i32
    return %arg0, %c0_i32, %c0_i32_0, %c0_i32_1 : i32, i32, i32, i32
  }
}

</mosaic_0001>

<llo_original>
// kernel: tpu_custom_call.1
$region0: #{tpu_custom_call.1}
  #allocation0 [shape = 'u32[]', space=smem, size = 0x4, offset = 0x4, fixed_abs, tag = 'smem constant byte address 0x4 - core index']
  #allocation1 [shape = 'u32[144,128]{1,0:T(1,128)}', space=vmem, size = 0x12000, scoped, tag = 'internal scratch']
  %s0 = inlined_call_operand.hbm [shape: f32[16,128], index: 0, kind: input, shape index: {}]
  %s1 = inlined_call_operand.hbm [shape: f32[8,128], index: 1, kind: input, shape index: {}]
  %s2 = inlined_call_operand.hbm [shape: f32[16,128], index: 2, kind: output, shape index: {}]
  %s3 = sld [smem:[#allocation0]]
  $region49: #{tpu_custom_call.1} parent=0
    _
  %s5 = ssub.s32 1, %s3
  %s6 = scalar_select 0, %s5, %s3
  $region1: #{tpu_custom_call.1} parent=0
    #allocation2 [shape = 'u8[8192]{0}', space=vmem, size = 0x2000, scoped, tag = 'input window, operand 0']
    #allocation3 [shape = 's32[2]{0}', space=sflag, size = 0x8, scoped, tag = 'scoped memory for tpu_custom_call.1']
    #allocation4 [shape = 's32[2]{0}', space=sflag, size = 0x8, scoped, tag = 'scoped memory for tpu_custom_call.1']
    #allocation5 [shape = 'u8[4096]{0}', space=vmem, size = 0x1000, scoped, tag = 'input window, operand 1, single buffered']
    #allocation6 [shape = 's32[1]{0}', space=sflag, size = 0x4, scoped, tag = 'scoped memory for tpu_custom_call.1']
    #allocation7 [shape = 'u8[8192]{0}', space=vmem, size = 0x2000, scoped, tag = 'output window, operand 0']
    %7 = vsyncpa [#allocation3], 0
    %s8 = scalar_lea.sflag [#allocation3], 1
    %9 = vsyncpa %s8, 0
    %10 = vsyncpa [#allocation6], 0
    %11 = vsyncpa [#allocation4], 0
    %s12 = scalar_lea.sflag [#allocation4], 1
    %13 = vsyncpa %s12, 0
    loop: start=0, step=1, limit=4
    $region2: #{tpu_custom_call.1} parent=1 // loop_pre_header
      _
    $region3: #{tpu_custom_call.1} parent=1 // loop_header
      %s15 = sphi 0, %s19
      %p16 = scmp.ge.s32.totalorder %s15, 4
      %s25 = sphi 0, %s27
      %s28 = sphi 0, %s25
      %s29 = sphi 0, %s28
      %s45 = sphi 0, %s29
      %s49 = sphi 0, %s49
      %s51 = sphi 0, %s49
      %s52 = sphi 0, %s51
      %s66 = sphi 0, %s52
      %s72 = sphi 0, %s74
      %s75 = sphi 0, %s72
      %s76 = sphi 0, %s75
      %s92 = sphi 0, %s76
    $region4: #{tpu_custom_call.1} parent=1 // loop_header_branch
      %18 = sbr.rel (%p16) target = $region8
    $region5: #{tpu_custom_call.1} parent=1 // loop_body
      %s20 = ssub.s32 %s15, 1
      %s21 = ssub.s32 %s15, 2
      %s22 = sadd.s32 %s15, 1
      %s23 = ssub.s32 %s15, %s22
      %p24 = scmp.eq.s32.totalorder %s23, 0
      %s26 = sadd.s32 %s25, 1
      %s27 = scalar_select %p24, %s25, %s26
      %p30 = pneg %p24
      %p31 = scmp.eq.s32.totalorder %s15, 1
      %p32 = por %p30, %p31
      %p33 = scmp.ne.s32.totalorder %s25, %s28
      %p34 = scmp.eq.s32.totalorder %s15, 0
      %p35 = por %p33, %p34
      %p36 = scmp.ne.s32.totalorder %s25, %s28
      %p37 = scmp.eq.s32.totalorder %s20, 1
      %p38 = por %p36, %p37
      %p39 = scmp.ne.s32.totalorder %s28, %s29
      %p40 = scmp.eq.s32.totalorder %s20, 0
      %p41 = por %p39, %p40
      %p42 = scmp.ne.s32.totalorder %s28, %s29
      %p43 = scmp.eq.s32.totalorder %s21, 1
      %p44 = por %p42, %p43
      %p46 = scmp.ne.s32.totalorder %s29, %s45
      %p47 = scmp.eq.s32.totalorder %s21, 0
      %p48 = por %p46, %p47
      %s50 = sadd.s32 %s49, 1
      %p53 = scmp.eq.s32.totalorder %s15, 1
      %p54 = scmp.ne.s32.totalorder %s49, %s51
      %p55 = scmp.eq.s32.totalorder %s15, 0
      %p56 = por %p54, %p55
      %p57 = scmp.ne.s32.totalorder %s49, %s51
      %p58 = scmp.eq.s32.totalorder %s20, 1
      %p59 = por %p57, %p58
      %p60 = scmp.ne.s32.totalorder %s51, %s52
      %p61 = scmp.eq.s32.totalorder %s20, 0
      %p62 = por %p60, %p61
      %p63 = scmp.ne.s32.totalorder %s51, %s52
      %p64 = scmp.eq.s32.totalorder %s21, 1
      %p65 = por %p63, %p64
      %p67 = scmp.ne.s32.totalorder %s52, %s66
      %p68 = scmp.eq.s32.totalorder %s21, 0
      %p69 = por %p67, %p68
      %s70 = ssub.s32 %s15, %s22
      %p71 = scmp.eq.s32.totalorder %s70, 0
      %s73 = sadd.s32 %s72, 1
      %s74 = scalar_select %p71, %s72, %s73
      %p77 = pneg %p71
      %p78 = scmp.eq.s32.totalorder %s15, 1
      %p79 = por %p77, %p78
      %p80 = scmp.ne.s32.totalorder %s72, %s75
      %p81 = scmp.eq.s32.totalorder %s15, 0
      %p82 = por %p80, %p81
      %p83 = scmp.ne.s32.totalorder %s72, %s75
      %p84 = scmp.eq.s32.totalorder %s20, 1
      %p85 = por %p83, %p84
      %p86 = scmp.ne.s32.totalorder %s75, %s76
      %p87 = scmp.eq.s32.totalorder %s20, 0
      %p88 = por %p86, %p87
      %p89 = scmp.ne.s32.totalorder %s75, %s76
      %p90 = scmp.eq.s32.totalorder %s21, 1
      %p91 = por %p89, %p90
      %p93 = scmp.ne.s32.totalorder %s76, %s92
      %p94 = scmp.eq.s32.totalorder %s21, 0
      %p95 = por %p93, %p94
      %p96 = scmp.le.s32.totalorder 1, %s15
      %p97 = scmp.lt.s32.totalorder %s15, 3
      %p98 = pnand %p96, %p97
      %p99 = pneg %p98
      // Predicated region
      $region9: #{tpu_custom_call.1} parent=5 // pred_check
        _
      $region10: #{tpu_custom_call.1} parent=5 // pred_check_branch
        %101 = sbr.rel (%p98) target = $region12
      $region11: #{tpu_custom_call.1} parent=5 // pred_region
        %s102 = ssub.s32 %s15, 1
        // Predicated region
        $region13: #{tpu_custom_call.1} parent=11 // pred_check
          %p103 = pneg %p62
        $region14: #{tpu_custom_call.1} parent=11 // pred_check_branch
          %105 = sbr.rel (%p103) target = $region16
        $region15: #{tpu_custom_call.1} parent=11 // pred_region
          %s107 = ssub.s32 128, 128
          %108 = vsyncadd [#allocation6], %s107
          %s110 = sshll.u32 [#allocation5], 4
          %s111 = int_to_ptr.vmem [resolvable:$true] %s110
          %113 = dma.hbm_to_vmem [thread:$0]  %s1, 128, %s111, [#allocation6]
        $region16: #{tpu_custom_call.1} parent=11 // pred_fallthru
          _
      $region12: #{tpu_custom_call.1} parent=5 // pred_fallthru
        _
      %p114 = scmp.lt.s32.totalorder %s15, 2
      // Predicated region
      $region17: #{tpu_custom_call.1} parent=5 // pred_check
        %p115 = pneg %p114
      $region18: #{tpu_custom_call.1} parent=5 // pred_check_branch
        %117 = sbr.rel (%p115) target = $region20
      $region19: #{tpu_custom_call.1} parent=5 // pred_region
        // Predicated region
        $region21: #{tpu_custom_call.1} parent=19 // pred_check
          %p118 = pneg %p35
        $region22: #{tpu_custom_call.1} parent=19 // pred_check_branch
          %120 = sbr.rel (%p118) target = $region24
        $region23: #{tpu_custom_call.1} parent=19 // pred_region
          %s121 = sand.u32 %s25, 1
          %s122 = scalar_lea.sflag [#allocation3], %s121
          %s123 = sand.u32 %s25, 1
          %s124 = smul.addr %s123, 8
          %s125 = scalar_lea.vmem [#allocation2], %s124
          %s127 = ssub.s32 128, 128
          %128 = vsyncadd %s122, %s127
          %s129 = smul.addr %s15, 128
          %s130 = scalar_lea.hbm %s0, %s129
          %s132 = sshll.u32 %s125, 4
          %s133 = int_to_ptr.vmem [resolvable:$true] %s132
          %135 = dma.hbm_to_vmem [thread:$0]  %s130, 128, %s133, %s122
        $region24: #{tpu_custom_call.1} parent=19 // pred_fallthru
          _
      $region20: #{tpu_custom_call.1} parent=5 // pred_fallthru
        _
      %p136 = scmp.le.s32.totalorder 1, %s15
      %p137 = scmp.lt.s32.totalorder %s15, 3
      %p138 = pnand %p136, %p137
      %p139 = pneg %p138
      // Predicated region
      $region25: #{tpu_custom_call.1} parent=5 // pred_check
        _
      $region26: #{tpu_custom_call.1} parent=5 // pred_check_branch
        %141 = sbr.rel (%p138) target = $region28
      $region27: #{tpu_custom_call.1} parent=5 // pred_region
        %s142 = ssub.s32 %s15, 1
        %s143 = sand.u32 %s28, 1
        %s144 = scalar_lea.sflag [#allocation3], %s143
        %s145 = sand.u32 %s28, 1
        %s146 = smul.addr %s145, 8
        %s147 = scalar_lea.vmem [#allocation2], %s146
        // Predicated region
        $region29: #{tpu_custom_call.1} parent=27 // pred_check
          %p148 = pneg %p41
        $region30: #{tpu_custom_call.1} parent=27 // pred_check_branch
          %150 = sbr.rel (%p148) target = $region32
        $region31: #{tpu_custom_call.1} parent=27 // pred_region
          %151 = dma.done %s144, 128
        $region32: #{tpu_custom_call.1} parent=27 // pred_fallthru
          _
        // Predicated region
        $region33: #{tpu_custom_call.1} parent=27 // pred_check
          %p152 = pneg %p62
        $region34: #{tpu_custom_call.1} parent=27 // pred_check_branch
          %154 = sbr.rel (%p152) target = $region36
        $region35: #{tpu_custom_call.1} parent=27 // pred_region
          %155 = dma.done [#allocation6], 128
        $region36: #{tpu_custom_call.1} parent=27 // pred_fallthru
          _
        %s156 = sand.u32 %s28, 1
        %s157 = scalar_lea.sflag [#allocation3], %s156
        %s158 = sand.u32 %s28, 1
        %s159 = smul.addr %s158, 8
        %s160 = scalar_lea.vmem [#allocation2], %s159
        %p161 = pneg %p41
        %p162 = pneg %p38
        %p163 = pneg %p62
        %p164 = pneg %p59
        %p165 = pneg %p88
        %p166 = pneg %p85
        %s167 = sand.u32 %s75, 1
        %s168 = scalar_lea.sflag [#allocation4], %s167
        %s169 = sand.u32 %s75, 1
        %s170 = smul.addr %s169, 8
        %s171 = scalar_lea.vmem [#allocation7], %s170
        %v172 = vld [vmem:[%s147] sm:$0xff]
        %v173 = vld [vmem:[#allocation5] sm:$0xff]
        %v174 = vadd.f32 %v172, %v173
        %175 = vst [vmem:[%s171] sm:$0xff] %v174
        %s176 = sand.u32 %s75, 1
        %s177 = scalar_lea.sflag [#allocation4], %s176
        %s178 = sand.u32 %s75, 1
        %s179 = smul.addr %s178, 8
        %s180 = scalar_lea.vmem [#allocation7], %s179
        // Predicated region
        $region37: #{tpu_custom_call.1} parent=27 // pred_check
          %p181 = pneg %p85
        $region38: #{tpu_custom_call.1} parent=27 // pred_check_branch
          %183 = sbr.rel (%p181) target = $region40
        $region39: #{tpu_custom_call.1} parent=27 // pred_region
          %s185 = ssub.s32 128, 128
          %186 = vsyncadd %s177, %s185
          %s187 = smul.addr %s20, 128
          %s188 = scalar_lea.hbm %s2, %s187
          %s190 = sshll.u32 %s180, 4
          %s191 = int_to_ptr.vmem [resolvable:$true] %s190
          %193 = dma.vmem_to_hbm [thread:$0]  %s191, 128, %s188, %s177
        $region40: #{tpu_custom_call.1} parent=27 // pred_fallthru
          _
      $region28: #{tpu_custom_call.1} parent=5 // pred_fallthru
        _
      %p194 = scmp.le.s32.totalorder 2, %s15
      // Predicated region
      $region41: #{tpu_custom_call.1} parent=5 // pred_check
        %p195 = pneg %p194
      $region42: #{tpu_custom_call.1} parent=5 // pred_check_branch
        %197 = sbr.rel (%p195) target = $region44
      $region43: #{tpu_custom_call.1} parent=5 // pred_region
        %s198 = ssub.s32 %s15, 2
        // Predicated region
        $region45: #{tpu_custom_call.1} parent=43 // pred_check
          %p199 = pneg %p91
        $region46: #{tpu_custom_call.1} parent=43 // pred_check_branch
          %201 = sbr.rel (%p199) target = $region48
        $region47: #{tpu_custom_call.1} parent=43 // pred_region
          %s202 = sand.u32 %s76, 1
          %s203 = scalar_lea.sflag [#allocation4], %s202
          %s204 = sand.u32 %s76, 1
          %s205 = smul.addr %s204, 8
          %s206 = scalar_lea.vmem [#allocation7], %s205
          %207 = dma.done %s203, 128
        $region48: #{tpu_custom_call.1} parent=43 // pred_fallthru
          _
      $region44: #{tpu_custom_call.1} parent=5 // pred_fallthru
        _
    $region6: #{tpu_custom_call.1} parent=1 // loop_footer
      %s19 = sadd.s32 1, %s15
    $region7: #{tpu_custom_call.1} parent=1 // loop_footer_branch
      %14 = sbr.rel target = $region3
    $region8: #{tpu_custom_call.1} parent=1 // loop_exit
      _
    %208 = vsyncpa [#allocation3], 1
    %s209 = scalar_lea.sflag [#allocation3], 1
    %210 = vsyncpa %s209, 1
    %211 = vsyncpa [#allocation6], 1
    %212 = vsyncpa [#allocation4], 1
    %s213 = scalar_lea.sflag [#allocation4], 1
    %214 = vsyncpa %s213, 1

// kernel: bottleneck_forward.3
$region0: #{bottleneck_forward.3}
  #allocation0 [shape = 'u32[]', space=smem, size = 0x4, offset = 0x4, fixed_abs, tag = 'smem constant byte address 0x4 - core index']
  #allocation1 [shape = 'u32[144,128]{1,0:T(1,128)}', space=vmem, size = 0x12000, scoped, tag = 'internal scratch']
  %s0 = inlined_call_operand.vmem [shape: bf16[512,4], index: 0, kind: input, shape index: {}]
  %s1 = inlined_call_operand.vmem [shape: bf16[4,4], index: 1, kind: input, shape index: {}]
  %s2 = inlined_call_operand.vmem [shape: f32[1,4], index: 2, kind: input, shape index: {}]
  %s3 = inlined_call_operand.vmem [shape: bf16[512,4], index: 3, kind: output, shape index: {}]
  %s4 = sld [smem:[#allocation0]]
  $region22: #{bottleneck_forward.3} parent=0
    _
  %s6 = ssub.s32 1, %s4
  %s7 = scalar_select 0, %s6, %s4
  // Predicated region
  $region2: #{bottleneck_forward.3} parent=0 // pred_check
    _
  $region3: #{bottleneck_forward.3} parent=0 // pred_check_branch
    %9 = sbr.rel (0) target = $region5
  $region4: #{bottleneck_forward.3} parent=0 // pred_region
    _
  $region5: #{bottleneck_forward.3} parent=0 // pred_fallthru
    _
  // Predicated region
  $region6: #{bottleneck_forward.3} parent=0 // pred_check
    _
  $region7: #{bottleneck_forward.3} parent=0 // pred_check_branch
    %11 = sbr.rel (0) target = $region9
  $region8: #{bottleneck_forward.3} parent=0 // pred_region
    _
  $region9: #{bottleneck_forward.3} parent=0 // pred_fallthru
    _
  // Predicated region
  $region10: #{bottleneck_forward.3} parent=0 // pred_check
    _
  $region11: #{bottleneck_forward.3} parent=0 // pred_check_branch
    %13 = sbr.rel (0) target = $region13
  $region12: #{bottleneck_forward.3} parent=0 // pred_region
    _
  $region13: #{bottleneck_forward.3} parent=0 // pred_fallthru
    _
  %v15 = vld [vmem:[%s0] sm:$0xf]
  %v16 = vld [vmem:[%s0 + $0x4] sm:$0xf]
  %v17 = vld [vmem:[%s0 + $0x8] sm:$0xf]
  %v18 = vld [vmem:[%s0 + $0xc] sm:$0xf]
  %v19 = vld [vmem:[%s0 + $0x10] sm:$0xf]
  %v20 = vld [vmem:[%s0 + $0x14] sm:$0xf]
  %v21 = vld [vmem:[%s0 + $0x18] sm:$0xf]
  %v22 = vld [vmem:[%s0 + $0x1c] sm:$0xf]
  %v23 = vld [vmem:[%s0 + $0x20] sm:$0xf]
  %v24 = vld [vmem:[%s0 + $0x24] sm:$0xf]
  %v25 = vld [vmem:[%s0 + $0x28] sm:$0xf]
  %v26 = vld [vmem:[%s0 + $0x2c] sm:$0xf]
  %v27 = vld [vmem:[%s0 + $0x30] sm:$0xf]
  %v28 = vld [vmem:[%s0 + $0x34] sm:$0xf]
  %v29 = vld [vmem:[%s0 + $0x38] sm:$0xf]
  %v30 = vld [vmem:[%s0 + $0x3c] sm:$0xf]
  %v31 = vld [vmem:[%s0 + $0x40] sm:$0xf]
  %v32 = vld [vmem:[%s0 + $0x44] sm:$0xf]
  %v33 = vld [vmem:[%s0 + $0x48] sm:$0xf]
  %v34 = vld [vmem:[%s0 + $0x4c] sm:$0xf]
  %v35 = vld [vmem:[%s0 + $0x50] sm:$0xf]
  %v36 = vld [vmem:[%s0 + $0x54] sm:$0xf]
  %v37 = vld [vmem:[%s0 + $0x58] sm:$0xf]
  %v38 = vld [vmem:[%s0 + $0x5c] sm:$0xf]
  %v39 = vld [vmem:[%s0 + $0x60] sm:$0xf]
  %v40 = vld [vmem:[%s0 + $0x64] sm:$0xf]
  %v41 = vld [vmem:[%s0 + $0x68] sm:$0xf]
  %v42 = vld [vmem:[%s0 + $0x6c] sm:$0xf]
  %v43 = vld [vmem:[%s0 + $0x70] sm:$0xf]
  %v44 = vld [vmem:[%s0 + $0x74] sm:$0xf]
  %v45 = vld [vmem:[%s0 + $0x78] sm:$0xf]
  %v46 = vld [vmem:[%s0 + $0x7c] sm:$0xf]
  %v47 = vld [vmem:[%s0 + $0x80] sm:$0xf]
  %v48 = vld [vmem:[%s0 + $0x84] sm:$0xf]
  %v49 = vld [vmem:[%s0 + $0x88] sm:$0xf]
  %v50 = vld [vmem:[%s0 + $0x8c] sm:$0xf]
  %v51 = vld [vmem:[%s0 + $0x90] sm:$0xf]
  %v52 = vld [vmem:[%s0 + $0x94] sm:$0xf]
  %v53 = vld [vmem:[%s0 + $0x98] sm:$0xf]
  %v54 = vld [vmem:[%s0 + $0x9c] sm:$0xf]
  %v55 = vld [vmem:[%s0 + $0xa0] sm:$0xf]
  %v56 = vld [vmem:[%s0 + $0xa4] sm:$0xf]
  %v57 = vld [vmem:[%s0 + $0xa8] sm:$0xf]
  %v58 = vld [vmem:[%s0 + $0xac] sm:$0xf]
  %v59 = vld [vmem:[%s0 + $0xb0] sm:$0xf]
  %v60 = vld [vmem:[%s0 + $0xb4] sm:$0xf]
  %v61 = vld [vmem:[%s0 + $0xb8] sm:$0xf]
  %v62 = vld [vmem:[%s0 + $0xbc] sm:$0xf]
  %v63 = vld [vmem:[%s0 + $0xc0] sm:$0xf]
  %v64 = vld [vmem:[%s0 + $0xc4] sm:$0xf]
  %v65 = vld [vmem:[%s0 + $0xc8] sm:$0xf]
  %v66 = vld [vmem:[%s0 + $0xcc] sm:$0xf]
  %v67 = vld [vmem:[%s0 + $0xd0] sm:$0xf]
  %v68 = vld [vmem:[%s0 + $0xd4] sm:$0xf]
  %v69 = vld [vmem:[%s0 + $0xd8] sm:$0xf]
  %v70 = vld [vmem:[%s0 + $0xdc] sm:$0xf]
  %v71 = vld [vmem:[%s0 + $0xe0] sm:$0xf]
  %v72 = vld [vmem:[%s0 + $0xe4] sm:$0xf]
  %v73 = vld [vmem:[%s0 + $0xe8] sm:$0xf]
  %v74 = vld [vmem:[%s0 + $0xec] sm:$0xf]
  %v75 = vld [vmem:[%s0 + $0xf0] sm:$0xf]
  %v76 = vld [vmem:[%s0 + $0xf4] sm:$0xf]
  %v77 = vld [vmem:[%s0 + $0xf8] sm:$0xf]
  %v78 = vld [vmem:[%s0 + $0xfc] sm:$0xf]
  %v79 = vld [vmem:[%s1] sm:$0x3]
  %v80 = vld [vmem:[%s2] sm:$0x1]
  %v82 = vlaneseq
  %v83 = vshrl.u32 %v82, 7
  %v84 = vsub.s32 0, %v83
  %v85 = vrot.slane %v80, %v84
  %v151 = vunpack.c.l.b16 %v15
  %v152 = vunpack.c.l.b16 %v16
  %v153 = vunpack.c.l.b16 %v17
  %v154 = vunpack.c.l.b16 %v18
  %v155 = vunpack.c.l.b16 %v19
  %v156 = vunpack.c.l.b16 %v20
  %v157 = vunpack.c.l.b16 %v21
  %v158 = vunpack.c.l.b16 %v22
  %v159 = vunpack.c.l.b16 %v23
  %v160 = vunpack.c.l.b16 %v24
  %v161 = vunpack.c.l.b16 %v25
  %v162 = vunpack.c.l.b16 %v26
  %v163 = vunpack.c.l.b16 %v27
  %v164 = vunpack.c.l.b16 %v28
  %v165 = vunpack.c.l.b16 %v29
  %v166 = vunpack.c.l.b16 %v30
  %v167 = vunpack.c.l.b16 %v31
  %v168 = vunpack.c.l.b16 %v32
  %v169 = vunpack.c.l.b16 %v33
  %v170 = vunpack.c.l.b16 %v34
  %v171 = vunpack.c.l.b16 %v35
  %v172 = vunpack.c.l.b16 %v36
  %v173 = vunpack.c.l.b16 %v37
  %v174 = vunpack.c.l.b16 %v38
  %v175 = vunpack.c.l.b16 %v39
  %v176 = vunpack.c.l.b16 %v40
  %v177 = vunpack.c.l.b16 %v41
  %v178 = vunpack.c.l.b16 %v42
  %v179 = vunpack.c.l.b16 %v43
  %v180 = vunpack.c.l.b16 %v44
  %v181 = vunpack.c.l.b16 %v45
  %v182 = vunpack.c.l.b16 %v46
  %v183 = vunpack.c.l.b16 %v47
  %v184 = vunpack.c.l.b16 %v48
  %v185 = vunpack.c.l.b16 %v49
  %v186 = vunpack.c.l.b16 %v50
  %v187 = vunpack.c.l.b16 %v51
  %v188 = vunpack.c.l.b16 %v52
  %v189 = vunpack.c.l.b16 %v53
  %v190 = vunpack.c.l.b16 %v54
  %v191 = vunpack.c.l.b16 %v55
  %v192 = vunpack.c.l.b16 %v56
  %v193 = vunpack.c.l.b16 %v57
  %v194 = vunpack.c.l.b16 %v58
  %v195 = vunpack.c.l.b16 %v59
  %v196 = vunpack.c.l.b16 %v60
  %v197 = vunpack.c.l.b16 %v61
  %v198 = vunpack.c.l.b16 %v62
  %v199 = vunpack.c.l.b16 %v63
  %v200 = vunpack.c.l.b16 %v64
  %v201 = vunpack.c.l.b16 %v65
  %v202 = vunpack.c.l.b16 %v66
  %v203 = vunpack.c.l.b16 %v67
  %v204 = vunpack.c.l.b16 %v68
  %v205 = vunpack.c.l.b16 %v69
  %v206 = vunpack.c.l.b16 %v70
  %v207 = vunpack.c.l.b16 %v71
  %v208 = vunpack.c.l.b16 %v72
  %v209 = vunpack.c.l.b16 %v73
  %v210 = vunpack.c.l.b16 %v74
  %v211 = vunpack.c.l.b16 %v75
  %v212 = vunpack.c.l.b16 %v76
  %v213 = vunpack.c.l.b16 %v77
  %v214 = vunpack.c.l.b16 %v78
  %v215 = vpack.c.b16 %v152, %v151
  %v216 = vpack.c.b16 %v154, %v153
  %v217 = vpack.c.b16 %v156, %v155
  %v218 = vpack.c.b16 %v158, %v157
  %v219 = vpack.c.b16 %v160, %v159
  %v220 = vpack.c.b16 %v162, %v161
  %v221 = vpack.c.b16 %v164, %v163
  %v222 = vpack.c.b16 %v166, %v165
  %v223 = vpack.c.b16 %v168, %v167
  %v224 = vpack.c.b16 %v170, %v169
  %v225 = vpack.c.b16 %v172, %v171
  %v226 = vpack.c.b16 %v174, %v173
  %v227 = vpack.c.b16 %v176, %v175
  %v228 = vpack.c.b16 %v178, %v177
  %v229 = vpack.c.b16 %v180, %v179
  %v230 = vpack.c.b16 %v182, %v181
  %v231 = vpack.c.b16 %v184, %v183
  %v232 = vpack.c.b16 %v186, %v185
  %v233 = vpack.c.b16 %v188, %v187
  %v234 = vpack.c.b16 %v190, %v189
  %v235 = vpack.c.b16 %v192, %v191
  %v236 = vpack.c.b16 %v194, %v193
  %v237 = vpack.c.b16 %v196, %v195
  %v238 = vpack.c.b16 %v198, %v197
  %v239 = vpack.c.b16 %v200, %v199
  %v240 = vpack.c.b16 %v202, %v201
  %v241 = vpack.c.b16 %v204, %v203
  %v242 = vpack.c.b16 %v206, %v205
  %v243 = vpack.c.b16 %v208, %v207
  %v244 = vpack.c.b16 %v210, %v209
  %v245 = vpack.c.b16 %v212, %v211
  %v246 = vpack.c.b16 %v214, %v213
  %vm247 = vcmask 31744
  %v249 = vsel %vm247, %v215, 0
  %v252 = vsel %vm247, %v216, 0
  %v255 = vsel %vm247, %v217, 0
  %v258 = vsel %vm247, %v218, 0
  %v261 = vsel %vm247, %v219, 0
  %v264 = vsel %vm247, %v220, 0
  %v267 = vsel %vm247, %v221, 0
  %v270 = vsel %vm247, %v222, 0
  %v273 = vsel %vm247, %v223, 0
  %v276 = vsel %vm247, %v224, 0
  %v279 = vsel %vm247, %v225, 0
  %v282 = vsel %vm247, %v226, 0
  %v285 = vsel %vm247, %v227, 0
  %v288 = vsel %vm247, %v228, 0
  %v291 = vsel %vm247, %v229, 0
  %v294 = vsel %vm247, %v230, 0
  %v297 = vsel %vm247, %v231, 0
  %v300 = vsel %vm247, %v232, 0
  %v303 = vsel %vm247, %v233, 0
  %v306 = vsel %vm247, %v234, 0
  %v309 = vsel %vm247, %v235, 0
  %v312 = vsel %vm247, %v236, 0
  %v315 = vsel %vm247, %v237, 0
  %v318 = vsel %vm247, %v238, 0
  %v321 = vsel %vm247, %v239, 0
  %v324 = vsel %vm247, %v240, 0
  %v327 = vsel %vm247, %v241, 0
  %v330 = vsel %vm247, %v242, 0
  %v333 = vsel %vm247, %v243, 0
  %v336 = vsel %vm247, %v244, 0
  %v339 = vsel %vm247, %v245, 0
  %v342 = vsel %vm247, %v246, 0
  %vm344 = vcmask 1041408
  %v346 = vsel %vm344, %v79, 0
  %348 = vmatprep.subr.bf16.mxu0 0
  %349 = vmatpush1.bf16.msra.mxu0 %v346
  %350 = vmatprep.subr.bf16.mxu0 0
  %351 = vmatpush1.bf16.msra.mxu0 0
  %352 = vmatprep.subr.bf16.mxu0 0
  %353 = vmatpush1.bf16.msra.mxu0 0
  %354 = vmatprep.subr.bf16.mxu0 0
  %355 = vmatpush1.bf16.msra.mxu0 0
  %356 = vmatprep.subr.bf16.mxu0 0
  %357 = vmatpush1.bf16.msra.mxu0 0
  %358 = vmatprep.subr.bf16.mxu0 0
  %359 = vmatpush1.bf16.msra.mxu0 0
  %360 = vmatprep.subr.bf16.mxu0 0
  %361 = vmatpush1.bf16.msra.mxu0 0
  %362 = vmatprep.subr.bf16.mxu0 0
  %363 = vmatpush1.bf16.msra.mxu0 0
  %364 = vmatprep.subr.bf16.mxu0 0
  %365 = vmatpush1.bf16.msra.mxu0 0
  %366 = vmatprep.subr.bf16.mxu0 0
  %367 = vmatpush1.bf16.msra.mxu0 0
  %368 = vmatprep.subr.bf16.mxu0 0
  %369 = vmatpush1.bf16.msra.mxu0 0
  %370 = vmatprep.subr.bf16.mxu0 0
  %371 = vmatpush1.bf16.msra.mxu0 0
  %372 = vmatprep.subr.bf16.mxu0 0
  %373 = vmatpush1.bf16.msra.mxu0 0
  %374 = vmatprep.subr.bf16.mxu0 0
  %375 = vmatpush1.bf16.msra.mxu0 0
  %376 = vmatprep.subr.bf16.mxu0 0
  %377 = vmatpush1.bf16.msra.mxu0 0
  %378 = vmatprep.subr.bf16.mxu0 0
  %379 = vmatpush1.bf16.msra.mxu0 0
  %380 = vmatprep.mubr.bf16.mxu0 0
  %381 = vmatmul.mubr.bf16.gmra.mrb[0].mxu0 %v249
  %v382 = vpop.f32.mrb[0].mxu0
  %v383 = vadd.f32 %v85, %v382
  %v384 = vpop.f32.mrb[0].mxu0
  %v385 = vpop.f32.mrb[0].mxu0
  %v386 = vadd.f32 %v85, %v385
  %v387 = vpop.f32.mrb[0].mxu0
  %388 = vmatprep.mubr.bf16.mxu0 0
  %389 = vmatmul.mubr.bf16.gmra.mrb[0].mxu0 %v252
  %v390 = vpop.f32.mrb[0].mxu0
  %v391 = vadd.f32 %v85, %v390
  %v392 = vpop.f32.mrb[0].mxu0
  %v393 = vpop.f32.mrb[0].mxu0
  %v394 = vadd.f32 %v85, %v393
  %v395 = vpop.f32.mrb[0].mxu0
  %396 = vmatprep.mubr.bf16.mxu0 0
  %397 = vmatmul.mubr.bf16.gmra.mrb[0].mxu0 %v255
  %v398 = vpop.f32.mrb[0].mxu0
  %v399 = vadd.f32 %v85, %v398
  %v400 = vpop.f32.mrb[0].mxu0
  %v401 = vpop.f32.mrb[0].mxu0
  %v402 = vadd.f32 %v85, %v401
  %v403 = vpop.f32.mrb[0].mxu0
  %404 = vmatprep.mubr.bf16.mxu0 0
  %405 = vmatmul.mubr.bf16.gmra.mrb[0].mxu0 %v258
  %v406 = vpop.f32.mrb[0].mxu0
  %v407 = vadd.f32 %v85, %v406
  %v408 = vpop.f32.mrb[0].mxu0
  %v409 = vpop.f32.mrb[0].mxu0
  %v410 = vadd.f32 %v85, %v409
  %v411 = vpop.f32.mrb[0].mxu0
  %412 = vmatprep.mubr.bf16.mxu0 0
  %413 = vmatmul.mubr.bf16.gmra.mrb[0].mxu0 %v261
  %v414 = vpop.f32.mrb[0].mxu0
  %v415 = vadd.f32 %v85, %v414
  %v416 = vpop.f32.mrb[0].mxu0
  %v417 = vpop.f32.mrb[0].mxu0
  %v418 = vadd.f32 %v85, %v417
  %v419 = vpop.f32.mrb[0].mxu0
  %420 = vmatprep.mubr.bf16.mxu0 0
  %421 = vmatmul.mubr.bf16.gmra.mrb[0].mxu0 %v264
  %v422 = vpop.f32.mrb[0].mxu0
  %v423 = vadd.f32 %v85, %v422
  %v424 = vpop.f32.mrb[0].mxu0
  %v425 = vpop.f32.mrb[0].mxu0
  %v426 = vadd.f32 %v85, %v425
  %v427 = vpop.f32.mrb[0].mxu0
  %428 = vmatprep.mubr.bf16.mxu0 0
  %429 = vmatmul.mubr.bf16.gmra.mrb[0].mxu0 %v267
  %v430 = vpop.f32.mrb[0].mxu0
  %v431 = vadd.f32 %v85, %v430
  %v432 = vpop.f32.mrb[0].mxu0
  %v433 = vpop.f32.mrb[0].mxu0
  %v434 = vadd.f32 %v85, %v433
  %v435 = vpop.f32.mrb[0].mxu0
  %436 = vmatprep.mubr.bf16.mxu0 0
  %437 = vmatmul.mubr.bf16.gmra.mrb[0].mxu0 %v270
  %v438 = vpop.f32.mrb[0].mxu0
  %v439 = vadd.f32 %v85, %v438
  %v440 = vpop.f32.mrb[0].mxu0
  %v441 = vpop.f32.mrb[0].mxu0
  %v442 = vadd.f32 %v85, %v441
  %v443 = vpop.f32.mrb[0].mxu0
  %444 = vmatprep.mubr.bf16.mxu0 0
  %445 = vmatmul.mubr.bf16.gmra.mrb[0].mxu0 %v273
  %v446 = vpop.f32.mrb[0].mxu0
  %v447 = vadd.f32 %v85, %v446
  %v448 = vpop.f32.mrb[0].mxu0
  %v449 = vpop.f32.mrb[0].mxu0
  %v450 = vadd.f32 %v85, %v449
  %v451 = vpop.f32.mrb[0].mxu0
  %452 = vmatprep.mubr.bf16.mxu0 0
  %453 = vmatmul.mubr.bf16.gmra.mrb[0].mxu0 %v276
  %v454 = vpop.f32.mrb[0].mxu0
  %v455 = vadd.f32 %v85, %v454
  %v456 = vpop.f32.mrb[0].mxu0
  %v457 = vpop.f32.mrb[0].mxu0
  %v458 = vadd.f32 %v85, %v457
  %v459 = vpop.f32.mrb[0].mxu0
  %460 = vmatprep.mubr.bf16.mxu0 0
  %461 = vmatmul.mubr.bf16.gmra.mrb[0].mxu0 %v279
  %v462 = vpop.f32.mrb[0].mxu0
  %v463 = vadd.f32 %v85, %v462
  %v464 = vpop.f32.mrb[0].mxu0
  %v465 = vpop.f32.mrb[0].mxu0
  %v466 = vadd.f32 %v85, %v465
  %v467 = vpop.f32.mrb[0].mxu0
  %468 = vmatprep.mubr.bf16.mxu0 0
  %469 = vmatmul.mubr.bf16.gmra.mrb[0].mxu0 %v282
  %v470 = vpop.f32.mrb[0].mxu0
  %v471 = vadd.f32 %v85, %v470
  %v472 = vpop.f32.mrb[0].mxu0
  %v473 = vpop.f32.mrb[0].mxu0
  %v474 = vadd.f32 %v85, %v473
  %v475 = vpop.f32.mrb[0].mxu0
  %476 = vmatprep.mubr.bf16.mxu0 0
  %477 = vmatmul.mubr.bf16.gmra.mrb[0].mxu0 %v285
  %v478 = vpop.f32.mrb[0].mxu0
  %v479 = vadd.f32 %v85, %v478
  %v480 = vpop.f32.mrb[0].mxu0
  %v481 = vpop.f32.mrb[0].mxu0
  %v482 = vadd.f32 %v85, %v481
  %v483 = vpop.f32.mrb[0].mxu0
  %484 = vmatprep.mubr.bf16.mxu0 0
  %485 = vmatmul.mubr.bf16.gmra.mrb[0].mxu0 %v288
  %v486 = vpop.f32.mrb[0].mxu0
  %v487 = vadd.f32 %v85, %v486
  %v488 = vpop.f32.mrb[0].mxu0
  %v489 = vpop.f32.mrb[0].mxu0
  %v490 = vadd.f32 %v85, %v489
  %v491 = vpop.f32.mrb[0].mxu0
  %492 = vmatprep.mubr.bf16.mxu0 0
  %493 = vmatmul.mubr.bf16.gmra.mrb[0].mxu0 %v291
  %v494 = vpop.f32.mrb[0].mxu0
  %v495 = vadd.f32 %v85, %v494
  %v496 = vpop.f32.mrb[0].mxu0
  %v497 = vpop.f32.mrb[0].mxu0
  %v498 = vadd.f32 %v85, %v497
  %v499 = vpop.f32.mrb[0].mxu0
  %500 = vmatprep.mubr.bf16.mxu0 0
  %501 = vmatmul.mubr.bf16.gmra.mrb[0].mxu0 %v294
  %v502 = vpop.f32.mrb[0].mxu0
  %v503 = vadd.f32 %v85, %v502
  %v504 = vpop.f32.mrb[0].mxu0
  %v505 = vpop.f32.mrb[0].mxu0
  %v506 = vadd.f32 %v85, %v505
  %v507 = vpop.f32.mrb[0].mxu0
  %508 = vmatprep.mubr.bf16.mxu0 0
  %509 = vmatmul.mubr.bf16.gmra.mrb[0].mxu0 %v297
  %v510 = vpop.f32.mrb[0].mxu0
  %v511 = vadd.f32 %v85, %v510
  %v512 = vpop.f32.mrb[0].mxu0
  %v513 = vpop.f32.mrb[0].mxu0
  %v514 = vadd.f32 %v85, %v513
  %v515 = vpop.f32.mrb[0].mxu0
  %516 = vmatprep.mubr.bf16.mxu0 0
  %517 = vmatmul.mubr.bf16.gmra.mrb[0].mxu0 %v300
  %v518 = vpop.f32.mrb[0].mxu0
  %v519 = vadd.f32 %v85, %v518
  %v520 = vpop.f32.mrb[0].mxu0
  %v521 = vpop.f32.mrb[0].mxu0
  %v522 = vadd.f32 %v85, %v521
  %v523 = vpop.f32.mrb[0].mxu0
  %524 = vmatprep.mubr.bf16.mxu0 0
  %525 = vmatmul.mubr.bf16.gmra.mrb[0].mxu0 %v303
  %v526 = vpop.f32.mrb[0].mxu0
  %v527 = vadd.f32 %v85, %v526
  %v528 = vpop.f32.mrb[0].mxu0
  %v529 = vpop.f32.mrb[0].mxu0
  %v530 = vadd.f32 %v85, %v529
  %v531 = vpop.f32.mrb[0].mxu0
  %532 = vmatprep.mubr.bf16.mxu0 0
  %533 = vmatmul.mubr.bf16.gmra.mrb[0].mxu0 %v306
  %v534 = vpop.f32.mrb[0].mxu0
  %v535 = vadd.f32 %v85, %v534
  %v536 = vpop.f32.mrb[0].mxu0
  %v537 = vpop.f32.mrb[0].mxu0
  %v538 = vadd.f32 %v85, %v537
  %v539 = vpop.f32.mrb[0].mxu0
  %540 = vmatprep.mubr.bf16.mxu0 0
  %541 = vmatmul.mubr.bf16.gmra.mrb[0].mxu0 %v309
  %v542 = vpop.f32.mrb[0].mxu0
  %v543 = vadd.f32 %v85, %v542
  %v544 = vpop.f32.mrb[0].mxu0
  %v545 = vpop.f32.mrb[0].mxu0
  %v546 = vadd.f32 %v85, %v545
  %v547 = vpop.f32.mrb[0].mxu0
  %548 = vmatprep.mubr.bf16.mxu0 0
  %549 = vmatmul.mubr.bf16.gmra.mrb[0].mxu0 %v312
  %v550 = vpop.f32.mrb[0].mxu0
  %v551 = vadd.f32 %v85, %v550
  %v552 = vpop.f32.mrb[0].mxu0
  %v553 = vpop.f32.mrb[0].mxu0
  %v554 = vadd.f32 %v85, %v553
  %v555 = vpop.f32.mrb[0].mxu0
  %556 = vmatprep.mubr.bf16.mxu0 0
  %557 = vmatmul.mubr.bf16.gmra.mrb[0].mxu0 %v315
  %v558 = vpop.f32.mrb[0].mxu0
  %v559 = vadd.f32 %v85, %v558
  %v560 = vpop.f32.mrb[0].mxu0
  %v561 = vpop.f32.mrb[0].mxu0
  %v562 = vadd.f32 %v85, %v561
  %v563 = vpop.f32.mrb[0].mxu0
  %564 = vmatprep.mubr.bf16.mxu0 0
  %565 = vmatmul.mubr.bf16.gmra.mrb[0].mxu0 %v318
  %v566 = vpop.f32.mrb[0].mxu0
  %v567 = vadd.f32 %v85, %v566
  %v568 = vpop.f32.mrb[0].mxu0
  %v569 = vpop.f32.mrb[0].mxu0
  %v570 = vadd.f32 %v85, %v569
  %v571 = vpop.f32.mrb[0].mxu0
  %572 = vmatprep.mubr.bf16.mxu0 0
  %573 = vmatmul.mubr.bf16.gmra.mrb[0].mxu0 %v321
  %v574 = vpop.f32.mrb[0].mxu0
  %v575 = vadd.f32 %v85, %v574
  %v576 = vpop.f32.mrb[0].mxu0
  %v577 = vpop.f32.mrb[0].mxu0
  %v578 = vadd.f32 %v85, %v577
  %v579 = vpop.f32.mrb[0].mxu0
  %580 = vmatprep.mubr.bf16.mxu0 0
  %581 = vmatmul.mubr.bf16.gmra.mrb[0].mxu0 %v324
  %v582 = vpop.f32.mrb[0].mxu0
  %v583 = vadd.f32 %v85, %v582
  %v584 = vpop.f32.mrb[0].mxu0
  %v585 = vpop.f32.mrb[0].mxu0
  %v586 = vadd.f32 %v85, %v585
  %v587 = vpop.f32.mrb[0].mxu0
  %588 = vmatprep.mubr.bf16.mxu0 0
  %589 = vmatmul.mubr.bf16.gmra.mrb[0].mxu0 %v327
  %v590 = vpop.f32.mrb[0].mxu0
  %v591 = vadd.f32 %v85, %v590
  %v592 = vpop.f32.mrb[0].mxu0
  %v593 = vpop.f32.mrb[0].mxu0
  %v594 = vadd.f32 %v85, %v593
  %v595 = vpop.f32.mrb[0].mxu0
  %596 = vmatprep.mubr.bf16.mxu0 0
  %597 = vmatmul.mubr.bf16.gmra.mrb[0].mxu0 %v330
  %v598 = vpop.f32.mrb[0].mxu0
  %v599 = vadd.f32 %v85, %v598
  %v600 = vpop.f32.mrb[0].mxu0
  %v601 = vpop.f32.mrb[0].mxu0
  %v602 = vadd.f32 %v85, %v601
  %v603 = vpop.f32.mrb[0].mxu0
  %604 = vmatprep.mubr.bf16.mxu0 0
  %605 = vmatmul.mubr.bf16.gmra.mrb[0].mxu0 %v333
  %v606 = vpop.f32.mrb[0].mxu0
  %v607 = vadd.f32 %v85, %v606
  %v608 = vpop.f32.mrb[0].mxu0
  %v609 = vpop.f32.mrb[0].mxu0
  %v610 = vadd.f32 %v85, %v609
  %v611 = vpop.f32.mrb[0].mxu0
  %612 = vmatprep.mubr.bf16.mxu0 0
  %613 = vmatmul.mubr.bf16.gmra.mrb[0].mxu0 %v336
  %v614 = vpop.f32.mrb[0].mxu0
  %v615 = vadd.f32 %v85, %v614
  %v616 = vpop.f32.mrb[0].mxu0
  %v617 = vpop.f32.mrb[0].mxu0
  %v618 = vadd.f32 %v85, %v617
  %v619 = vpop.f32.mrb[0].mxu0
  %620 = vmatprep.mubr.bf16.mxu0 0
  %621 = vmatmul.mubr.bf16.gmra.mrb[0].mxu0 %v339
  %v622 = vpop.f32.mrb[0].mxu0
  %v623 = vadd.f32 %v85, %v622
  %v624 = vpop.f32.mrb[0].mxu0
  %v625 = vpop.f32.mrb[0].mxu0
  %v626 = vadd.f32 %v85, %v625
  %v627 = vpop.f32.mrb[0].mxu0
  %628 = vmatprep.mubr.bf16.mxu0 0
  %629 = vmatmul.mubr.bf16.gmra.mrb[0].mxu0 %v342
  %v630 = vpop.f32.mrb[0].mxu0
  %v631 = vadd.f32 %v85, %v630
  %v632 = vpop.f32.mrb[0].mxu0
  %v633 = vpop.f32.mrb[0].mxu0
  %v634 = vadd.f32 %v85, %v633
  %v635 = vpop.f32.mrb[0].mxu0
  %636 = vdwg.mxu0
  %v637 = vmax.f32 %v383, 0.0
  %v638 = vmax.f32 %v386, 0.0
  %v639 = vmax.f32 %v391, 0.0
  %v640 = vmax.f32 %v394, 0.0
  %v641 = vmax.f32 %v399, 0.0
  %v642 = vmax.f32 %v402, 0.0
  %v643 = vmax.f32 %v407, 0.0
  %v644 = vmax.f32 %v410, 0.0
  %v645 = vmax.f32 %v415, 0.0
  %v646 = vmax.f32 %v418, 0.0
  %v647 = vmax.f32 %v423, 0.0
  %v648 = vmax.f32 %v426, 0.0
  %v649 = vmax.f32 %v431, 0.0
  %v650 = vmax.f32 %v434, 0.0
  %v651 = vmax.f32 %v439, 0.0
  %v652 = vmax.f32 %v442, 0.0
  %v653 = vmax.f32 %v447, 0.0
  %v654 = vmax.f32 %v450, 0.0
  %v655 = vmax.f32 %v455, 0.0
  %v656 = vmax.f32 %v458, 0.0
  %v657 = vmax.f32 %v463, 0.0
  %v658 = vmax.f32 %v466, 0.0
  %v659 = vmax.f32 %v471, 0.0
  %v660 = vmax.f32 %v474, 0.0
  %v661 = vmax.f32 %v479, 0.0
  %v662 = vmax.f32 %v482, 0.0
  %v663 = vmax.f32 %v487, 0.0
  %v664 = vmax.f32 %v490, 0.0
  %v665 = vmax.f32 %v495, 0.0
  %v666 = vmax.f32 %v498, 0.0
  %v667 = vmax.f32 %v503, 0.0
  %v668 = vmax.f32 %v506, 0.0
  %v669 = vmax.f32 %v511, 0.0
  %v670 = vmax.f32 %v514, 0.0
  %v671 = vmax.f32 %v519, 0.0
  %v672 = vmax.f32 %v522, 0.0
  %v673 = vmax.f32 %v527, 0.0
  %v674 = vmax.f32 %v530, 0.0
  %v675 = vmax.f32 %v535, 0.0
  %v676 = vmax.f32 %v538, 0.0
  %v677 = vmax.f32 %v543, 0.0
  %v678 = vmax.f32 %v546, 0.0
  %v679 = vmax.f32 %v551, 0.0
  %v680 = vmax.f32 %v554, 0.0
  %v681 = vmax.f32 %v559, 0.0
  %v682 = vmax.f32 %v562, 0.0
  %v683 = vmax.f32 %v567, 0.0
  %v684 = vmax.f32 %v570, 0.0
  %v685 = vmax.f32 %v575, 0.0
  %v686 = vmax.f32 %v578, 0.0
  %v687 = vmax.f32 %v583, 0.0
  %v688 = vmax.f32 %v586, 0.0
  %v689 = vmax.f32 %v591, 0.0
  %v690 = vmax.f32 %v594, 0.0
  %v691 = vmax.f32 %v599, 0.0
  %v692 = vmax.f32 %v602, 0.0
  %v693 = vmax.f32 %v607, 0.0
  %v694 = vmax.f32 %v610, 0.0
  %v695 = vmax.f32 %v615, 0.0
  %v696 = vmax.f32 %v618, 0.0
  %v697 = vmax.f32 %v623, 0.0
  %v698 = vmax.f32 %v626, 0.0
  %v699 = vmax.f32 %v631, 0.0
  %v700 = vmax.f32 %v634, 0.0
  %v701 = vpack.c.bf16 %v638, %v637
  %v702 = vpack.c.bf16 %v640, %v639
  %v703 = vpack.c.bf16 %v642, %v641
  %v704 = vpack.c.bf16 %v644, %v643
  %v705 = vpack.c.bf16 %v646, %v645
  %v706 = vpack.c.bf16 %v648, %v647
  %v707 = vpack.c.bf16 %v650, %v649
  %v708 = vpack.c.bf16 %v652, %v651
  %v709 = vpack.c.bf16 %v654, %v653
  %v710 = vpack.c.bf16 %v656, %v655
  %v711 = vpack.c.bf16 %v658, %v657
  %v712 = vpack.c.bf16 %v660, %v659
  %v713 = vpack.c.bf16 %v662, %v661
  %v714 = vpack.c.bf16 %v664, %v663
  %v715 = vpack.c.bf16 %v666, %v665
  %v716 = vpack.c.bf16 %v668, %v667
  %v717 = vpack.c.bf16 %v670, %v669
  %v718 = vpack.c.bf16 %v672, %v671
  %v719 = vpack.c.bf16 %v674, %v673
  %v720 = vpack.c.bf16 %v676, %v675
  %v721 = vpack.c.bf16 %v678, %v677
  %v722 = vpack.c.bf16 %v680, %v679
  %v723 = vpack.c.bf16 %v682, %v681
  %v724 = vpack.c.bf16 %v684, %v683
  %v725 = vpack.c.bf16 %v686, %v685
  %v726 = vpack.c.bf16 %v688, %v687
  %v727 = vpack.c.bf16 %v690, %v689
  %v728 = vpack.c.bf16 %v692, %v691
  %v729 = vpack.c.bf16 %v694, %v693
  %v730 = vpack.c.bf16 %v696, %v695
  %v731 = vpack.c.bf16 %v698, %v697
  %v732 = vpack.c.bf16 %v700, %v699
  %v765 = vunpack.c.l.b16 %v701
  %v766 = vunpack.c.h.b16 %v701
  %v767 = vunpack.c.l.b16 %v702
  %v768 = vunpack.c.h.b16 %v702
  %v769 = vunpack.c.l.b16 %v703
  %v770 = vunpack.c.h.b16 %v703
  %v771 = vunpack.c.l.b16 %v704
  %v772 = vunpack.c.h.b16 %v704
  %v773 = vunpack.c.l.b16 %v705
  %v774 = vunpack.c.h.b16 %v705
  %v775 = vunpack.c.l.b16 %v706
  %v776 = vunpack.c.h.b16 %v706
  %v777 = vunpack.c.l.b16 %v707
  %v778 = vunpack.c.h.b16 %v707
  %v779 = vunpack.c.l.b16 %v708
  %v780 = vunpack.c.h.b16 %v708
  %v781 = vunpack.c.l.b16 %v709
  %v782 = vunpack.c.h.b16 %v709
  %v783 = vunpack.c.l.b16 %v710
  %v784 = vunpack.c.h.b16 %v710
  %v785 = vunpack.c.l.b16 %v711
  %v786 = vunpack.c.h.b16 %v711
  %v787 = vunpack.c.l.b16 %v712
  %v788 = vunpack.c.h.b16 %v712
  %v789 = vunpack.c.l.b16 %v713
  %v790 = vunpack.c.h.b16 %v713
  %v791 = vunpack.c.l.b16 %v714
  %v792 = vunpack.c.h.b16 %v714
  %v793 = vunpack.c.l.b16 %v715
  %v794 = vunpack.c.h.b16 %v715
  %v795 = vunpack.c.l.b16 %v716
  %v796 = vunpack.c.h.b16 %v716
  %v797 = vunpack.c.l.b16 %v717
  %v798 = vunpack.c.h.b16 %v717
  %v799 = vunpack.c.l.b16 %v718
  %v800 = vunpack.c.h.b16 %v718
  %v801 = vunpack.c.l.b16 %v719
  %v802 = vunpack.c.h.b16 %v719
  %v803 = vunpack.c.l.b16 %v720
  %v804 = vunpack.c.h.b16 %v720
  %v805 = vunpack.c.l.b16 %v721
  %v806 = vunpack.c.h.b16 %v721
  %v807 = vunpack.c.l.b16 %v722
  %v808 = vunpack.c.h.b16 %v722
  %v809 = vunpack.c.l.b16 %v723
  %v810 = vunpack.c.h.b16 %v723
  %v811 = vunpack.c.l.b16 %v724
  %v812 = vunpack.c.h.b16 %v724
  %v813 = vunpack.c.l.b16 %v725
  %v814 = vunpack.c.h.b16 %v725
  %v815 = vunpack.c.l.b16 %v726
  %v816 = vunpack.c.h.b16 %v726
  %v817 = vunpack.c.l.b16 %v727
  %v818 = vunpack.c.h.b16 %v727
  %v819 = vunpack.c.l.b16 %v728
  %v820 = vunpack.c.h.b16 %v728
  %v821 = vunpack.c.l.b16 %v729
  %v822 = vunpack.c.h.b16 %v729
  %v823 = vunpack.c.l.b16 %v730
  %v824 = vunpack.c.h.b16 %v730
  %v825 = vunpack.c.l.b16 %v731
  %v826 = vunpack.c.h.b16 %v731
  %v827 = vunpack.c.l.b16 %v732
  %v828 = vunpack.c.h.b16 %v732
  %v829 = vpack.c.b16 %v765, %v765
  %v830 = vpack.c.b16 %v766, %v766
  %v831 = vpack.c.b16 %v767, %v767
  %v832 = vpack.c.b16 %v768, %v768
  %v833 = vpack.c.b16 %v769, %v769
  %v834 = vpack.c.b16 %v770, %v770
  %v835 = vpack.c.b16 %v771, %v771
  %v836 = vpack.c.b16 %v772, %v772
  %v837 = vpack.c.b16 %v773, %v773
  %v838 = vpack.c.b16 %v774, %v774
  %v839 = vpack.c.b16 %v775, %v775
  %v840 = vpack.c.b16 %v776, %v776
  %v841 = vpack.c.b16 %v777, %v777
  %v842 = vpack.c.b16 %v778, %v778
  %v843 = vpack.c.b16 %v779, %v779
  %v844 = vpack.c.b16 %v780, %v780
  %v845 = vpack.c.b16 %v781, %v781
  %v846 = vpack.c.b16 %v782, %v782
  %v847 = vpack.c.b16 %v783, %v783
  %v848 = vpack.c.b16 %v784, %v784
  %v849 = vpack.c.b16 %v785, %v785
  %v850 = vpack.c.b16 %v786, %v786
  %v851 = vpack.c.b16 %v787, %v787
  %v852 = vpack.c.b16 %v788, %v788
  %v853 = vpack.c.b16 %v789, %v789
  %v854 = vpack.c.b16 %v790, %v790
  %v855 = vpack.c.b16 %v791, %v791
  %v856 = vpack.c.b16 %v792, %v792
  %v857 = vpack.c.b16 %v793, %v793
  %v858 = vpack.c.b16 %v794, %v794
  %v859 = vpack.c.b16 %v795, %v795
  %v860 = vpack.c.b16 %v796, %v796
  %v861 = vpack.c.b16 %v797, %v797
  %v862 = vpack.c.b16 %v798, %v798
  %v863 = vpack.c.b16 %v799, %v799
  %v864 = vpack.c.b16 %v800, %v800
  %v865 = vpack.c.b16 %v801, %v801
  %v866 = vpack.c.b16 %v802, %v802
  %v867 = vpack.c.b16 %v803, %v803
  %v868 = vpack.c.b16 %v804, %v804
  %v869 = vpack.c.b16 %v805, %v805
  %v870 = vpack.c.b16 %v806, %v806
  %v871 = vpack.c.b16 %v807, %v807
  %v872 = vpack.c.b16 %v808, %v808
  %v873 = vpack.c.b16 %v809, %v809
  %v874 = vpack.c.b16 %v810, %v810
  %v875 = vpack.c.b16 %v811, %v811
  %v876 = vpack.c.b16 %v812, %v812
  %v877 = vpack.c.b16 %v813, %v813
  %v878 = vpack.c.b16 %v814, %v814
  %v879 = vpack.c.b16 %v815, %v815
  %v880 = vpack.c.b16 %v816, %v816
  %v881 = vpack.c.b16 %v817, %v817
  %v882 = vpack.c.b16 %v818, %v818
  %v883 = vpack.c.b16 %v819, %v819
  %v884 = vpack.c.b16 %v820, %v820
  %v885 = vpack.c.b16 %v821, %v821
  %v886 = vpack.c.b16 %v822, %v822
  %v887 = vpack.c.b16 %v823, %v823
  %v888 = vpack.c.b16 %v824, %v824
  %v889 = vpack.c.b16 %v825, %v825
  %v890 = vpack.c.b16 %v826, %v826
  %v891 = vpack.c.b16 %v827, %v827
  %v892 = vpack.c.b16 %v828, %v828
  %vm957 = vcmask 27648
  %958 = vst.msk [vmem:[%s3] sm:$0xf] %vm957, %v829
  %959 = vst.msk [vmem:[%s3 + $0x4] sm:$0xf] %vm957, %v830
  %960 = vst.msk [vmem:[%s3 + $0x8] sm:$0xf] %vm957, %v831
  %961 = vst.msk [vmem:[%s3 + $0xc] sm:$0xf] %vm957, %v832
  %962 = vst.msk [vmem:[%s3 + $0x10] sm:$0xf] %vm957, %v833
  %963 = vst.msk [vmem:[%s3 + $0x14] sm:$0xf] %vm957, %v834
  %964 = vst.msk [vmem:[%s3 + $0x18] sm:$0xf] %vm957, %v835
  %965 = vst.msk [vmem:[%s3 + $0x1c] sm:$0xf] %vm957, %v836
  %966 = vst.msk [vmem:[%s3 + $0x20] sm:$0xf] %vm957, %v837
  %967 = vst.msk [vmem:[%s3 + $0x24] sm:$0xf] %vm957, %v838
  %968 = vst.msk [vmem:[%s3 + $0x28] sm:$0xf] %vm957, %v839
  %969 = vst.msk [vmem:[%s3 + $0x2c] sm:$0xf] %vm957, %v840
  %970 = vst.msk [vmem:[%s3 + $0x30] sm:$0xf] %vm957, %v841
  %971 = vst.msk [vmem:[%s3 + $0x34] sm:$0xf] %vm957, %v842
  %972 = vst.msk [vmem:[%s3 + $0x38] sm:$0xf] %vm957, %v843
  %973 = vst.msk [vmem:[%s3 + $0x3c] sm:$0xf] %vm957, %v844
  %974 = vst.msk [vmem:[%s3 + $0x40] sm:$0xf] %vm957, %v845
  %975 = vst.msk [vmem:[%s3 + $0x44] sm:$0xf] %vm957, %v846
  %976 = vst.msk [vmem:[%s3 + $0x48] sm:$0xf] %vm957, %v847
  %977 = vst.msk [vmem:[%s3 + $0x4c] sm:$0xf] %vm957, %v848
  %978 = vst.msk [vmem:[%s3 + $0x50] sm:$0xf] %vm957, %v849
  %979 = vst.msk [vmem:[%s3 + $0x54] sm:$0xf] %vm957, %v850
  %980 = vst.msk [vmem:[%s3 + $0x58] sm:$0xf] %vm957, %v851
  %981 = vst.msk [vmem:[%s3 + $0x5c] sm:$0xf] %vm957, %v852
  %982 = vst.msk [vmem:[%s3 + $0x60] sm:$0xf] %vm957, %v853
  %983 = vst.msk [vmem:[%s3 + $0x64] sm:$0xf] %vm957, %v854
  %984 = vst.msk [vmem:[%s3 + $0x68] sm:$0xf] %vm957, %v855
  %985 = vst.msk [vmem:[%s3 + $0x6c] sm:$0xf] %vm957, %v856
  %986 = vst.msk [vmem:[%s3 + $0x70] sm:$0xf] %vm957, %v857
  %987 = vst.msk [vmem:[%s3 + $0x74] sm:$0xf] %vm957, %v858
  %988 = vst.msk [vmem:[%s3 + $0x78] sm:$0xf] %vm957, %v859
  %989 = vst.msk [vmem:[%s3 + $0x7c] sm:$0xf] %vm957, %v860
  %990 = vst.msk [vmem:[%s3 + $0x80] sm:$0xf] %vm957, %v861
  %991 = vst.msk [vmem:[%s3 + $0x84] sm:$0xf] %vm957, %v862
  %992 = vst.msk [vmem:[%s3 + $0x88] sm:$0xf] %vm957, %v863
  %993 = vst.msk [vmem:[%s3 + $0x8c] sm:$0xf] %vm957, %v864
  %994 = vst.msk [vmem:[%s3 + $0x90] sm:$0xf] %vm957, %v865
  %995 = vst.msk [vmem:[%s3 + $0x94] sm:$0xf] %vm957, %v866
  %996 = vst.msk [vmem:[%s3 + $0x98] sm:$0xf] %vm957, %v867
  %997 = vst.msk [vmem:[%s3 + $0x9c] sm:$0xf] %vm957, %v868
  %998 = vst.msk [vmem:[%s3 + $0xa0] sm:$0xf] %vm957, %v869
  %999 = vst.msk [vmem:[%s3 + $0xa4] sm:$0xf] %vm957, %v870
  %1000 = vst.msk [vmem:[%s3 + $0xa8] sm:$0xf] %vm957, %v871
  %1001 = vst.msk [vmem:[%s3 + $0xac] sm:$0xf] %vm957, %v872
  %1002 = vst.msk [vmem:[%s3 + $0xb0] sm:$0xf] %vm957, %v873
  %1003 = vst.msk [vmem:[%s3 + $0xb4] sm:$0xf] %vm957, %v874
  %1004 = vst.msk [vmem:[%s3 + $0xb8] sm:$0xf] %vm957, %v875
  %1005 = vst.msk [vmem:[%s3 + $0xbc] sm:$0xf] %vm957, %v876
  %1006 = vst.msk [vmem:[%s3 + $0xc0] sm:$0xf] %vm957, %v877
  %1007 = vst.msk [vmem:[%s3 + $0xc4] sm:$0xf] %vm957, %v878
  %1008 = vst.msk [vmem:[%s3 + $0xc8] sm:$0xf] %vm957, %v879
  %1009 = vst.msk [vmem:[%s3 + $0xcc] sm:$0xf] %vm957, %v880
  %1010 = vst.msk [vmem:[%s3 + $0xd0] sm:$0xf] %vm957, %v881
  %1011 = vst.msk [vmem:[%s3 + $0xd4] sm:$0xf] %vm957, %v882
  %1012 = vst.msk [vmem:[%s3 + $0xd8] sm:$0xf] %vm957, %v883
  %1013 = vst.msk [vmem:[%s3 + $0xdc] sm:$0xf] %vm957, %v884
  %1014 = vst.msk [vmem:[%s3 + $0xe0] sm:$0xf] %vm957, %v885
  %1015 = vst.msk [vmem:[%s3 + $0xe4] sm:$0xf] %vm957, %v886
  %1016 = vst.msk [vmem:[%s3 + $0xe8] sm:$0xf] %vm957, %v887
  %1017 = vst.msk [vmem:[%s3 + $0xec] sm:$0xf] %vm957, %v888
  %1018 = vst.msk [vmem:[%s3 + $0xf0] sm:$0xf] %vm957, %v889
  %1019 = vst.msk [vmem:[%s3 + $0xf4] sm:$0xf] %vm957, %v890
  %1020 = vst.msk [vmem:[%s3 + $0xf8] sm:$0xf] %vm957, %v891
  %1021 = vst.msk [vmem:[%s3 + $0xfc] sm:$0xf] %vm957, %v892
  // Predicated region
  $region14: #{bottleneck_forward.3} parent=0 // pred_check
    _
  $region15: #{bottleneck_forward.3} parent=0 // pred_check_branch
    %1023 = sbr.rel (0) target = $region17
  $region16: #{bottleneck_forward.3} parent=0 // pred_region
    _
  $region17: #{bottleneck_forward.3} parent=0 // pred_fallthru
    _
  // Predicated region
  $region18: #{bottleneck_forward.3} parent=0 // pred_check
    _
  $region19: #{bottleneck_forward.3} parent=0 // pred_check_branch
    %1025 = sbr.rel (0) target = $region21
  $region20: #{bottleneck_forward.3} parent=0 // pred_region
    _
  $region21: #{bottleneck_forward.3} parent=0 // pred_fallthru
    _

// kernel: bottleneck_forward.5
$region0: #{bottleneck_forward.5}
  #allocation0 [shape = 'u32[]', space=smem, size = 0x4, offset = 0x4, fixed_abs, tag = 'smem constant byte address 0x4 - core index']
  #allocation1 [shape = 'u32[144,128]{1,0:T(1,128)}', space=vmem, size = 0x12000, scoped, tag = 'internal scratch']
  %s0 = inlined_call_operand.vmem [shape: bf16[512,4], index: 0, kind: input, shape index: {}]
  %s1 = inlined_call_operand.vmem [shape: bf16[4,16], index: 1, kind: input, shape index: {}]
  %s2 = inlined_call_operand.vmem [shape: bf16[512,4], index: 2, kind: input, shape index: {}]
  %s3 = inlined_call_operand.vmem [shape: bf16[4,16], index: 3, kind: input, shape index: {}]
  %s4 = inlined_call_operand.vmem [shape: f32[1,16], index: 4, kind: input, shape index: {}]
  %s5 = inlined_call_operand.vmem [shape: bf16[512,16], index: 5, kind: output, shape index: {}]
  %s6 = sld [smem:[#allocation0]]
  $region30: #{bottleneck_forward.5} parent=0
    _
  %s8 = ssub.s32 1, %s6
  %s9 = scalar_select 0, %s8, %s6
  // Predicated region
  $region2: #{bottleneck_forward.5} parent=0 // pred_check
    _
  $region3: #{bottleneck_forward.5} parent=0 // pred_check_branch
    %11 = sbr.rel (0) target = $region5
  $region4: #{bottleneck_forward.5} parent=0 // pred_region
    _
  $region5: #{bottleneck_forward.5} parent=0 // pred_fallthru
    _
  // Predicated region
  $region6: #{bottleneck_forward.5} parent=0 // pred_check
    _
  $region7: #{bottleneck_forward.5} parent=0 // pred_check_branch
    %13 = sbr.rel (0) target = $region9
  $region8: #{bottleneck_forward.5} parent=0 // pred_region
    _
  $region9: #{bottleneck_forward.5} parent=0 // pred_fallthru
    _
  // Predicated region
  $region10: #{bottleneck_forward.5} parent=0 // pred_check
    _
  $region11: #{bottleneck_forward.5} parent=0 // pred_check_branch
    %15 = sbr.rel (0) target = $region13
  $region12: #{bottleneck_forward.5} parent=0 // pred_region
    _
  $region13: #{bottleneck_forward.5} parent=0 // pred_fallthru
    _
  // Predicated region
  $region14: #{bottleneck_forward.5} parent=0 // pred_check
    _
  $region15: #{bottleneck_forward.5} parent=0 // pred_check_branch
    %17 = sbr.rel (0) target = $region17
  $region16: #{bottleneck_forward.5} parent=0 // pred_region
    _
  $region17: #{bottleneck_forward.5} parent=0 // pred_fallthru
    _
  // Predicated region
  $region18: #{bottleneck_forward.5} parent=0 // pred_check
    _
  $region19: #{bottleneck_forward.5} parent=0 // pred_check_branch
    %19 = sbr.rel (0) target = $region21
  $region20: #{bottleneck_forward.5} parent=0 // pred_region
    _
  $region21: #{bottleneck_forward.5} parent=0 // pred_fallthru
    _
  %v21 = vld [vmem:[%s0] sm:$0xf]
  %v22 = vld [vmem:[%s0 + $0x4] sm:$0xf]
  %v23 = vld [vmem:[%s0 + $0x8] sm:$0xf]
  %v24 = vld [vmem:[%s0 + $0xc] sm:$0xf]
  %v25 = vld [vmem:[%s0 + $0x10] sm:$0xf]
  %v26 = vld [vmem:[%s0 + $0x14] sm:$0xf]
  %v27 = vld [vmem:[%s0 + $0x18] sm:$0xf]
  %v28 = vld [vmem:[%s0 + $0x1c] sm:$0xf]
  %v29 = vld [vmem:[%s0 + $0x20] sm:$0xf]
  %v30 = vld [vmem:[%s0 + $0x24] sm:$0xf]
  %v31 = vld [vmem:[%s0 + $0x28] sm:$0xf]
  %v32 = vld [vmem:[%s0 + $0x2c] sm:$0xf]
  %v33 = vld [vmem:[%s0 + $0x30] sm:$0xf]
  %v34 = vld [vmem:[%s0 + $0x34] sm:$0xf]
  %v35 = vld [vmem:[%s0 + $0x38] sm:$0xf]
  %v36 = vld [vmem:[%s0 + $0x3c] sm:$0xf]
  %v37 = vld [vmem:[%s0 + $0x40] sm:$0xf]
  %v38 = vld [vmem:[%s0 + $0x44] sm:$0xf]
  %v39 = vld [vmem:[%s0 + $0x48] sm:$0xf]
  %v40 = vld [vmem:[%s0 + $0x4c] sm:$0xf]
  %v41 = vld [vmem:[%s0 + $0x50] sm:$0xf]
  %v42 = vld [vmem:[%s0 + $0x54] sm:$0xf]
  %v43 = vld [vmem:[%s0 + $0x58] sm:$0xf]
  %v44 = vld [vmem:[%s0 + $0x5c] sm:$0xf]
  %v45 = vld [vmem:[%s0 + $0x60] sm:$0xf]
  %v46 = vld [vmem:[%s0 + $0x64] sm:$0xf]
  %v47 = vld [vmem:[%s0 + $0x68] sm:$0xf]
  %v48 = vld [vmem:[%s0 + $0x6c] sm:$0xf]
  %v49 = vld [vmem:[%s0 + $0x70] sm:$0xf]
  %v50 = vld [vmem:[%s0 + $0x74] sm:$0xf]
  %v51 = vld [vmem:[%s0 + $0x78] sm:$0xf]
  %v52 = vld [vmem:[%s0 + $0x7c] sm:$0xf]
  %v53 = vld [vmem:[%s0 + $0x80] sm:$0xf]
  %v54 = vld [vmem:[%s0 + $0x84] sm:$0xf]
  %v55 = vld [vmem:[%s0 + $0x88] sm:$0xf]
  %v56 = vld [vmem:[%s0 + $0x8c] sm:$0xf]
  %v57 = vld [vmem:[%s0 + $0x90] sm:$0xf]
  %v58 = vld [vmem:[%s0 + $0x94] sm:$0xf]
  %v59 = vld [vmem:[%s0 + $0x98] sm:$0xf]
  %v60 = vld [vmem:[%s0 + $0x9c] sm:$0xf]
  %v61 = vld [vmem:[%s0 + $0xa0] sm:$0xf]
  %v62 = vld [vmem:[%s0 + $0xa4] sm:$0xf]
  %v63 = vld [vmem:[%s0 + $0xa8] sm:$0xf]
  %v64 = vld [vmem:[%s0 + $0xac] sm:$0xf]
  %v65 = vld [vmem:[%s0 + $0xb0] sm:$0xf]
  %v66 = vld [vmem:[%s0 + $0xb4] sm:$0xf]
  %v67 = vld [vmem:[%s0 + $0xb8] sm:$0xf]
  %v68 = vld [vmem:[%s0 + $0xbc] sm:$0xf]
  %v69 = vld [vmem:[%s0 + $0xc0] sm:$0xf]
  %v70 = vld [vmem:[%s0 + $0xc4] sm:$0xf]
  %v71 = vld [vmem:[%s0 + $0xc8] sm:$0xf]
  %v72 = vld [vmem:[%s0 + $0xcc] sm:$0xf]
  %v73 = vld [vmem:[%s0 + $0xd0] sm:$0xf]
  %v74 = vld [vmem:[%s0 + $0xd4] sm:$0xf]
  %v75 = vld [vmem:[%s0 + $0xd8] sm:$0xf]
  %v76 = vld [vmem:[%s0 + $0xdc] sm:$0xf]
  %v77 = vld [vmem:[%s0 + $0xe0] sm:$0xf]
  %v78 = vld [vmem:[%s0 + $0xe4] sm:$0xf]
  %v79 = vld [vmem:[%s0 + $0xe8] sm:$0xf]
  %v80 = vld [vmem:[%s0 + $0xec] sm:$0xf]
  %v81 = vld [vmem:[%s0 + $0xf0] sm:$0xf]
  %v82 = vld [vmem:[%s0 + $0xf4] sm:$0xf]
  %v83 = vld [vmem:[%s0 + $0xf8] sm:$0xf]
  %v84 = vld [vmem:[%s0 + $0xfc] sm:$0xf]
  %v85 = vld [vmem:[%s1] sm:$0x3]
  %v86 = vld [vmem:[%s2] sm:$0xf]
  %v87 = vld [vmem:[%s2 + $0x4] sm:$0xf]
  %v88 = vld [vmem:[%s2 + $0x8] sm:$0xf]
  %v89 = vld [vmem:[%s2 + $0xc] sm:$0xf]
  %v90 = vld [vmem:[%s2 + $0x10] sm:$0xf]
  %v91 = vld [vmem:[%s2 + $0x14] sm:$0xf]
  %v92 = vld [vmem:[%s2 + $0x18] sm:$0xf]
  %v93 = vld [vmem:[%s2 + $0x1c] sm:$0xf]
  %v94 = vld [vmem:[%s2 + $0x20] sm:$0xf]
  %v95 = vld [vmem:[%s2 + $0x24] sm:$0xf]
  %v96 = vld [vmem:[%s2 + $0x28] sm:$0xf]
  %v97 = vld [vmem:[%s2 + $0x2c] sm:$0xf]
  %v98 = vld [vmem:[%s2 + $0x30] sm:$0xf]
  %v99 = vld [vmem:[%s2 + $0x34] sm:$0xf]
  %v100 = vld [vmem:[%s2 + $0x38] sm:$0xf]
  %v101 = vld [vmem:[%s2 + $0x3c] sm:$0xf]
  %v102 = vld [vmem:[%s2 + $0x40] sm:$0xf]
  %v103 = vld [vmem:[%s2 + $0x44] sm:$0xf]
  %v104 = vld [vmem:[%s2 + $0x48] sm:$0xf]
  %v105 = vld [vmem:[%s2 + $0x4c] sm:$0xf]
  %v106 = vld [vmem:[%s2 + $0x50] sm:$0xf]
  %v107 = vld [vmem:[%s2 + $0x54] sm:$0xf]
  %v108 = vld [vmem:[%s2 + $0x58] sm:$0xf]
  %v109 = vld [vmem:[%s2 + $0x5c] sm:$0xf]
  %v110 = vld [vmem:[%s2 + $0x60] sm:$0xf]
  %v111 = vld [vmem:[%s2 + $0x64] sm:$0xf]
  %v112 = vld [vmem:[%s2 + $0x68] sm:$0xf]
  %v113 = vld [vmem:[%s2 + $0x6c] sm:$0xf]
  %v114 = vld [vmem:[%s2 + $0x70] sm:$0xf]
  %v115 = vld [vmem:[%s2 + $0x74] sm:$0xf]
  %v116 = vld [vmem:[%s2 + $0x78] sm:$0xf]
  %v117 = vld [vmem:[%s2 + $0x7c] sm:$0xf]
  %v118 = vld [vmem:[%s2 + $0x80] sm:$0xf]
  %v119 = vld [vmem:[%s2 + $0x84] sm:$0xf]
  %v120 = vld [vmem:[%s2 + $0x88] sm:$0xf]
  %v121 = vld [vmem:[%s2 + $0x8c] sm:$0xf]
  %v122 = vld [vmem:[%s2 + $0x90] sm:$0xf]
  %v123 = vld [vmem:[%s2 + $0x94] sm:$0xf]
  %v124 = vld [vmem:[%s2 + $0x98] sm:$0xf]
  %v125 = vld [vmem:[%s2 + $0x9c] sm:$0xf]
  %v126 = vld [vmem:[%s2 + $0xa0] sm:$0xf]
  %v127 = vld [vmem:[%s2 + $0xa4] sm:$0xf]
  %v128 = vld [vmem:[%s2 + $0xa8] sm:$0xf]
  %v129 = vld [vmem:[%s2 + $0xac] sm:$0xf]
  %v130 = vld [vmem:[%s2 + $0xb0] sm:$0xf]
  %v131 = vld [vmem:[%s2 + $0xb4] sm:$0xf]
  %v132 = vld [vmem:[%s2 + $0xb8] sm:$0xf]
  %v133 = vld [vmem:[%s2 + $0xbc] sm:$0xf]
  %v134 = vld [vmem:[%s2 + $0xc0] sm:$0xf]
  %v135 = vld [vmem:[%s2 + $0xc4] sm:$0xf]
  %v136 = vld [vmem:[%s2 + $0xc8] sm:$0xf]
  %v137 = vld [vmem:[%s2 + $0xcc] sm:$0xf]
  %v138 = vld [vmem:[%s2 + $0xd0] sm:$0xf]
  %v139 = vld [vmem:[%s2 + $0xd4] sm:$0xf]
  %v140 = vld [vmem:[%s2 + $0xd8] sm:$0xf]
  %v141 = vld [vmem:[%s2 + $0xdc] sm:$0xf]
  %v142 = vld [vmem:[%s2 + $0xe0] sm:$0xf]
  %v143 = vld [vmem:[%s2 + $0xe4] sm:$0xf]
  %v144 = vld [vmem:[%s2 + $0xe8] sm:$0xf]
  %v145 = vld [vmem:[%s2 + $0xec] sm:$0xf]
  %v146 = vld [vmem:[%s2 + $0xf0] sm:$0xf]
  %v147 = vld [vmem:[%s2 + $0xf4] sm:$0xf]
  %v148 = vld [vmem:[%s2 + $0xf8] sm:$0xf]
  %v149 = vld [vmem:[%s2 + $0xfc] sm:$0xf]
  %v150 = vld [vmem:[%s3] sm:$0x3]
  %v215 = vunpack.c.l.b16 %v86
  %v216 = vunpack.c.l.b16 %v87
  %v217 = vunpack.c.l.b16 %v88
  %v218 = vunpack.c.l.b16 %v89
  %v219 = vunpack.c.l.b16 %v90
  %v220 = vunpack.c.l.b16 %v91
  %v221 = vunpack.c.l.b16 %v92
  %v222 = vunpack.c.l.b16 %v93
  %v223 = vunpack.c.l.b16 %v94
  %v224 = vunpack.c.l.b16 %v95
  %v225 = vunpack.c.l.b16 %v96
  %v226 = vunpack.c.l.b16 %v97
  %v227 = vunpack.c.l.b16 %v98
  %v228 = vunpack.c.l.b16 %v99
  %v229 = vunpack.c.l.b16 %v100
  %v230 = vunpack.c.l.b16 %v101
  %v231 = vunpack.c.l.b16 %v102
  %v232 = vunpack.c.l.b16 %v103
  %v233 = vunpack.c.l.b16 %v104
  %v234 = vunpack.c.l.b16 %v105
  %v235 = vunpack.c.l.b16 %v106
  %v236 = vunpack.c.l.b16 %v107
  %v237 = vunpack.c.l.b16 %v108
  %v238 = vunpack.c.l.b16 %v109
  %v239 = vunpack.c.l.b16 %v110
  %v240 = vunpack.c.l.b16 %v111
  %v241 = vunpack.c.l.b16 %v112
  %v242 = vunpack.c.l.b16 %v113
  %v243 = vunpack.c.l.b16 %v114
  %v244 = vunpack.c.l.b16 %v115
  %v245 = vunpack.c.l.b16 %v116
  %v246 = vunpack.c.l.b16 %v117
  %v247 = vunpack.c.l.b16 %v118
  %v248 = vunpack.c.l.b16 %v119
  %v249 = vunpack.c.l.b16 %v120
  %v250 = vunpack.c.l.b16 %v121
  %v251 = vunpack.c.l.b16 %v122
  %v252 = vunpack.c.l.b16 %v123
  %v253 = vunpack.c.l.b16 %v124
  %v254 = vunpack.c.l.b16 %v125
  %v255 = vunpack.c.l.b16 %v126
  %v256 = vunpack.c.l.b16 %v127
  %v257 = vunpack.c.l.b16 %v128
  %v258 = vunpack.c.l.b16 %v129
  %v259 = vunpack.c.l.b16 %v130
  %v260 = vunpack.c.l.b16 %v131
  %v261 = vunpack.c.l.b16 %v132
  %v262 = vunpack.c.l.b16 %v133
  %v263 = vunpack.c.l.b16 %v134
  %v264 = vunpack.c.l.b16 %v135
  %v265 = vunpack.c.l.b16 %v136
  %v266 = vunpack.c.l.b16 %v137
  %v267 = vunpack.c.l.b16 %v138
  %v268 = vunpack.c.l.b16 %v139
  %v269 = vunpack.c.l.b16 %v140
  %v270 = vunpack.c.l.b16 %v141
  %v271 = vunpack.c.l.b16 %v142
  %v272 = vunpack.c.l.b16 %v143
  %v273 = vunpack.c.l.b16 %v144
  %v274 = vunpack.c.l.b16 %v145
  %v275 = vunpack.c.l.b16 %v146
  %v276 = vunpack.c.l.b16 %v147
  %v277 = vunpack.c.l.b16 %v148
  %v278 = vunpack.c.l.b16 %v149
  %v279 = vpack.c.b16 %v216, %v215
  %v280 = vpack.c.b16 %v218, %v217
  %v281 = vpack.c.b16 %v220, %v219
  %v282 = vpack.c.b16 %v222, %v221
  %v283 = vpack.c.b16 %v224, %v223
  %v284 = vpack.c.b16 %v226, %v225
  %v285 = vpack.c.b16 %v228, %v227
  %v286 = vpack.c.b16 %v230, %v229
  %v287 = vpack.c.b16 %v232, %v231
  %v288 = vpack.c.b16 %v234, %v233
  %v289 = vpack.c.b16 %v236, %v235
  %v290 = vpack.c.b16 %v238, %v237
  %v291 = vpack.c.b16 %v240, %v239
  %v292 = vpack.c.b16 %v242, %v241
  %v293 = vpack.c.b16 %v244, %v243
  %v294 = vpack.c.b16 %v246, %v245
  %v295 = vpack.c.b16 %v248, %v247
  %v296 = vpack.c.b16 %v250, %v249
  %v297 = vpack.c.b16 %v252, %v251
  %v298 = vpack.c.b16 %v254, %v253
  %v299 = vpack.c.b16 %v256, %v255
  %v300 = vpack.c.b16 %v258, %v257
  %v301 = vpack.c.b16 %v260, %v259
  %v302 = vpack.c.b16 %v262, %v261
  %v303 = vpack.c.b16 %v264, %v263
  %v304 = vpack.c.b16 %v266, %v265
  %v305 = vpack.c.b16 %v268, %v267
  %v306 = vpack.c.b16 %v270, %v269
  %v307 = vpack.c.b16 %v272, %v271
  %v308 = vpack.c.b16 %v274, %v273
  %v309 = vpack.c.b16 %v276, %v275
  %v310 = vpack.c.b16 %v278, %v277
  %vm311 = vcmask 31744
  %v313 = vsel %vm311, %v279, 0
  %v316 = vsel %vm311, %v280, 0
  %v319 = vsel %vm311, %v281, 0
  %v322 = vsel %vm311, %v282, 0
  %v325 = vsel %vm311, %v283, 0
  %v328 = vsel %vm311, %v284, 0
  %v331 = vsel %vm311, %v285, 0
  %v334 = vsel %vm311, %v286, 0
  %v337 = vsel %vm311, %v287, 0
  %v340 = vsel %vm311, %v288, 0
  %v343 = vsel %vm311, %v289, 0
  %v346 = vsel %vm311, %v290, 0
  %v349 = vsel %vm311, %v291, 0
  %v352 = vsel %vm311, %v292, 0
  %v355 = vsel %vm311, %v293, 0
  %v358 = vsel %vm311, %v294, 0
  %v361 = vsel %vm311, %v295, 0
  %v364 = vsel %vm311, %v296, 0
  %v367 = vsel %vm311, %v297, 0
  %v370 = vsel %vm311, %v298, 0
  %v373 = vsel %vm311, %v299, 0
  %v376 = vsel %vm311, %v300, 0
  %v379 = vsel %vm311, %v301, 0
  %v382 = vsel %vm311, %v302, 0
  %v385 = vsel %vm311, %v303, 0
  %v388 = vsel %vm311, %v304, 0
  %v391 = vsel %vm311, %v305, 0
  %v394 = vsel %vm311, %v306, 0
  %v397 = vsel %vm311, %v307, 0
  %v400 = vsel %vm311, %v308, 0
  %v403 = vsel %vm311, %v309, 0
  %v406 = vsel %vm311, %v310, 0
  %vm408 = vcmask 1041408
  %v410 = vsel %vm408, %v150, 0
  %412 = vmatprep.subr.bf16.mxu0 0
  %413 = vmatpush1.bf16.msra.mxu0 %v410
  %414 = vmatprep.subr.bf16.mxu0 0
  %415 = vmatpush1.bf16.msra.mxu0 0
  %416 = vmatprep.subr.bf16.mxu0 0
  %417 = vmatpush1.bf16.msra.mxu0 0
  %418 = vmatprep.subr.bf16.mxu0 0
  %419 = vmatpush1.bf16.msra.mxu0 0
  %420 = vmatprep.subr.bf16.mxu0 0
  %421 = vmatpush1.bf16.msra.mxu0 0
  %422 = vmatprep.subr.bf16.mxu0 0
  %423 = vmatpush1.bf16.msra.mxu0 0
  %424 = vmatprep.subr.bf16.mxu0 0
  %425 = vmatpush1.bf16.msra.mxu0 0
  %426 = vmatprep.subr.bf16.mxu0 0
  %427 = vmatpush1.bf16.msra.mxu0 0
  %428 = vmatprep.subr.bf16.mxu0 0
  %429 = vmatpush1.bf16.msra.mxu0 0
  %430 = vmatprep.subr.bf16.mxu0 0
  %431 = vmatpush1.bf16.msra.mxu0 0
  %432 = vmatprep.subr.bf16.mxu0 0
  %433 = vmatpush1.bf16.msra.mxu0 0
  %434 = vmatprep.subr.bf16.mxu0 0
  %435 = vmatpush1.bf16.msra.mxu0 0
  %436 = vmatprep.subr.bf16.mxu0 0
  %437 = vmatpush1.bf16.msra.mxu0 0
  %438 = vmatprep.subr.bf16.mxu0 0
  %439 = vmatpush1.bf16.msra.mxu0 0
  %440 = vmatprep.subr.bf16.mxu0 0
  %441 = vmatpush1.bf16.msra.mxu0 0
  %442 = vmatprep.subr.bf16.mxu0 0
  %443 = vmatpush1.bf16.msra.mxu0 0
  %444 = vmatprep.mubr.bf16.mxu0 0
  %445 = vmatmul.mubr.bf16.gmra.mrb[0].mxu0 %v313
  %v446 = vpop.f32.mrb[0].mxu0
  %v447 = vadd.f32 0.0, %v446
  %v448 = vpop.f32.mrb[0].mxu0
  %v449 = vpop.f32.mrb[0].mxu0
  %v450 = vadd.f32 0.0, %v449
  %v451 = vpop.f32.mrb[0].mxu0
  %452 = vmatprep.mubr.bf16.mxu0 0
  %453 = vmatmul.mubr.bf16.gmra.mrb[0].mxu0 %v316
  %v454 = vpop.f32.mrb[0].mxu0
  %v455 = vadd.f32 0.0, %v454
  %v456 = vpop.f32.mrb[0].mxu0
  %v457 = vpop.f32.mrb[0].mxu0
  %v458 = vadd.f32 0.0, %v457
  %v459 = vpop.f32.mrb[0].mxu0
  %460 = vmatprep.mubr.bf16.mxu0 0
  %461 = vmatmul.mubr.bf16.gmra.mrb[0].mxu0 %v319
  %v462 = vpop.f32.mrb[0].mxu0
  %v463 = vadd.f32 0.0, %v462
  %v464 = vpop.f32.mrb[0].mxu0
  %v465 = vpop.f32.mrb[0].mxu0
  %v466 = vadd.f32 0.0, %v465
  %v467 = vpop.f32.mrb[0].mxu0
  %468 = vmatprep.mubr.bf16.mxu0 0
  %469 = vmatmul.mubr.bf16.gmra.mrb[0].mxu0 %v322
  %v470 = vpop.f32.mrb[0].mxu0
  %v471 = vadd.f32 0.0, %v470
  %v472 = vpop.f32.mrb[0].mxu0
  %v473 = vpop.f32.mrb[0].mxu0
  %v474 = vadd.f32 0.0, %v473
  %v475 = vpop.f32.mrb[0].mxu0
  %476 = vmatprep.mubr.bf16.mxu0 0
  %477 = vmatmul.mubr.bf16.gmra.mrb[0].mxu0 %v325
  %v478 = vpop.f32.mrb[0].mxu0
  %v479 = vadd.f32 0.0, %v478
  %v480 = vpop.f32.mrb[0].mxu0
  %v481 = vpop.f32.mrb[0].mxu0
  %v482 = vadd.f32 0.0, %v481
  %v483 = vpop.f32.mrb[0].mxu0
  %484 = vmatprep.mubr.bf16.mxu0 0
  %485 = vmatmul.mubr.bf16.gmra.mrb[0].mxu0 %v328
  %v486 = vpop.f32.mrb[0].mxu0
  %v487 = vadd.f32 0.0, %v486
  %v488 = vpop.f32.mrb[0].mxu0
  %v489 = vpop.f32.mrb[0].mxu0
  %v490 = vadd.f32 0.0, %v489
  %v491 = vpop.f32.mrb[0].mxu0
  %492 = vmatprep.mubr.bf16.mxu0 0
  %493 = vmatmul.mubr.bf16.gmra.mrb[0].mxu0 %v331
  %v494 = vpop.f32.mrb[0].mxu0
  %v495 = vadd.f32 0.0, %v494
  %v496 = vpop.f32.mrb[0].mxu0
  %v497 = vpop.f32.mrb[0].mxu0
  %v498 = vadd.f32 0.0, %v497
  %v499 = vpop.f32.mrb[0].mxu0
  %500 = vmatprep.mubr.bf16.mxu0 0
  %501 = vmatmul.mubr.bf16.gmra.mrb[0].mxu0 %v334
  %v502 = vpop.f32.mrb[0].mxu0
  %v503 = vadd.f32 0.0, %v502
  %v504 = vpop.f32.mrb[0].mxu0
  %v505 = vpop.f32.mrb[0].mxu0
  %v506 = vadd.f32 0.0, %v505
  %v507 = vpop.f32.mrb[0].mxu0
  %508 = vmatprep.mubr.bf16.mxu0 0
  %509 = vmatmul.mubr.bf16.gmra.mrb[0].mxu0 %v337
  %v510 = vpop.f32.mrb[0].mxu0
  %v511 = vadd.f32 0.0, %v510
  %v512 = vpop.f32.mrb[0].mxu0
  %v513 = vpop.f32.mrb[0].mxu0
  %v514 = vadd.f32 0.0, %v513
  %v515 = vpop.f32.mrb[0].mxu0
  %516 = vmatprep.mubr.bf16.mxu0 0
  %517 = vmatmul.mubr.bf16.gmra.mrb[0].mxu0 %v340
  %v518 = vpop.f32.mrb[0].mxu0
  %v519 = vadd.f32 0.0, %v518
  %v520 = vpop.f32.mrb[0].mxu0
  %v521 = vpop.f32.mrb[0].mxu0
  %v522 = vadd.f32 0.0, %v521
  %v523 = vpop.f32.mrb[0].mxu0
  %524 = vmatprep.mubr.bf16.mxu0 0
  %525 = vmatmul.mubr.bf16.gmra.mrb[0].mxu0 %v343
  %v526 = vpop.f32.mrb[0].mxu0
  %v527 = vadd.f32 0.0, %v526
  %v528 = vpop.f32.mrb[0].mxu0
  %v529 = vpop.f32.mrb[0].mxu0
  %v530 = vadd.f32 0.0, %v529
  %v531 = vpop.f32.mrb[0].mxu0
  %532 = vmatprep.mubr.bf16.mxu0 0
  %533 = vmatmul.mubr.bf16.gmra.mrb[0].mxu0 %v346
  %v534 = vpop.f32.mrb[0].mxu0
  %v535 = vadd.f32 0.0, %v534
  %v536 = vpop.f32.mrb[0].mxu0
  %v537 = vpop.f32.mrb[0].mxu0
  %v538 = vadd.f32 0.0, %v537
  %v539 = vpop.f32.mrb[0].mxu0
  %540 = vmatprep.mubr.bf16.mxu0 0
  %541 = vmatmul.mubr.bf16.gmra.mrb[0].mxu0 %v349
  %v542 = vpop.f32.mrb[0].mxu0
  %v543 = vadd.f32 0.0, %v542
  %v544 = vpop.f32.mrb[0].mxu0
  %v545 = vpop.f32.mrb[0].mxu0
  %v546 = vadd.f32 0.0, %v545
  %v547 = vpop.f32.mrb[0].mxu0
  %548 = vmatprep.mubr.bf16.mxu0 0
  %549 = vmatmul.mubr.bf16.gmra.mrb[0].mxu0 %v352
  %v550 = vpop.f32.mrb[0].mxu0
  %v551 = vadd.f32 0.0, %v550
  %v552 = vpop.f32.mrb[0].mxu0
  %v553 = vpop.f32.mrb[0].mxu0
  %v554 = vadd.f32 0.0, %v553
  %v555 = vpop.f32.mrb[0].mxu0
  %556 = vmatprep.mubr.bf16.mxu0 0
  %557 = vmatmul.mubr.bf16.gmra.mrb[0].mxu0 %v355
  %v558 = vpop.f32.mrb[0].mxu0
  %v559 = vadd.f32 0.0, %v558
  %v560 = vpop.f32.mrb[0].mxu0
  %v561 = vpop.f32.mrb[0].mxu0
  %v562 = vadd.f32 0.0, %v561
  %v563 = vpop.f32.mrb[0].mxu0
  %564 = vmatprep.mubr.bf16.mxu0 0
  %565 = vmatmul.mubr.bf16.gmra.mrb[0].mxu0 %v358
  %v566 = vpop.f32.mrb[0].mxu0
  %v567 = vadd.f32 0.0, %v566
  %v568 = vpop.f32.mrb[0].mxu0
  %v569 = vpop.f32.mrb[0].mxu0
  %v570 = vadd.f32 0.0, %v569
  %v571 = vpop.f32.mrb[0].mxu0
  %572 = vmatprep.mubr.bf16.mxu0 0
  %573 = vmatmul.mubr.bf16.gmra.mrb[0].mxu0 %v361
  %v574 = vpop.f32.mrb[0].mxu0
  %v575 = vadd.f32 0.0, %v574
  %v576 = vpop.f32.mrb[0].mxu0
  %v577 = vpop.f32.mrb[0].mxu0
  %v578 = vadd.f32 0.0, %v577
  %v579 = vpop.f32.mrb[0].mxu0
  %580 = vmatprep.mubr.bf16.mxu0 0
  %581 = vmatmul.mubr.bf16.gmra.mrb[0].mxu0 %v364
  %v582 = vpop.f32.mrb[0].mxu0
  %v583 = vadd.f32 0.0, %v582
  %v584 = vpop.f32.mrb[0].mxu0
  %v585 = vpop.f32.mrb[0].mxu0
  %v586 = vadd.f32 0.0, %v585
  %v587 = vpop.f32.mrb[0].mxu0
  %588 = vmatprep.mubr.bf16.mxu0 0
  %589 = vmatmul.mubr.bf16.gmra.mrb[0].mxu0 %v367
  %v590 = vpop.f32.mrb[0].mxu0
  %v591 = vadd.f32 0.0, %v590
  %v592 = vpop.f32.mrb[0].mxu0
  %v593 = vpop.f32.mrb[0].mxu0
  %v594 = vadd.f32 0.0, %v593
  %v595 = vpop.f32.mrb[0].mxu0
  %596 = vmatprep.mubr.bf16.mxu0 0
  %597 = vmatmul.mubr.bf16.gmra.mrb[0].mxu0 %v370
  %v598 = vpop.f32.mrb[0].mxu0
  %v599 = vadd.f32 0.0, %v598
  %v600 = vpop.f32.mrb[0].mxu0
  %v601 = vpop.f32.mrb[0].mxu0
  %v602 = vadd.f32 0.0, %v601
  %v603 = vpop.f32.mrb[0].mxu0
  %604 = vmatprep.mubr.bf16.mxu0 0
  %605 = vmatmul.mubr.bf16.gmra.mrb[0].mxu0 %v373
  %v606 = vpop.f32.mrb[0].mxu0
  %v607 = vadd.f32 0.0, %v606
  %v608 = vpop.f32.mrb[0].mxu0
  %v609 = vpop.f32.mrb[0].mxu0
  %v610 = vadd.f32 0.0, %v609
  %v611 = vpop.f32.mrb[0].mxu0
  %612 = vmatprep.mubr.bf16.mxu0 0
  %613 = vmatmul.mubr.bf16.gmra.mrb[0].mxu0 %v376
  %v614 = vpop.f32.mrb[0].mxu0
  %v615 = vadd.f32 0.0, %v614
  %v616 = vpop.f32.mrb[0].mxu0
  %v617 = vpop.f32.mrb[0].mxu0
  %v618 = vadd.f32 0.0, %v617
  %v619 = vpop.f32.mrb[0].mxu0
  %620 = vmatprep.mubr.bf16.mxu0 0
  %621 = vmatmul.mubr.bf16.gmra.mrb[0].mxu0 %v379
  %v622 = vpop.f32.mrb[0].mxu0
  %v623 = vadd.f32 0.0, %v622
  %v624 = vpop.f32.mrb[0].mxu0
  %v625 = vpop.f32.mrb[0].mxu0
  %v626 = vadd.f32 0.0, %v625
  %v627 = vpop.f32.mrb[0].mxu0
  %628 = vmatprep.mubr.bf16.mxu0 0
  %629 = vmatmul.mubr.bf16.gmra.mrb[0].mxu0 %v382
  %v630 = vpop.f32.mrb[0].mxu0
  %v631 = vadd.f32 0.0, %v630
  %v632 = vpop.f32.mrb[0].mxu0
  %v633 = vpop.f32.mrb[0].mxu0
  %v634 = vadd.f32 0.0, %v633
  %v635 = vpop.f32.mrb[0].mxu0
  %636 = vmatprep.mubr.bf16.mxu0 0
  %637 = vmatmul.mubr.bf16.gmra.mrb[0].mxu0 %v385
  %v638 = vpop.f32.mrb[0].mxu0
  %v639 = vadd.f32 0.0, %v638
  %v640 = vpop.f32.mrb[0].mxu0
  %v641 = vpop.f32.mrb[0].mxu0
  %v642 = vadd.f32 0.0, %v641
  %v643 = vpop.f32.mrb[0].mxu0
  %644 = vmatprep.mubr.bf16.mxu0 0
  %645 = vmatmul.mubr.bf16.gmra.mrb[0].mxu0 %v388
  %v646 = vpop.f32.mrb[0].mxu0
  %v647 = vadd.f32 0.0, %v646
  %v648 = vpop.f32.mrb[0].mxu0
  %v649 = vpop.f32.mrb[0].mxu0
  %v650 = vadd.f32 0.0, %v649
  %v651 = vpop.f32.mrb[0].mxu0
  %652 = vmatprep.mubr.bf16.mxu0 0
  %653 = vmatmul.mubr.bf16.gmra.mrb[0].mxu0 %v391
  %v654 = vpop.f32.mrb[0].mxu0
  %v655 = vadd.f32 0.0, %v654
  %v656 = vpop.f32.mrb[0].mxu0
  %v657 = vpop.f32.mrb[0].mxu0
  %v658 = vadd.f32 0.0, %v657
  %v659 = vpop.f32.mrb[0].mxu0
  %660 = vmatprep.mubr.bf16.mxu0 0
  %661 = vmatmul.mubr.bf16.gmra.mrb[0].mxu0 %v394
  %v662 = vpop.f32.mrb[0].mxu0
  %v663 = vadd.f32 0.0, %v662
  %v664 = vpop.f32.mrb[0].mxu0
  %v665 = vpop.f32.mrb[0].mxu0
  %v666 = vadd.f32 0.0, %v665
  %v667 = vpop.f32.mrb[0].mxu0
  %668 = vmatprep.mubr.bf16.mxu0 0
  %669 = vmatmul.mubr.bf16.gmra.mrb[0].mxu0 %v397
  %v670 = vpop.f32.mrb[0].mxu0
  %v671 = vadd.f32 0.0, %v670
  %v672 = vpop.f32.mrb[0].mxu0
  %v673 = vpop.f32.mrb[0].mxu0
  %v674 = vadd.f32 0.0, %v673
  %v675 = vpop.f32.mrb[0].mxu0
  %676 = vmatprep.mubr.bf16.mxu0 0
  %677 = vmatmul.mubr.bf16.gmra.mrb[0].mxu0 %v400
  %v678 = vpop.f32.mrb[0].mxu0
  %v679 = vadd.f32 0.0, %v678
  %v680 = vpop.f32.mrb[0].mxu0
  %v681 = vpop.f32.mrb[0].mxu0
  %v682 = vadd.f32 0.0, %v681
  %v683 = vpop.f32.mrb[0].mxu0
  %684 = vmatprep.mubr.bf16.mxu0 0
  %685 = vmatmul.mubr.bf16.gmra.mrb[0].mxu0 %v403
  %v686 = vpop.f32.mrb[0].mxu0
  %v687 = vadd.f32 0.0, %v686
  %v688 = vpop.f32.mrb[0].mxu0
  %v689 = vpop.f32.mrb[0].mxu0
  %v690 = vadd.f32 0.0, %v689
  %v691 = vpop.f32.mrb[0].mxu0
  %692 = vmatprep.mubr.bf16.mxu0 0
  %693 = vmatmul.mubr.bf16.gmra.mrb[0].mxu0 %v406
  %v694 = vpop.f32.mrb[0].mxu0
  %v695 = vadd.f32 0.0, %v694
  %v696 = vpop.f32.mrb[0].mxu0
  %v697 = vpop.f32.mrb[0].mxu0
  %v698 = vadd.f32 0.0, %v697
  %v699 = vpop.f32.mrb[0].mxu0
  %700 = vdwg.mxu0
  %v765 = vunpack.c.l.b16 %v21
  %v766 = vunpack.c.l.b16 %v22
  %v767 = vunpack.c.l.b16 %v23
  %v768 = vunpack.c.l.b16 %v24
  %v769 = vunpack.c.l.b16 %v25
  %v770 = vunpack.c.l.b16 %v26
  %v771 = vunpack.c.l.b16 %v27
  %v772 = vunpack.c.l.b16 %v28
  %v773 = vunpack.c.l.b16 %v29
  %v774 = vunpack.c.l.b16 %v30
  %v775 = vunpack.c.l.b16 %v31
  %v776 = vunpack.c.l.b16 %v32
  %v777 = vunpack.c.l.b16 %v33
  %v778 = vunpack.c.l.b16 %v34
  %v779 = vunpack.c.l.b16 %v35
  %v780 = vunpack.c.l.b16 %v36
  %v781 = vunpack.c.l.b16 %v37
  %v782 = vunpack.c.l.b16 %v38
  %v783 = vunpack.c.l.b16 %v39
  %v784 = vunpack.c.l.b16 %v40
  %v785 = vunpack.c.l.b16 %v41
  %v786 = vunpack.c.l.b16 %v42
  %v787 = vunpack.c.l.b16 %v43
  %v788 = vunpack.c.l.b16 %v44
  %v789 = vunpack.c.l.b16 %v45
  %v790 = vunpack.c.l.b16 %v46
  %v791 = vunpack.c.l.b16 %v47
  %v792 = vunpack.c.l.b16 %v48
  %v793 = vunpack.c.l.b16 %v49
  %v794 = vunpack.c.l.b16 %v50
  %v795 = vunpack.c.l.b16 %v51
  %v796 = vunpack.c.l.b16 %v52
  %v797 = vunpack.c.l.b16 %v53
  %v798 = vunpack.c.l.b16 %v54
  %v799 = vunpack.c.l.b16 %v55
  %v800 = vunpack.c.l.b16 %v56
  %v801 = vunpack.c.l.b16 %v57
  %v802 = vunpack.c.l.b16 %v58
  %v803 = vunpack.c.l.b16 %v59
  %v804 = vunpack.c.l.b16 %v60
  %v805 = vunpack.c.l.b16 %v61
  %v806 = vunpack.c.l.b16 %v62
  %v807 = vunpack.c.l.b16 %v63
  %v808 = vunpack.c.l.b16 %v64
  %v809 = vunpack.c.l.b16 %v65
  %v810 = vunpack.c.l.b16 %v66
  %v811 = vunpack.c.l.b16 %v67
  %v812 = vunpack.c.l.b16 %v68
  %v813 = vunpack.c.l.b16 %v69
  %v814 = vunpack.c.l.b16 %v70
  %v815 = vunpack.c.l.b16 %v71
  %v816 = vunpack.c.l.b16 %v72
  %v817 = vunpack.c.l.b16 %v73
  %v818 = vunpack.c.l.b16 %v74
  %v819 = vunpack.c.l.b16 %v75
  %v820 = vunpack.c.l.b16 %v76
  %v821 = vunpack.c.l.b16 %v77
  %v822 = vunpack.c.l.b16 %v78
  %v823 = vunpack.c.l.b16 %v79
  %v824 = vunpack.c.l.b16 %v80
  %v825 = vunpack.c.l.b16 %v81
  %v826 = vunpack.c.l.b16 %v82
  %v827 = vunpack.c.l.b16 %v83
  %v828 = vunpack.c.l.b16 %v84
  %v829 = vpack.c.b16 %v766, %v765
  %v830 = vpack.c.b16 %v768, %v767
  %v831 = vpack.c.b16 %v770, %v769
  %v832 = vpack.c.b16 %v772, %v771
  %v833 = vpack.c.b16 %v774, %v773
  %v834 = vpack.c.b16 %v776, %v775
  %v835 = vpack.c.b16 %v778, %v777
  %v836 = vpack.c.b16 %v780, %v779
  %v837 = vpack.c.b16 %v782, %v781
  %v838 = vpack.c.b16 %v784, %v783
  %v839 = vpack.c.b16 %v786, %v785
  %v840 = vpack.c.b16 %v788, %v787
  %v841 = vpack.c.b16 %v790, %v789
  %v842 = vpack.c.b16 %v792, %v791
  %v843 = vpack.c.b16 %v794, %v793
  %v844 = vpack.c.b16 %v796, %v795
  %v845 = vpack.c.b16 %v798, %v797
  %v846 = vpack.c.b16 %v800, %v799
  %v847 = vpack.c.b16 %v802, %v801
  %v848 = vpack.c.b16 %v804, %v803
  %v849 = vpack.c.b16 %v806, %v805
  %v850 = vpack.c.b16 %v808, %v807
  %v851 = vpack.c.b16 %v810, %v809
  %v852 = vpack.c.b16 %v812, %v811
  %v853 = vpack.c.b16 %v814, %v813
  %v854 = vpack.c.b16 %v816, %v815
  %v855 = vpack.c.b16 %v818, %v817
  %v856 = vpack.c.b16 %v820, %v819
  %v857 = vpack.c.b16 %v822, %v821
  %v858 = vpack.c.b16 %v824, %v823
  %v859 = vpack.c.b16 %v826, %v825
  %v860 = vpack.c.b16 %v828, %v827
  %v862 = vsel %vm311, %v829, 0
  %v865 = vsel %vm311, %v830, 0
  %v868 = vsel %vm311, %v831, 0
  %v871 = vsel %vm311, %v832, 0
  %v874 = vsel %vm311, %v833, 0
  %v877 = vsel %vm311, %v834, 0
  %v880 = vsel %vm311, %v835, 0
  %v883 = vsel %vm311, %v836, 0
  %v886 = vsel %vm311, %v837, 0
  %v889 = vsel %vm311, %v838, 0
  %v892 = vsel %vm311, %v839, 0
  %v895 = vsel %vm311, %v840, 0
  %v898 = vsel %vm311, %v841, 0
  %v901 = vsel %vm311, %v842, 0
  %v904 = vsel %vm311, %v843, 0
  %v907 = vsel %vm311, %v844, 0
  %v910 = vsel %vm311, %v845, 0
  %v913 = vsel %vm311, %v846, 0
  %v916 = vsel %vm311, %v847, 0
  %v919 = vsel %vm311, %v848, 0
  %v922 = vsel %vm311, %v849, 0
  %v925 = vsel %vm311, %v850, 0
  %v928 = vsel %vm311, %v851, 0
  %v931 = vsel %vm311, %v852, 0
  %v934 = vsel %vm311, %v853, 0
  %v937 = vsel %vm311, %v854, 0
  %v940 = vsel %vm311, %v855, 0
  %v943 = vsel %vm311, %v856, 0
  %v946 = vsel %vm311, %v857, 0
  %v949 = vsel %vm311, %v858, 0
  %v952 = vsel %vm311, %v859, 0
  %v955 = vsel %vm311, %v860, 0
  %v958 = vsel %vm408, %v85, 0
  %960 = vmatprep.subr.bf16.mxu0 0
  %961 = vmatpush1.bf16.msra.mxu0 %v958
  %962 = vmatprep.subr.bf16.mxu0 0
  %963 = vmatpush1.bf16.msra.mxu0 0
  %964 = vmatprep.subr.bf16.mxu0 0
  %965 = vmatpush1.bf16.msra.mxu0 0
  %966 = vmatprep.subr.bf16.mxu0 0
  %967 = vmatpush1.bf16.msra.mxu0 0
  %968 = vmatprep.subr.bf16.mxu0 0
  %969 = vmatpush1.bf16.msra.mxu0 0
  %970 = vmatprep.subr.bf16.mxu0 0
  %971 = vmatpush1.bf16.msra.mxu0 0
  %972 = vmatprep.subr.bf16.mxu0 0
  %973 = vmatpush1.bf16.msra.mxu0 0
  %974 = vmatprep.subr.bf16.mxu0 0
  %975 = vmatpush1.bf16.msra.mxu0 0
  %976 = vmatprep.subr.bf16.mxu0 0
  %977 = vmatpush1.bf16.msra.mxu0 0
  %978 = vmatprep.subr.bf16.mxu0 0
  %979 = vmatpush1.bf16.msra.mxu0 0
  %980 = vmatprep.subr.bf16.mxu0 0
  %981 = vmatpush1.bf16.msra.mxu0 0
  %982 = vmatprep.subr.bf16.mxu0 0
  %983 = vmatpush1.bf16.msra.mxu0 0
  %984 = vmatprep.subr.bf16.mxu0 0
  %985 = vmatpush1.bf16.msra.mxu0 0
  %986 = vmatprep.subr.bf16.mxu0 0
  %987 = vmatpush1.bf16.msra.mxu0 0
  %988 = vmatprep.subr.bf16.mxu0 0
  %989 = vmatpush1.bf16.msra.mxu0 0
  %990 = vmatprep.subr.bf16.mxu0 0
  %991 = vmatpush1.bf16.msra.mxu0 0
  %992 = vmatprep.mubr.bf16.mxu0 0
  %993 = vmatmul.mubr.bf16.gmra.mrb[0].mxu0 %v862
  %v994 = vpop.f32.mrb[0].mxu0
  %v995 = vadd.f32 %v447, %v994
  %v996 = vpop.f32.mrb[0].mxu0
  %v997 = vpop.f32.mrb[0].mxu0
  %v998 = vadd.f32 %v450, %v997
  %v999 = vpop.f32.mrb[0].mxu0
  %1000 = vmatprep.mubr.bf16.mxu0 0
  %1001 = vmatmul.mubr.bf16.gmra.mrb[0].mxu0 %v865
  %v1002 = vpop.f32.mrb[0].mxu0
  %v1003 = vadd.f32 %v455, %v1002
  %v1004 = vpop.f32.mrb[0].mxu0
  %v1005 = vpop.f32.mrb[0].mxu0
  %v1006 = vadd.f32 %v458, %v1005
  %v1007 = vpop.f32.mrb[0].mxu0
  %1008 = vmatprep.mubr.bf16.mxu0 0
  %1009 = vmatmul.mubr.bf16.gmra.mrb[0].mxu0 %v868
  %v1010 = vpop.f32.mrb[0].mxu0
  %v1011 = vadd.f32 %v463, %v1010
  %v1012 = vpop.f32.mrb[0].mxu0
  %v1013 = vpop.f32.mrb[0].mxu0
  %v1014 = vadd.f32 %v466, %v1013
  %v1015 = vpop.f32.mrb[0].mxu0
  %1016 = vmatprep.mubr.bf16.mxu0 0
  %1017 = vmatmul.mubr.bf16.gmra.mrb[0].mxu0 %v871
  %v1018 = vpop.f32.mrb[0].mxu0
  %v1019 = vadd.f32 %v471, %v1018
  %v1020 = vpop.f32.mrb[0].mxu0
  %v1021 = vpop.f32.mrb[0].mxu0
  %v1022 = vadd.f32 %v474, %v1021
  %v1023 = vpop.f32.mrb[0].mxu0
  %1024 = vmatprep.mubr.bf16.mxu0 0
  %1025 = vmatmul.mubr.bf16.gmra.mrb[0].mxu0 %v874
  %v1026 = vpop.f32.mrb[0].mxu0
  %v1027 = vadd.f32 %v479, %v1026
  %v1028 = vpop.f32.mrb[0].mxu0
  %v1029 = vpop.f32.mrb[0].mxu0
  %v1030 = vadd.f32 %v482, %v1029
  %v1031 = vpop.f32.mrb[0].mxu0
  %1032 = vmatprep.mubr.bf16.mxu0 0
  %1033 = vmatmul.mubr.bf16.gmra.mrb[0].mxu0 %v877
  %v1034 = vpop.f32.mrb[0].mxu0
  %v1035 = vadd.f32 %v487, %v1034
  %v1036 = vpop.f32.mrb[0].mxu0
  %v1037 = vpop.f32.mrb[0].mxu0
  %v1038 = vadd.f32 %v490, %v1037
  %v1039 = vpop.f32.mrb[0].mxu0
  %1040 = vmatprep.mubr.bf16.mxu0 0
  %1041 = vmatmul.mubr.bf16.gmra.mrb[0].mxu0 %v880
  %v1042 = vpop.f32.mrb[0].mxu0
  %v1043 = vadd.f32 %v495, %v1042
  %v1044 = vpop.f32.mrb[0].mxu0
  %v1045 = vpop.f32.mrb[0].mxu0
  %v1046 = vadd.f32 %v498, %v1045
  %v1047 = vpop.f32.mrb[0].mxu0
  %1048 = vmatprep.mubr.bf16.mxu0 0
  %1049 = vmatmul.mubr.bf16.gmra.mrb[0].mxu0 %v883
  %v1050 = vpop.f32.mrb[0].mxu0
  %v1051 = vadd.f32 %v503, %v1050
  %v1052 = vpop.f32.mrb[0].mxu0
  %v1053 = vpop.f32.mrb[0].mxu0
  %v1054 = vadd.f32 %v506, %v1053
  %v1055 = vpop.f32.mrb[0].mxu0
  %1056 = vmatprep.mubr.bf16.mxu0 0
  %1057 = vmatmul.mubr.bf16.gmra.mrb[0].mxu0 %v886
  %v1058 = vpop.f32.mrb[0].mxu0
  %v1059 = vadd.f32 %v511, %v1058
  %v1060 = vpop.f32.mrb[0].mxu0
  %v1061 = vpop.f32.mrb[0].mxu0
  %v1062 = vadd.f32 %v514, %v1061
  %v1063 = vpop.f32.mrb[0].mxu0
  %1064 = vmatprep.mubr.bf16.mxu0 0
  %1065 = vmatmul.mubr.bf16.gmra.mrb[0].mxu0 %v889
  %v1066 = vpop.f32.mrb[0].mxu0
  %v1067 = vadd.f32 %v519, %v1066
  %v1068 = vpop.f32.mrb[0].mxu0
  %v1069 = vpop.f32.mrb[0].mxu0
  %v1070 = vadd.f32 %v522, %v1069
  %v1071 = vpop.f32.mrb[0].mxu0
  %1072 = vmatprep.mubr.bf16.mxu0 0
  %1073 = vmatmul.mubr.bf16.gmra.mrb[0].mxu0 %v892
  %v1074 = vpop.f32.mrb[0].mxu0
  %v1075 = vadd.f32 %v527, %v1074
  %v1076 = vpop.f32.mrb[0].mxu0
  %v1077 = vpop.f32.mrb[0].mxu0
  %v1078 = vadd.f32 %v530, %v1077
  %v1079 = vpop.f32.mrb[0].mxu0
  %1080 = vmatprep.mubr.bf16.mxu0 0
  %1081 = vmatmul.mubr.bf16.gmra.mrb[0].mxu0 %v895
  %v1082 = vpop.f32.mrb[0].mxu0
  %v1083 = vadd.f32 %v535, %v1082
  %v1084 = vpop.f32.mrb[0].mxu0
  %v1085 = vpop.f32.mrb[0].mxu0
  %v1086 = vadd.f32 %v538, %v1085
  %v1087 = vpop.f32.mrb[0].mxu0
  %1088 = vmatprep.mubr.bf16.mxu0 0
  %1089 = vmatmul.mubr.bf16.gmra.mrb[0].mxu0 %v898
  %v1090 = vpop.f32.mrb[0].mxu0
  %v1091 = vadd.f32 %v543, %v1090
  %v1092 = vpop.f32.mrb[0].mxu0
  %v1093 = vpop.f32.mrb[0].mxu0
  %v1094 = vadd.f32 %v546, %v1093
  %v1095 = vpop.f32.mrb[0].mxu0
  %1096 = vmatprep.mubr.bf16.mxu0 0
  %1097 = vmatmul.mubr.bf16.gmra.mrb[0].mxu0 %v901
  %v1098 = vpop.f32.mrb[0].mxu0
  %v1099 = vadd.f32 %v551, %v1098
  %v1100 = vpop.f32.mrb[0].mxu0
  %v1101 = vpop.f32.mrb[0].mxu0
  %v1102 = vadd.f32 %v554, %v1101
  %v1103 = vpop.f32.mrb[0].mxu0
  %1104 = vmatprep.mubr.bf16.mxu0 0
  %1105 = vmatmul.mubr.bf16.gmra.mrb[0].mxu0 %v904
  %v1106 = vpop.f32.mrb[0].mxu0
  %v1107 = vadd.f32 %v559, %v1106
  %v1108 = vpop.f32.mrb[0].mxu0
  %v1109 = vpop.f32.mrb[0].mxu0
  %v1110 = vadd.f32 %v562, %v1109
  %v1111 = vpop.f32.mrb[0].mxu0
  %1112 = vmatprep.mubr.bf16.mxu0 0
  %1113 = vmatmul.mubr.bf16.gmra.mrb[0].mxu0 %v907
  %v1114 = vpop.f32.mrb[0].mxu0
  %v1115 = vadd.f32 %v567, %v1114
  %v1116 = vpop.f32.mrb[0].mxu0
  %v1117 = vpop.f32.mrb[0].mxu0
  %v1118 = vadd.f32 %v570, %v1117
  %v1119 = vpop.f32.mrb[0].mxu0
  %1120 = vmatprep.mubr.bf16.mxu0 0
  %1121 = vmatmul.mubr.bf16.gmra.mrb[0].mxu0 %v910
  %v1122 = vpop.f32.mrb[0].mxu0
  %v1123 = vadd.f32 %v575, %v1122
  %v1124 = vpop.f32.mrb[0].mxu0
  %v1125 = vpop.f32.mrb[0].mxu0
  %v1126 = vadd.f32 %v578, %v1125
  %v1127 = vpop.f32.mrb[0].mxu0
  %1128 = vmatprep.mubr.bf16.mxu0 0
  %1129 = vmatmul.mubr.bf16.gmra.mrb[0].mxu0 %v913
  %v1130 = vpop.f32.mrb[0].mxu0
  %v1131 = vadd.f32 %v583, %v1130
  %v1132 = vpop.f32.mrb[0].mxu0
  %v1133 = vpop.f32.mrb[0].mxu0
  %v1134 = vadd.f32 %v586, %v1133
  %v1135 = vpop.f32.mrb[0].mxu0
  %1136 = vmatprep.mubr.bf16.mxu0 0
  %1137 = vmatmul.mubr.bf16.gmra.mrb[0].mxu0 %v916
  %v1138 = vpop.f32.mrb[0].mxu0
  %v1139 = vadd.f32 %v591, %v1138
  %v1140 = vpop.f32.mrb[0].mxu0
  %v1141 = vpop.f32.mrb[0].mxu0
  %v1142 = vadd.f32 %v594, %v1141
  %v1143 = vpop.f32.mrb[0].mxu0
  %1144 = vmatprep.mubr.bf16.mxu0 0
  %1145 = vmatmul.mubr.bf16.gmra.mrb[0].mxu0 %v919
  %v1146 = vpop.f32.mrb[0].mxu0
  %v1147 = vadd.f32 %v599, %v1146
  %v1148 = vpop.f32.mrb[0].mxu0
  %v1149 = vpop.f32.mrb[0].mxu0
  %v1150 = vadd.f32 %v602, %v1149
  %v1151 = vpop.f32.mrb[0].mxu0
  %1152 = vmatprep.mubr.bf16.mxu0 0
  %1153 = vmatmul.mubr.bf16.gmra.mrb[0].mxu0 %v922
  %v1154 = vpop.f32.mrb[0].mxu0
  %v1155 = vadd.f32 %v607, %v1154
  %v1156 = vpop.f32.mrb[0].mxu0
  %v1157 = vpop.f32.mrb[0].mxu0
  %v1158 = vadd.f32 %v610, %v1157
  %v1159 = vpop.f32.mrb[0].mxu0
  %1160 = vmatprep.mubr.bf16.mxu0 0
  %1161 = vmatmul.mubr.bf16.gmra.mrb[0].mxu0 %v925
  %v1162 = vpop.f32.mrb[0].mxu0
  %v1163 = vadd.f32 %v615, %v1162
  %v1164 = vpop.f32.mrb[0].mxu0
  %v1165 = vpop.f32.mrb[0].mxu0
  %v1166 = vadd.f32 %v618, %v1165
  %v1167 = vpop.f32.mrb[0].mxu0
  %1168 = vmatprep.mubr.bf16.mxu0 0
  %1169 = vmatmul.mubr.bf16.gmra.mrb[0].mxu0 %v928
  %v1170 = vpop.f32.mrb[0].mxu0
  %v1171 = vadd.f32 %v623, %v1170
  %v1172 = vpop.f32.mrb[0].mxu0
  %v1173 = vpop.f32.mrb[0].mxu0
  %v1174 = vadd.f32 %v626, %v1173
  %v1175 = vpop.f32.mrb[0].mxu0
  %1176 = vmatprep.mubr.bf16.mxu0 0
  %1177 = vmatmul.mubr.bf16.gmra.mrb[0].mxu0 %v931
  %v1178 = vpop.f32.mrb[0].mxu0
  %v1179 = vadd.f32 %v631, %v1178
  %v1180 = vpop.f32.mrb[0].mxu0
  %v1181 = vpop.f32.mrb[0].mxu0
  %v1182 = vadd.f32 %v634, %v1181
  %v1183 = vpop.f32.mrb[0].mxu0
  %1184 = vmatprep.mubr.bf16.mxu0 0
  %1185 = vmatmul.mubr.bf16.gmra.mrb[0].mxu0 %v934
  %v1186 = vpop.f32.mrb[0].mxu0
  %v1187 = vadd.f32 %v639, %v1186
  %v1188 = vpop.f32.mrb[0].mxu0
  %v1189 = vpop.f32.mrb[0].mxu0
  %v1190 = vadd.f32 %v642, %v1189
  %v1191 = vpop.f32.mrb[0].mxu0
  %1192 = vmatprep.mubr.bf16.mxu0 0
  %1193 = vmatmul.mubr.bf16.gmra.mrb[0].mxu0 %v937
  %v1194 = vpop.f32.mrb[0].mxu0
  %v1195 = vadd.f32 %v647, %v1194
  %v1196 = vpop.f32.mrb[0].mxu0
  %v1197 = vpop.f32.mrb[0].mxu0
  %v1198 = vadd.f32 %v650, %v1197
  %v1199 = vpop.f32.mrb[0].mxu0
  %1200 = vmatprep.mubr.bf16.mxu0 0
  %1201 = vmatmul.mubr.bf16.gmra.mrb[0].mxu0 %v940
  %v1202 = vpop.f32.mrb[0].mxu0
  %v1203 = vadd.f32 %v655, %v1202
  %v1204 = vpop.f32.mrb[0].mxu0
  %v1205 = vpop.f32.mrb[0].mxu0
  %v1206 = vadd.f32 %v658, %v1205
  %v1207 = vpop.f32.mrb[0].mxu0
  %1208 = vmatprep.mubr.bf16.mxu0 0
  %1209 = vmatmul.mubr.bf16.gmra.mrb[0].mxu0 %v943
  %v1210 = vpop.f32.mrb[0].mxu0
  %v1211 = vadd.f32 %v663, %v1210
  %v1212 = vpop.f32.mrb[0].mxu0
  %v1213 = vpop.f32.mrb[0].mxu0
  %v1214 = vadd.f32 %v666, %v1213
  %v1215 = vpop.f32.mrb[0].mxu0
  %1216 = vmatprep.mubr.bf16.mxu0 0
  %1217 = vmatmul.mubr.bf16.gmra.mrb[0].mxu0 %v946
  %v1218 = vpop.f32.mrb[0].mxu0
  %v1219 = vadd.f32 %v671, %v1218
  %v1220 = vpop.f32.mrb[0].mxu0
  %v1221 = vpop.f32.mrb[0].mxu0
  %v1222 = vadd.f32 %v674, %v1221
  %v1223 = vpop.f32.mrb[0].mxu0
  %1224 = vmatprep.mubr.bf16.mxu0 0
  %1225 = vmatmul.mubr.bf16.gmra.mrb[0].mxu0 %v949
  %v1226 = vpop.f32.mrb[0].mxu0
  %v1227 = vadd.f32 %v679, %v1226
  %v1228 = vpop.f32.mrb[0].mxu0
  %v1229 = vpop.f32.mrb[0].mxu0
  %v1230 = vadd.f32 %v682, %v1229
  %v1231 = vpop.f32.mrb[0].mxu0
  %1232 = vmatprep.mubr.bf16.mxu0 0
  %1233 = vmatmul.mubr.bf16.gmra.mrb[0].mxu0 %v952
  %v1234 = vpop.f32.mrb[0].mxu0
  %v1235 = vadd.f32 %v687, %v1234
  %v1236 = vpop.f32.mrb[0].mxu0
  %v1237 = vpop.f32.mrb[0].mxu0
  %v1238 = vadd.f32 %v690, %v1237
  %v1239 = vpop.f32.mrb[0].mxu0
  %1240 = vmatprep.mubr.bf16.mxu0 0
  %1241 = vmatmul.mubr.bf16.gmra.mrb[0].mxu0 %v955
  %v1242 = vpop.f32.mrb[0].mxu0
  %v1243 = vadd.f32 %v695, %v1242
  %v1244 = vpop.f32.mrb[0].mxu0
  %v1245 = vpop.f32.mrb[0].mxu0
  %v1246 = vadd.f32 %v698, %v1245
  %v1247 = vpop.f32.mrb[0].mxu0
  %1248 = vdwg.mxu0
  %v1249 = vld [vmem:[%s4] sm:$0x1]
  %v1251 = vlaneseq
  %v1252 = vshrl.u32 %v1251, 7
  %v1253 = vsub.s32 0, %v1252
  %v1254 = vrot.slane %v1249, %v1253
  %v1256 = vadd.f32 %v995, %v1254
  %v1257 = vadd.f32 %v998, %v1254
  %v1258 = vadd.f32 %v1003, %v1254
  %v1259 = vadd.f32 %v1006, %v1254
  %v1260 = vadd.f32 %v1011, %v1254
  %v1261 = vadd.f32 %v1014, %v1254
  %v1262 = vadd.f32 %v1019, %v1254
  %v1263 = vadd.f32 %v1022, %v1254
  %v1264 = vadd.f32 %v1027, %v1254
  %v1265 = vadd.f32 %v1030, %v1254
  %v1266 = vadd.f32 %v1035, %v1254
  %v1267 = vadd.f32 %v1038, %v1254
  %v1268 = vadd.f32 %v1043, %v1254
  %v1269 = vadd.f32 %v1046, %v1254
  %v1270 = vadd.f32 %v1051, %v1254
  %v1271 = vadd.f32 %v1054, %v1254
  %v1272 = vadd.f32 %v1059, %v1254
  %v1273 = vadd.f32 %v1062, %v1254
  %v1274 = vadd.f32 %v1067, %v1254
  %v1275 = vadd.f32 %v1070, %v1254
  %v1276 = vadd.f32 %v1075, %v1254
  %v1277 = vadd.f32 %v1078, %v1254
  %v1278 = vadd.f32 %v1083, %v1254
  %v1279 = vadd.f32 %v1086, %v1254
  %v1280 = vadd.f32 %v1091, %v1254
  %v1281 = vadd.f32 %v1094, %v1254
  %v1282 = vadd.f32 %v1099, %v1254
  %v1283 = vadd.f32 %v1102, %v1254
  %v1284 = vadd.f32 %v1107, %v1254
  %v1285 = vadd.f32 %v1110, %v1254
  %v1286 = vadd.f32 %v1115, %v1254
  %v1287 = vadd.f32 %v1118, %v1254
  %v1288 = vadd.f32 %v1123, %v1254
  %v1289 = vadd.f32 %v1126, %v1254
  %v1290 = vadd.f32 %v1131, %v1254
  %v1291 = vadd.f32 %v1134, %v1254
  %v1292 = vadd.f32 %v1139, %v1254
  %v1293 = vadd.f32 %v1142, %v1254
  %v1294 = vadd.f32 %v1147, %v1254
  %v1295 = vadd.f32 %v1150, %v1254
  %v1296 = vadd.f32 %v1155, %v1254
  %v1297 = vadd.f32 %v1158, %v1254
  %v1298 = vadd.f32 %v1163, %v1254
  %v1299 = vadd.f32 %v1166, %v1254
  %v1300 = vadd.f32 %v1171, %v1254
  %v1301 = vadd.f32 %v1174, %v1254
  %v1302 = vadd.f32 %v1179, %v1254
  %v1303 = vadd.f32 %v1182, %v1254
  %v1304 = vadd.f32 %v1187, %v1254
  %v1305 = vadd.f32 %v1190, %v1254
  %v1306 = vadd.f32 %v1195, %v1254
  %v1307 = vadd.f32 %v1198, %v1254
  %v1308 = vadd.f32 %v1203, %v1254
  %v1309 = vadd.f32 %v1206, %v1254
  %v1310 = vadd.f32 %v1211, %v1254
  %v1311 = vadd.f32 %v1214, %v1254
  %v1312 = vadd.f32 %v1219, %v1254
  %v1313 = vadd.f32 %v1222, %v1254
  %v1314 = vadd.f32 %v1227, %v1254
  %v1315 = vadd.f32 %v1230, %v1254
  %v1316 = vadd.f32 %v1235, %v1254
  %v1317 = vadd.f32 %v1238, %v1254
  %v1318 = vadd.f32 %v1243, %v1254
  %v1319 = vadd.f32 %v1246, %v1254
  %v1320 = vmax.f32 %v1256, 0.0
  %v1321 = vmax.f32 %v1257, 0.0
  %v1322 = vmax.f32 %v1258, 0.0
  %v1323 = vmax.f32 %v1259, 0.0
  %v1324 = vmax.f32 %v1260, 0.0
  %v1325 = vmax.f32 %v1261, 0.0
  %v1326 = vmax.f32 %v1262, 0.0
  %v1327 = vmax.f32 %v1263, 0.0
  %v1328 = vmax.f32 %v1264, 0.0
  %v1329 = vmax.f32 %v1265, 0.0
  %v1330 = vmax.f32 %v1266, 0.0
  %v1331 = vmax.f32 %v1267, 0.0
  %v1332 = vmax.f32 %v1268, 0.0
  %v1333 = vmax.f32 %v1269, 0.0
  %v1334 = vmax.f32 %v1270, 0.0
  %v1335 = vmax.f32 %v1271, 0.0
  %v1336 = vmax.f32 %v1272, 0.0
  %v1337 = vmax.f32 %v1273, 0.0
  %v1338 = vmax.f32 %v1274, 0.0
  %v1339 = vmax.f32 %v1275, 0.0
  %v1340 = vmax.f32 %v1276, 0.0
  %v1341 = vmax.f32 %v1277, 0.0
  %v1342 = vmax.f32 %v1278, 0.0
  %v1343 = vmax.f32 %v1279, 0.0
  %v1344 = vmax.f32 %v1280, 0.0
  %v1345 = vmax.f32 %v1281, 0.0
  %v1346 = vmax.f32 %v1282, 0.0
  %v1347 = vmax.f32 %v1283, 0.0
  %v1348 = vmax.f32 %v1284, 0.0
  %v1349 = vmax.f32 %v1285, 0.0
  %v1350 = vmax.f32 %v1286, 0.0
  %v1351 = vmax.f32 %v1287, 0.0
  %v1352 = vmax.f32 %v1288, 0.0
  %v1353 = vmax.f32 %v1289, 0.0
  %v1354 = vmax.f32 %v1290, 0.0
  %v1355 = vmax.f32 %v1291, 0.0
  %v1356 = vmax.f32 %v1292, 0.0
  %v1357 = vmax.f32 %v1293, 0.0
  %v1358 = vmax.f32 %v1294, 0.0
  %v1359 = vmax.f32 %v1295, 0.0
  %v1360 = vmax.f32 %v1296, 0.0
  %v1361 = vmax.f32 %v1297, 0.0
  %v1362 = vmax.f32 %v1298, 0.0
  %v1363 = vmax.f32 %v1299, 0.0
  %v1364 = vmax.f32 %v1300, 0.0
  %v1365 = vmax.f32 %v1301, 0.0
  %v1366 = vmax.f32 %v1302, 0.0
  %v1367 = vmax.f32 %v1303, 0.0
  %v1368 = vmax.f32 %v1304, 0.0
  %v1369 = vmax.f32 %v1305, 0.0
  %v1370 = vmax.f32 %v1306, 0.0
  %v1371 = vmax.f32 %v1307, 0.0
  %v1372 = vmax.f32 %v1308, 0.0
  %v1373 = vmax.f32 %v1309, 0.0
  %v1374 = vmax.f32 %v1310, 0.0
  %v1375 = vmax.f32 %v1311, 0.0
  %v1376 = vmax.f32 %v1312, 0.0
  %v1377 = vmax.f32 %v1313, 0.0
  %v1378 = vmax.f32 %v1314, 0.0
  %v1379 = vmax.f32 %v1315, 0.0
  %v1380 = vmax.f32 %v1316, 0.0
  %v1381 = vmax.f32 %v1317, 0.0
  %v1382 = vmax.f32 %v1318, 0.0
  %v1383 = vmax.f32 %v1319, 0.0
  %v1384 = vpack.c.bf16 %v1321, %v1320
  %v1385 = vpack.c.bf16 %v1323, %v1322
  %v1386 = vpack.c.bf16 %v1325, %v1324
  %v1387 = vpack.c.bf16 %v1327, %v1326
  %v1388 = vpack.c.bf16 %v1329, %v1328
  %v1389 = vpack.c.bf16 %v1331, %v1330
  %v1390 = vpack.c.bf16 %v1333, %v1332
  %v1391 = vpack.c.bf16 %v1335, %v1334
  %v1392 = vpack.c.bf16 %v1337, %v1336
  %v1393 = vpack.c.bf16 %v1339, %v1338
  %v1394 = vpack.c.bf16 %v1341, %v1340
  %v1395 = vpack.c.bf16 %v1343, %v1342
  %v1396 = vpack.c.bf16 %v1345, %v1344
  %v1397 = vpack.c.bf16 %v1347, %v1346
  %v1398 = vpack.c.bf16 %v1349, %v1348
  %v1399 = vpack.c.bf16 %v1351, %v1350
  %v1400 = vpack.c.bf16 %v1353, %v1352
  %v1401 = vpack.c.bf16 %v1355, %v1354
  %v1402 = vpack.c.bf16 %v1357, %v1356
  %v1403 = vpack.c.bf16 %v1359, %v1358
  %v1404 = vpack.c.bf16 %v1361, %v1360
  %v1405 = vpack.c.bf16 %v1363, %v1362
  %v1406 = vpack.c.bf16 %v1365, %v1364
  %v1407 = vpack.c.bf16 %v1367, %v1366
  %v1408 = vpack.c.bf16 %v1369, %v1368
  %v1409 = vpack.c.bf16 %v1371, %v1370
  %v1410 = vpack.c.bf16 %v1373, %v1372
  %v1411 = vpack.c.bf16 %v1375, %v1374
  %v1412 = vpack.c.bf16 %v1377, %v1376
  %v1413 = vpack.c.bf16 %v1379, %v1378
  %v1414 = vpack.c.bf16 %v1381, %v1380
  %v1415 = vpack.c.bf16 %v1383, %v1382
  %v1448 = vunpack.c.l.b16 %v1384
  %v1449 = vunpack.c.h.b16 %v1384
  %v1450 = vunpack.c.l.b16 %v1385
  %v1451 = vunpack.c.h.b16 %v1385
  %v1452 = vunpack.c.l.b16 %v1386
  %v1453 = vunpack.c.h.b16 %v1386
  %v1454 = vunpack.c.l.b16 %v1387
  %v1455 = vunpack.c.h.b16 %v1387
  %v1456 = vunpack.c.l.b16 %v1388
  %v1457 = vunpack.c.h.b16 %v1388
  %v1458 = vunpack.c.l.b16 %v1389
  %v1459 = vunpack.c.h.b16 %v1389
  %v1460 = vunpack.c.l.b16 %v1390
  %v1461 = vunpack.c.h.b16 %v1390
  %v1462 = vunpack.c.l.b16 %v1391
  %v1463 = vunpack.c.h.b16 %v1391
  %v1464 = vunpack.c.l.b16 %v1392
  %v1465 = vunpack.c.h.b16 %v1392
  %v1466 = vunpack.c.l.b16 %v1393
  %v1467 = vunpack.c.h.b16 %v1393
  %v1468 = vunpack.c.l.b16 %v1394
  %v1469 = vunpack.c.h.b16 %v1394
  %v1470 = vunpack.c.l.b16 %v1395
  %v1471 = vunpack.c.h.b16 %v1395
  %v1472 = vunpack.c.l.b16 %v1396
  %v1473 = vunpack.c.h.b16 %v1396
  %v1474 = vunpack.c.l.b16 %v1397
  %v1475 = vunpack.c.h.b16 %v1397
  %v1476 = vunpack.c.l.b16 %v1398
  %v1477 = vunpack.c.h.b16 %v1398
  %v1478 = vunpack.c.l.b16 %v1399
  %v1479 = vunpack.c.h.b16 %v1399
  %v1480 = vunpack.c.l.b16 %v1400
  %v1481 = vunpack.c.h.b16 %v1400
  %v1482 = vunpack.c.l.b16 %v1401
  %v1483 = vunpack.c.h.b16 %v1401
  %v1484 = vunpack.c.l.b16 %v1402
  %v1485 = vunpack.c.h.b16 %v1402
  %v1486 = vunpack.c.l.b16 %v1403
  %v1487 = vunpack.c.h.b16 %v1403
  %v1488 = vunpack.c.l.b16 %v1404
  %v1489 = vunpack.c.h.b16 %v1404
  %v1490 = vunpack.c.l.b16 %v1405
  %v1491 = vunpack.c.h.b16 %v1405
  %v1492 = vunpack.c.l.b16 %v1406
  %v1493 = vunpack.c.h.b16 %v1406
  %v1494 = vunpack.c.l.b16 %v1407
  %v1495 = vunpack.c.h.b16 %v1407
  %v1496 = vunpack.c.l.b16 %v1408
  %v1497 = vunpack.c.h.b16 %v1408
  %v1498 = vunpack.c.l.b16 %v1409
  %v1499 = vunpack.c.h.b16 %v1409
  %v1500 = vunpack.c.l.b16 %v1410
  %v1501 = vunpack.c.h.b16 %v1410
  %v1502 = vunpack.c.l.b16 %v1411
  %v1503 = vunpack.c.h.b16 %v1411
  %v1504 = vunpack.c.l.b16 %v1412
  %v1505 = vunpack.c.h.b16 %v1412
  %v1506 = vunpack.c.l.b16 %v1413
  %v1507 = vunpack.c.h.b16 %v1413
  %v1508 = vunpack.c.l.b16 %v1414
  %v1509 = vunpack.c.h.b16 %v1414
  %v1510 = vunpack.c.l.b16 %v1415
  %v1511 = vunpack.c.h.b16 %v1415
  %v1512 = vpack.c.b16 %v1448, %v1448
  %v1513 = vpack.c.b16 %v1449, %v1449
  %v1514 = vpack.c.b16 %v1450, %v1450
  %v1515 = vpack.c.b16 %v1451, %v1451
  %v1516 = vpack.c.b16 %v1452, %v1452
  %v1517 = vpack.c.b16 %v1453, %v1453
  %v1518 = vpack.c.b16 %v1454, %v1454
  %v1519 = vpack.c.b16 %v1455, %v1455
  %v1520 = vpack.c.b16 %v1456, %v1456
  %v1521 = vpack.c.b16 %v1457, %v1457
  %v1522 = vpack.c.b16 %v1458, %v1458
  %v1523 = vpack.c.b16 %v1459, %v1459
  %v1524 = vpack.c.b16 %v1460, %v1460
  %v1525 = vpack.c.b16 %v1461, %v1461
  %v1526 = vpack.c.b16 %v1462, %v1462
  %v1527 = vpack.c.b16 %v1463, %v1463
  %v1528 = vpack.c.b16 %v1464, %v1464
  %v1529 = vpack.c.b16 %v1465, %v1465
  %v1530 = vpack.c.b16 %v1466, %v1466
  %v1531 = vpack.c.b16 %v1467, %v1467
  %v1532 = vpack.c.b16 %v1468, %v1468
  %v1533 = vpack.c.b16 %v1469, %v1469
  %v1534 = vpack.c.b16 %v1470, %v1470
  %v1535 = vpack.c.b16 %v1471, %v1471
  %v1536 = vpack.c.b16 %v1472, %v1472
  %v1537 = vpack.c.b16 %v1473, %v1473
  %v1538 = vpack.c.b16 %v1474, %v1474
  %v1539 = vpack.c.b16 %v1475, %v1475
  %v1540 = vpack.c.b16 %v1476, %v1476
  %v1541 = vpack.c.b16 %v1477, %v1477
  %v1542 = vpack.c.b16 %v1478, %v1478
  %v1543 = vpack.c.b16 %v1479, %v1479
  %v1544 = vpack.c.b16 %v1480, %v1480
  %v1545 = vpack.c.b16 %v1481, %v1481
  %v1546 = vpack.c.b16 %v1482, %v1482
  %v1547 = vpack.c.b16 %v1483, %v1483
  %v1548 = vpack.c.b16 %v1484, %v1484
  %v1549 = vpack.c.b16 %v1485, %v1485
  %v1550 = vpack.c.b16 %v1486, %v1486
  %v1551 = vpack.c.b16 %v1487, %v1487
  %v1552 = vpack.c.b16 %v1488, %v1488
  %v1553 = vpack.c.b16 %v1489, %v1489
  %v1554 = vpack.c.b16 %v1490, %v1490
  %v1555 = vpack.c.b16 %v1491, %v1491
  %v1556 = vpack.c.b16 %v1492, %v1492
  %v1557 = vpack.c.b16 %v1493, %v1493
  %v1558 = vpack.c.b16 %v1494, %v1494
  %v1559 = vpack.c.b16 %v1495, %v1495
  %v1560 = vpack.c.b16 %v1496, %v1496
  %v1561 = vpack.c.b16 %v1497, %v1497
  %v1562 = vpack.c.b16 %v1498, %v1498
  %v1563 = vpack.c.b16 %v1499, %v1499
  %v1564 = vpack.c.b16 %v1500, %v1500
  %v1565 = vpack.c.b16 %v1501, %v1501
  %v1566 = vpack.c.b16 %v1502, %v1502
  %v1567 = vpack.c.b16 %v1503, %v1503
  %v1568 = vpack.c.b16 %v1504, %v1504
  %v1569 = vpack.c.b16 %v1505, %v1505
  %v1570 = vpack.c.b16 %v1506, %v1506
  %v1571 = vpack.c.b16 %v1507, %v1507
  %v1572 = vpack.c.b16 %v1508, %v1508
  %v1573 = vpack.c.b16 %v1509, %v1509
  %v1574 = vpack.c.b16 %v1510, %v1510
  %v1575 = vpack.c.b16 %v1511, %v1511
  %vm1640 = vcmask 125952
  %1641 = vst.msk [vmem:[%s5] sm:$0xf] %vm1640, %v1512
  %1642 = vst.msk [vmem:[%s5 + $0x4] sm:$0xf] %vm1640, %v1513
  %1643 = vst.msk [vmem:[%s5 + $0x8] sm:$0xf] %vm1640, %v1514
  %1644 = vst.msk [vmem:[%s5 + $0xc] sm:$0xf] %vm1640, %v1515
  %1645 = vst.msk [vmem:[%s5 + $0x10] sm:$0xf] %vm1640, %v1516
  %1646 = vst.msk [vmem:[%s5 + $0x14] sm:$0xf] %vm1640, %v1517
  %1647 = vst.msk [vmem:[%s5 + $0x18] sm:$0xf] %vm1640, %v1518
  %1648 = vst.msk [vmem:[%s5 + $0x1c] sm:$0xf] %vm1640, %v1519
  %1649 = vst.msk [vmem:[%s5 + $0x20] sm:$0xf] %vm1640, %v1520
  %1650 = vst.msk [vmem:[%s5 + $0x24] sm:$0xf] %vm1640, %v1521
  %1651 = vst.msk [vmem:[%s5 + $0x28] sm:$0xf] %vm1640, %v1522
  %1652 = vst.msk [vmem:[%s5 + $0x2c] sm:$0xf] %vm1640, %v1523
  %1653 = vst.msk [vmem:[%s5 + $0x30] sm:$0xf] %vm1640, %v1524
  %1654 = vst.msk [vmem:[%s5 + $0x34] sm:$0xf] %vm1640, %v1525
  %1655 = vst.msk [vmem:[%s5 + $0x38] sm:$0xf] %vm1640, %v1526
  %1656 = vst.msk [vmem:[%s5 + $0x3c] sm:$0xf] %vm1640, %v1527
  %1657 = vst.msk [vmem:[%s5 + $0x40] sm:$0xf] %vm1640, %v1528
  %1658 = vst.msk [vmem:[%s5 + $0x44] sm:$0xf] %vm1640, %v1529
  %1659 = vst.msk [vmem:[%s5 + $0x48] sm:$0xf] %vm1640, %v1530
  %1660 = vst.msk [vmem:[%s5 + $0x4c] sm:$0xf] %vm1640, %v1531
  %1661 = vst.msk [vmem:[%s5 + $0x50] sm:$0xf] %vm1640, %v1532
  %1662 = vst.msk [vmem:[%s5 + $0x54] sm:$0xf] %vm1640, %v1533
  %1663 = vst.msk [vmem:[%s5 + $0x58] sm:$0xf] %vm1640, %v1534
  %1664 = vst.msk [vmem:[%s5 + $0x5c] sm:$0xf] %vm1640, %v1535
  %1665 = vst.msk [vmem:[%s5 + $0x60] sm:$0xf] %vm1640, %v1536
  %1666 = vst.msk [vmem:[%s5 + $0x64] sm:$0xf] %vm1640, %v1537
  %1667 = vst.msk [vmem:[%s5 + $0x68] sm:$0xf] %vm1640, %v1538
  %1668 = vst.msk [vmem:[%s5 + $0x6c] sm:$0xf] %vm1640, %v1539
  %1669 = vst.msk [vmem:[%s5 + $0x70] sm:$0xf] %vm1640, %v1540
  %1670 = vst.msk [vmem:[%s5 + $0x74] sm:$0xf] %vm1640, %v1541
  %1671 = vst.msk [vmem:[%s5 + $0x78] sm:$0xf] %vm1640, %v1542
  %1672 = vst.msk [vmem:[%s5 + $0x7c] sm:$0xf] %vm1640, %v1543
  %1673 = vst.msk [vmem:[%s5 + $0x80] sm:$0xf] %vm1640, %v1544
  %1674 = vst.msk [vmem:[%s5 + $0x84] sm:$0xf] %vm1640, %v1545
  %1675 = vst.msk [vmem:[%s5 + $0x88] sm:$0xf] %vm1640, %v1546
  %1676 = vst.msk [vmem:[%s5 + $0x8c] sm:$0xf] %vm1640, %v1547
  %1677 = vst.msk [vmem:[%s5 + $0x90] sm:$0xf] %vm1640, %v1548
  %1678 = vst.msk [vmem:[%s5 + $0x94] sm:$0xf] %vm1640, %v1549
  %1679 = vst.msk [vmem:[%s5 + $0x98] sm:$0xf] %vm1640, %v1550
  %1680 = vst.msk [vmem:[%s5 + $0x9c] sm:$0xf] %vm1640, %v1551
  %1681 = vst.msk [vmem:[%s5 + $0xa0] sm:$0xf] %vm1640, %v1552
  %1682 = vst.msk [vmem:[%s5 + $0xa4] sm:$0xf] %vm1640, %v1553
  %1683 = vst.msk [vmem:[%s5 + $0xa8] sm:$0xf] %vm1640, %v1554
  %1684 = vst.msk [vmem:[%s5 + $0xac] sm:$0xf] %vm1640, %v1555
  %1685 = vst.msk [vmem:[%s5 + $0xb0] sm:$0xf] %vm1640, %v1556
  %1686 = vst.msk [vmem:[%s5 + $0xb4] sm:$0xf] %vm1640, %v1557
  %1687 = vst.msk [vmem:[%s5 + $0xb8] sm:$0xf] %vm1640, %v1558
  %1688 = vst.msk [vmem:[%s5 + $0xbc] sm:$0xf] %vm1640, %v1559
  %1689 = vst.msk [vmem:[%s5 + $0xc0] sm:$0xf] %vm1640, %v1560
  %1690 = vst.msk [vmem:[%s5 + $0xc4] sm:$0xf] %vm1640, %v1561
  %1691 = vst.msk [vmem:[%s5 + $0xc8] sm:$0xf] %vm1640, %v1562
  %1692 = vst.msk [vmem:[%s5 + $0xcc] sm:$0xf] %vm1640, %v1563
  %1693 = vst.msk [vmem:[%s5 + $0xd0] sm:$0xf] %vm1640, %v1564
  %1694 = vst.msk [vmem:[%s5 + $0xd4] sm:$0xf] %vm1640, %v1565
  %1695 = vst.msk [vmem:[%s5 + $0xd8] sm:$0xf] %vm1640, %v1566
  %1696 = vst.msk [vmem:[%s5 + $0xdc] sm:$0xf] %vm1640, %v1567
  %1697 = vst.msk [vmem:[%s5 + $0xe0] sm:$0xf] %vm1640, %v1568
  %1698 = vst.msk [vmem:[%s5 + $0xe4] sm:$0xf] %vm1640, %v1569
  %1699 = vst.msk [vmem:[%s5 + $0xe8] sm:$0xf] %vm1640, %v1570
  %1700 = vst.msk [vmem:[%s5 + $0xec] sm:$0xf] %vm1640, %v1571
  %1701 = vst.msk [vmem:[%s5 + $0xf0] sm:$0xf] %vm1640, %v1572
  %1702 = vst.msk [vmem:[%s5 + $0xf4] sm:$0xf] %vm1640, %v1573
  %1703 = vst.msk [vmem:[%s5 + $0xf8] sm:$0xf] %vm1640, %v1574
  %1704 = vst.msk [vmem:[%s5 + $0xfc] sm:$0xf] %vm1640, %v1575
  // Predicated region
  $region22: #{bottleneck_forward.5} parent=0 // pred_check
    _
  $region23: #{bottleneck_forward.5} parent=0 // pred_check_branch
    %1706 = sbr.rel (0) target = $region25
  $region24: #{bottleneck_forward.5} parent=0 // pred_region
    _
  $region25: #{bottleneck_forward.5} parent=0 // pred_fallthru
    _
  // Predicated region
  $region26: #{bottleneck_forward.5} parent=0 // pred_check
    _
  $region27: #{bottleneck_forward.5} parent=0 // pred_check_branch
    %1708 = sbr.rel (0) target = $region29
  $region28: #{bottleneck_forward.5} parent=0 // pred_region
    _
  $region29: #{bottleneck_forward.5} parent=0 // pred_fallthru
    _

// kernel: bottleneck_forward.4
$region0: #{bottleneck_forward.4}
  #allocation0 [shape = 'u32[]', space=smem, size = 0x4, offset = 0x4, fixed_abs, tag = 'smem constant byte address 0x4 - core index']
  #allocation1 [shape = 'u32[144,128]{1,0:T(1,128)}', space=vmem, size = 0x12000, scoped, tag = 'internal scratch']
  #allocation2 [shape = 'bf16[18,18,4]{2,1,0:T(8,128)(2,1)}', space=vmem, size = 0x1b000, scoped, tag = 'scratch operand']
  %s0 = inlined_call_operand.vmem [shape: bf16[2,16,16,4], index: 0, kind: input, shape index: {}]
  %s1 = inlined_call_operand.vmem [shape: bf16[3,12,4], index: 1, kind: input, shape index: {}]
  %s2 = inlined_call_operand.vmem [shape: f32[1,4], index: 2, kind: input, shape index: {}]
  %s3 = inlined_call_operand.vmem [shape: bf16[2,16,16,4], index: 3, kind: output, shape index: {}]
  %s4 = sld [smem:[#allocation0]]
  $region45: #{bottleneck_forward.4} parent=0
    _
  %s6 = ssub.s32 1, %s4
  %s7 = scalar_select 0, %s6, %s4
  loop: start=0, step=1, limit=4
  $region2: #{bottleneck_forward.4} parent=0 // loop_pre_header
    _
  $region3: #{bottleneck_forward.4} parent=0 // loop_header
    %s9 = sphi 0, %s13
    %p10 = scmp.ge.s32.totalorder %s9, 4
    %s19 = sphi 0, %s21
    %s22 = sphi 0, %s19
    %s23 = sphi 0, %s22
    %s39 = sphi 0, %s23
    %s43 = sphi 0, %s43
    %s45 = sphi 0, %s43
    %s46 = sphi 0, %s45
    %s60 = sphi 0, %s46
    %s64 = sphi 0, %s64
    %s66 = sphi 0, %s64
    %s67 = sphi 0, %s66
    %s81 = sphi 0, %s67
    %s87 = sphi 0, %s89
    %s90 = sphi 0, %s87
    %s91 = sphi 0, %s90
    %s107 = sphi 0, %s91
  $region4: #{bottleneck_forward.4} parent=0 // loop_header_branch
    %12 = sbr.rel (%p10) target = $region8
  $region5: #{bottleneck_forward.4} parent=0 // loop_body
    %s14 = ssub.s32 %s9, 1
    %s15 = ssub.s32 %s9, 2
    %s16 = sadd.s32 %s9, 1
    %s17 = ssub.s32 %s9, %s16
    %p18 = scmp.eq.s32.totalorder %s17, 0
    %s20 = sadd.s32 %s19, 1
    %s21 = scalar_select %p18, %s19, %s20
    %p24 = pneg %p18
    %p25 = scmp.eq.s32.totalorder %s9, 1
    %p26 = por %p24, %p25
    %p27 = scmp.ne.s32.totalorder %s19, %s22
    %p28 = scmp.eq.s32.totalorder %s9, 0
    %p29 = por %p27, %p28
    %p30 = scmp.ne.s32.totalorder %s19, %s22
    %p31 = scmp.eq.s32.totalorder %s14, 1
    %p32 = por %p30, %p31
    %p33 = scmp.ne.s32.totalorder %s22, %s23
    %p34 = scmp.eq.s32.totalorder %s14, 0
    %p35 = por %p33, %p34
    %p36 = scmp.ne.s32.totalorder %s22, %s23
    %p37 = scmp.eq.s32.totalorder %s15, 1
    %p38 = por %p36, %p37
    %p40 = scmp.ne.s32.totalorder %s23, %s39
    %p41 = scmp.eq.s32.totalorder %s15, 0
    %p42 = por %p40, %p41
    %s44 = sadd.s32 %s43, 1
    %p47 = scmp.eq.s32.totalorder %s9, 1
    %p48 = scmp.ne.s32.totalorder %s43, %s45
    %p49 = scmp.eq.s32.totalorder %s9, 0
    %p50 = por %p48, %p49
    %p51 = scmp.ne.s32.totalorder %s43, %s45
    %p52 = scmp.eq.s32.totalorder %s14, 1
    %p53 = por %p51, %p52
    %p54 = scmp.ne.s32.totalorder %s45, %s46
    %p55 = scmp.eq.s32.totalorder %s14, 0
    %p56 = por %p54, %p55
    %p57 = scmp.ne.s32.totalorder %s45, %s46
    %p58 = scmp.eq.s32.totalorder %s15, 1
    %p59 = por %p57, %p58
    %p61 = scmp.ne.s32.totalorder %s46, %s60
    %p62 = scmp.eq.s32.totalorder %s15, 0
    %p63 = por %p61, %p62
    %s65 = sadd.s32 %s64, 1
    %p68 = scmp.eq.s32.totalorder %s9, 1
    %p69 = scmp.ne.s32.totalorder %s64, %s66
    %p70 = scmp.eq.s32.totalorder %s9, 0
    %p71 = por %p69, %p70
    %p72 = scmp.ne.s32.totalorder %s64, %s66
    %p73 = scmp.eq.s32.totalorder %s14, 1
    %p74 = por %p72, %p73
    %p75 = scmp.ne.s32.totalorder %s66, %s67
    %p76 = scmp.eq.s32.totalorder %s14, 0
    %p77 = por %p75, %p76
    %p78 = scmp.ne.s32.totalorder %s66, %s67
    %p79 = scmp.eq.s32.totalorder %s15, 1
    %p80 = por %p78, %p79
    %p82 = scmp.ne.s32.totalorder %s67, %s81
    %p83 = scmp.eq.s32.totalorder %s15, 0
    %p84 = por %p82, %p83
    %s85 = ssub.s32 %s9, %s16
    %p86 = scmp.eq.s32.totalorder %s85, 0
    %s88 = sadd.s32 %s87, 1
    %s89 = scalar_select %p86, %s87, %s88
    %p92 = pneg %p86
    %p93 = scmp.eq.s32.totalorder %s9, 1
    %p94 = por %p92, %p93
    %p95 = scmp.ne.s32.totalorder %s87, %s90
    %p96 = scmp.eq.s32.totalorder %s9, 0
    %p97 = por %p95, %p96
    %p98 = scmp.ne.s32.totalorder %s87, %s90
    %p99 = scmp.eq.s32.totalorder %s14, 1
    %p100 = por %p98, %p99
    %p101 = scmp.ne.s32.totalorder %s90, %s91
    %p102 = scmp.eq.s32.totalorder %s14, 0
    %p103 = por %p101, %p102
    %p104 = scmp.ne.s32.totalorder %s90, %s91
    %p105 = scmp.eq.s32.totalorder %s15, 1
    %p106 = por %p104, %p105
    %p108 = scmp.ne.s32.totalorder %s91, %s107
    %p109 = scmp.eq.s32.totalorder %s15, 0
    %p110 = por %p108, %p109
    %p111 = scmp.le.s32.totalorder 1, %s9
    %p112 = scmp.lt.s32.totalorder %s9, 3
    %p113 = pnand %p111, %p112
    %p114 = pneg %p113
    // Predicated region
    $region9: #{bottleneck_forward.4} parent=5 // pred_check
      _
    $region10: #{bottleneck_forward.4} parent=5 // pred_check_branch
      %116 = sbr.rel (%p113) target = $region12
    $region11: #{bottleneck_forward.4} parent=5 // pred_region
      %s117 = ssub.s32 %s9, 1
      // Predicated region
      $region13: #{bottleneck_forward.4} parent=11 // pred_check
        %p118 = pneg %p56
      $region14: #{bottleneck_forward.4} parent=11 // pred_check_branch
        %120 = sbr.rel (%p118) target = $region16
      $region15: #{bottleneck_forward.4} parent=11 // pred_region
        _
      $region16: #{bottleneck_forward.4} parent=11 // pred_fallthru
        _
      // Predicated region
      $region17: #{bottleneck_forward.4} parent=11 // pred_check
        %p121 = pneg %p77
      $region18: #{bottleneck_forward.4} parent=11 // pred_check_branch
        %123 = sbr.rel (%p121) target = $region20
      $region19: #{bottleneck_forward.4} parent=11 // pred_region
        _
      $region20: #{bottleneck_forward.4} parent=11 // pred_fallthru
        _
    $region12: #{bottleneck_forward.4} parent=5 // pred_fallthru
      _
    %p124 = scmp.lt.s32.totalorder %s9, 2
    // Predicated region
    $region21: #{bottleneck_forward.4} parent=5 // pred_check
      %p125 = pneg %p124
    $region22: #{bottleneck_forward.4} parent=5 // pred_check_branch
      %127 = sbr.rel (%p125) target = $region24
    $region23: #{bottleneck_forward.4} parent=5 // pred_region
      // Predicated region
      $region25: #{bottleneck_forward.4} parent=23 // pred_check
        %p128 = pneg %p29
      $region26: #{bottleneck_forward.4} parent=23 // pred_check_branch
        %130 = sbr.rel (%p128) target = $region28
      $region27: #{bottleneck_forward.4} parent=23 // pred_region
        %p131 = scmp.lt.s32.totalorder %s9, 1
        %s132 = scalar_select %p131, %s9, 1
        %s133 = smul.addr %s132, 32
        %s134 = smul.addr %s133, 4
        %s135 = scalar_lea.vmem %s0, %s134
      $region28: #{bottleneck_forward.4} parent=23 // pred_fallthru
        _
    $region24: #{bottleneck_forward.4} parent=5 // pred_fallthru
      _
    %p136 = scmp.le.s32.totalorder 1, %s9
    %p137 = scmp.lt.s32.totalorder %s9, 3
    %p138 = pnand %p136, %p137
    %p139 = pneg %p138
    // Predicated region
    $region29: #{bottleneck_forward.4} parent=5 // pred_check
      _
    $region30: #{bottleneck_forward.4} parent=5 // pred_check_branch
      %141 = sbr.rel (%p138) target = $region32
    $region31: #{bottleneck_forward.4} parent=5 // pred_region
      %s142 = ssub.s32 %s9, 1
      %p143 = scmp.lt.s32.totalorder %s14, 1
      %s144 = scalar_select %p143, %s14, 1
      %s145 = smul.addr %s144, 32
      %s146 = smul.addr %s145, 4
      %s147 = scalar_lea.vmem %s0, %s146
      %p148 = pneg %p35
      %p149 = pneg %p32
      %p150 = pneg %p56
      %p151 = pneg %p53
      %p152 = pneg %p77
      %p153 = pneg %p74
      %p154 = pneg %p103
      %p155 = pneg %p100
      %p156 = scmp.lt.s32.totalorder %s14, 1
      %s157 = scalar_select %p156, %s14, 1
      %s158 = smul.addr %s157, 32
      %s159 = smul.addr %s158, 4
      %s160 = scalar_lea.vmem %s3, %s159
      %p161 = scmp.lt.s32.totalorder %s14, 1
      %s162 = scalar_select %p161, %s14, 1
      %s163 = smul.addr %s162, 32
      %s164 = smul.addr %s163, 4
      %s165 = scalar_lea.vmem %s0, %s164
      %p166 = scmp.lt.s32.totalorder %s14, 1
      %s167 = scalar_select %p166, %s14, 1
      %s168 = smul.addr %s167, 32
      %s169 = smul.addr %s168, 4
      %s170 = scalar_lea.vmem %s3, %s169
      %vm172 = vcmask 27648
      %173 = vst.msk [vmem:[#allocation2] sm:$0xf] %vm172, 0
      %174 = vst.msk [vmem:[#allocation2 + $0x4] sm:$0xf] %vm172, 0
      %vm175 = vcmask 24576
      %176 = vst.msk [vmem:[#allocation2 + $0x8] sm:$0x1] %vm175, 0
      %177 = vst.msk [vmem:[#allocation2 + $0xc] sm:$0xf] %vm172, 0
      %178 = vst.msk [vmem:[#allocation2 + $0x10] sm:$0xf] %vm172, 0
      %179 = vst.msk [vmem:[#allocation2 + $0x14] sm:$0x1] %vm175, 0
      %180 = vst.msk [vmem:[#allocation2 + $0x18] sm:$0xf] %vm172, 0
      %181 = vst.msk [vmem:[#allocation2 + $0x1c] sm:$0xf] %vm172, 0
      %182 = vst.msk [vmem:[#allocation2 + $0x20] sm:$0x1] %vm175, 0
      %183 = vst.msk [vmem:[#allocation2 + $0x24] sm:$0xf] %vm172, 0
      %184 = vst.msk [vmem:[#allocation2 + $0x28] sm:$0xf] %vm172, 0
      %185 = vst.msk [vmem:[#allocation2 + $0x2c] sm:$0x1] %vm175, 0
      %186 = vst.msk [vmem:[#allocation2 + $0x30] sm:$0xf] %vm172, 0
      %187 = vst.msk [vmem:[#allocation2 + $0x34] sm:$0xf] %vm172, 0
      %188 = vst.msk [vmem:[#allocation2 + $0x38] sm:$0x1] %vm175, 0
      %189 = vst.msk [vmem:[#allocation2 + $0x3c] sm:$0xf] %vm172, 0
      %190 = vst.msk [vmem:[#allocation2 + $0x40] sm:$0xf] %vm172, 0
      %191 = vst.msk [vmem:[#allocation2 + $0x44] sm:$0x1] %vm175, 0
      %192 = vst.msk [vmem:[#allocation2 + $0x48] sm:$0xf] %vm172, 0
      %193 = vst.msk [vmem:[#allocation2 + $0x4c] sm:$0xf] %vm172, 0
      %194 = vst.msk [vmem:[#allocation2 + $0x50] sm:$0x1] %vm175, 0
      %195 = vst.msk [vmem:[#allocation2 + $0x54] sm:$0xf] %vm172, 0
      %196 = vst.msk [vmem:[#allocation2 + $0x58] sm:$0xf] %vm172, 0
      %197 = vst.msk [vmem:[#allocation2 + $0x5c] sm:$0x1] %vm175, 0
      %198 = vst.msk [vmem:[#allocation2 + $0x60] sm:$0xf] %vm172, 0
      %199 = vst.msk [vmem:[#allocation2 + $0x64] sm:$0xf] %vm172, 0
      %200 = vst.msk [vmem:[#allocation2 + $0x68] sm:$0x1] %vm175, 0
      %201 = vst.msk [vmem:[#allocation2 + $0x6c] sm:$0xf] %vm172, 0
      %202 = vst.msk [vmem:[#allocation2 + $0x70] sm:$0xf] %vm172, 0
      %203 = vst.msk [vmem:[#allocation2 + $0x74] sm:$0x1] %vm175, 0
      %204 = vst.msk [vmem:[#allocation2 + $0x78] sm:$0xf] %vm172, 0
      %205 = vst.msk [vmem:[#allocation2 + $0x7c] sm:$0xf] %vm172, 0
      %206 = vst.msk [vmem:[#allocation2 + $0x80] sm:$0x1] %vm175, 0
      %207 = vst.msk [vmem:[#allocation2 + $0x84] sm:$0xf] %vm172, 0
      %208 = vst.msk [vmem:[#allocation2 + $0x88] sm:$0xf] %vm172, 0
      %209 = vst.msk [vmem:[#allocation2 + $0x8c] sm:$0x1] %vm175, 0
      %210 = vst.msk [vmem:[#allocation2 + $0x90] sm:$0xf] %vm172, 0
      %211 = vst.msk [vmem:[#allocation2 + $0x94] sm:$0xf] %vm172, 0
      %212 = vst.msk [vmem:[#allocation2 + $0x98] sm:$0x1] %vm175, 0
      %213 = vst.msk [vmem:[#allocation2 + $0x9c] sm:$0xf] %vm172, 0
      %214 = vst.msk [vmem:[#allocation2 + $0xa0] sm:$0xf] %vm172, 0
      %215 = vst.msk [vmem:[#allocation2 + $0xa4] sm:$0x1] %vm175, 0
      %216 = vst.msk [vmem:[#allocation2 + $0xa8] sm:$0xf] %vm172, 0
      %217 = vst.msk [vmem:[#allocation2 + $0xac] sm:$0xf] %vm172, 0
      %218 = vst.msk [vmem:[#allocation2 + $0xb0] sm:$0x1] %vm175, 0
      %219 = vst.msk [vmem:[#allocation2 + $0xb4] sm:$0xf] %vm172, 0
      %220 = vst.msk [vmem:[#allocation2 + $0xb8] sm:$0xf] %vm172, 0
      %221 = vst.msk [vmem:[#allocation2 + $0xbc] sm:$0x1] %vm175, 0
      %222 = vst.msk [vmem:[#allocation2 + $0xc0] sm:$0xf] %vm172, 0
      %223 = vst.msk [vmem:[#allocation2 + $0xc4] sm:$0xf] %vm172, 0
      %224 = vst.msk [vmem:[#allocation2 + $0xc8] sm:$0x1] %vm175, 0
      %225 = vst.msk [vmem:[#allocation2 + $0xcc] sm:$0xf] %vm172, 0
      %226 = vst.msk [vmem:[#allocation2 + $0xd0] sm:$0xf] %vm172, 0
      %227 = vst.msk [vmem:[#allocation2 + $0xd4] sm:$0x1] %vm175, 0
      %v228 = vld [vmem:[%s165] sm:$0xf]
      %v229 = vld [vmem:[%s165 + $0x4] sm:$0xf]
      %v230 = vld [vmem:[%s165 + $0x8] sm:$0xf]
      %v231 = vld [vmem:[%s165 + $0xc] sm:$0xf]
      %v232 = vld [vmem:[%s165 + $0x10] sm:$0xf]
      %v233 = vld [vmem:[%s165 + $0x14] sm:$0xf]
      %v234 = vld [vmem:[%s165 + $0x18] sm:$0xf]
      %v235 = vld [vmem:[%s165 + $0x1c] sm:$0xf]
      %v236 = vld [vmem:[%s165 + $0x20] sm:$0xf]
      %v237 = vld [vmem:[%s165 + $0x24] sm:$0xf]
      %v238 = vld [vmem:[%s165 + $0x28] sm:$0xf]
      %v239 = vld [vmem:[%s165 + $0x2c] sm:$0xf]
      %v240 = vld [vmem:[%s165 + $0x30] sm:$0xf]
      %v241 = vld [vmem:[%s165 + $0x34] sm:$0xf]
      %v242 = vld [vmem:[%s165 + $0x38] sm:$0xf]
      %v243 = vld [vmem:[%s165 + $0x3c] sm:$0xf]
      %v244 = vld [vmem:[%s165 + $0x40] sm:$0xf]
      %v245 = vld [vmem:[%s165 + $0x44] sm:$0xf]
      %v246 = vld [vmem:[%s165 + $0x48] sm:$0xf]
      %v247 = vld [vmem:[%s165 + $0x4c] sm:$0xf]
      %v248 = vld [vmem:[%s165 + $0x50] sm:$0xf]
      %v249 = vld [vmem:[%s165 + $0x54] sm:$0xf]
      %v250 = vld [vmem:[%s165 + $0x58] sm:$0xf]
      %v251 = vld [vmem:[%s165 + $0x5c] sm:$0xf]
      %v252 = vld [vmem:[%s165 + $0x60] sm:$0xf]
      %v253 = vld [vmem:[%s165 + $0x64] sm:$0xf]
      %v254 = vld [vmem:[%s165 + $0x68] sm:$0xf]
      %v255 = vld [vmem:[%s165 + $0x6c] sm:$0xf]
      %v256 = vld [vmem:[%s165 + $0x70] sm:$0xf]
      %v257 = vld [vmem:[%s165 + $0x74] sm:$0xf]
      %v258 = vld [vmem:[%s165 + $0x78] sm:$0xf]
      %v259 = vld [vmem:[%s165 + $0x7c] sm:$0xf]
      %vm260 = vsmask.f32 256
      %vm261 = vsmask.f32 4368
      %vm262 = vmor %vm260, %vm261
      %v264 = vshrl.u32 %v228, 16
      %v266 = vrot.slane %v264, 7
      %v267 = vshll.u32 %v228, 16
      %v269 = vor.u32 %v266, %v267
      %v270 = vrot.slane %v266, 4
      %v272 = vshrl.u32 %v229, 16
      %v274 = vrot.slane %v272, 7
      %v275 = vshll.u32 %v229, 16
      %v277 = vor.u32 %v274, %v275
      %v278 = vsel %vm262, %v270, %v277
      %v279 = vrot.slane %v274, 4
      %v281 = vshrl.u32 %v230, 16
      %v283 = vrot.slane %v281, 7
      %v284 = vshll.u32 %v230, 16
      %v286 = vor.u32 %v283, %v284
      %v287 = vrot.slane %v283, 4
      %v289 = vshrl.u32 %v231, 16
      %v291 = vrot.slane %v289, 7
      %v292 = vshll.u32 %v231, 16
      %v294 = vor.u32 %v291, %v292
      %v295 = vsel %vm262, %v287, %v294
      %v296 = vrot.slane %v291, 4
      %v298 = vshrl.u32 %v232, 16
      %v300 = vrot.slane %v298, 7
      %v301 = vshll.u32 %v232, 16
      %v303 = vor.u32 %v300, %v301
      %v304 = vrot.slane %v300, 4
      %v306 = vshrl.u32 %v233, 16
      %v308 = vrot.slane %v306, 7
      %v309 = vshll.u32 %v233, 16
      %v311 = vor.u32 %v308, %v309
      %v312 = vsel %vm262, %v304, %v311
      %v313 = vrot.slane %v308, 4
      %v315 = vshrl.u32 %v234, 16
      %v317 = vrot.slane %v315, 7
      %v318 = vshll.u32 %v234, 16
      %v320 = vor.u32 %v317, %v318
      %v321 = vrot.slane %v317, 4
      %v323 = vshrl.u32 %v235, 16
      %v325 = vrot.slane %v323, 7
      %v326 = vshll.u32 %v235, 16
      %v328 = vor.u32 %v325, %v326
      %v329 = vsel %vm262, %v321, %v328
      %v330 = vrot.slane %v325, 4
      %v332 = vshrl.u32 %v236, 16
      %v334 = vrot.slane %v332, 7
      %v335 = vshll.u32 %v236, 16
      %v337 = vor.u32 %v334, %v335
      %v338 = vrot.slane %v334, 4
      %v340 = vshrl.u32 %v237, 16
      %v342 = vrot.slane %v340, 7
      %v343 = vshll.u32 %v237, 16
      %v345 = vor.u32 %v342, %v343
      %v346 = vsel %vm262, %v338, %v345
      %v347 = vrot.slane %v342, 4
      %v349 = vshrl.u32 %v238, 16
      %v351 = vrot.slane %v349, 7
      %v352 = vshll.u32 %v238, 16
      %v354 = vor.u32 %v351, %v352
      %v355 = vrot.slane %v351, 4
      %v357 = vshrl.u32 %v239, 16
      %v359 = vrot.slane %v357, 7
      %v360 = vshll.u32 %v239, 16
      %v362 = vor.u32 %v359, %v360
      %v363 = vsel %vm262, %v355, %v362
      %v364 = vrot.slane %v359, 4
      %v366 = vshrl.u32 %v240, 16
      %v368 = vrot.slane %v366, 7
      %v369 = vshll.u32 %v240, 16
      %v371 = vor.u32 %v368, %v369
      %v372 = vrot.slane %v368, 4
      %v374 = vshrl.u32 %v241, 16
      %v376 = vrot.slane %v374, 7
      %v377 = vshll.u32 %v241, 16
      %v379 = vor.u32 %v376, %v377
      %v380 = vsel %vm262, %v372, %v379
      %v381 = vrot.slane %v376, 4
      %v383 = vshrl.u32 %v242, 16
      %v385 = vrot.slane %v383, 7
      %v386 = vshll.u32 %v242, 16
      %v388 = vor.u32 %v385, %v386
      %v389 = vrot.slane %v385, 4
      %v391 = vshrl.u32 %v243, 16
      %v393 = vrot.slane %v391, 7
      %v394 = vshll.u32 %v243, 16
      %v396 = vor.u32 %v393, %v394
      %v397 = vsel %vm262, %v389, %v396
      %v398 = vrot.slane %v393, 4
      %v400 = vshrl.u32 %v244, 16
      %v402 = vrot.slane %v400, 7
      %v403 = vshll.u32 %v244, 16
      %v405 = vor.u32 %v402, %v403
      %v406 = vrot.slane %v402, 4
      %v408 = vshrl.u32 %v245, 16
      %v410 = vrot.slane %v408, 7
      %v411 = vshll.u32 %v245, 16
      %v413 = vor.u32 %v410, %v411
      %v414 = vsel %vm262, %v406, %v413
      %v415 = vrot.slane %v410, 4
      %v417 = vshrl.u32 %v246, 16
      %v419 = vrot.slane %v417, 7
      %v420 = vshll.u32 %v246, 16
      %v422 = vor.u32 %v419, %v420
      %v423 = vrot.slane %v419, 4
      %v425 = vshrl.u32 %v247, 16
      %v427 = vrot.slane %v425, 7
      %v428 = vshll.u32 %v247, 16
      %v430 = vor.u32 %v427, %v428
      %v431 = vsel %vm262, %v423, %v430
      %v432 = vrot.slane %v427, 4
      %v434 = vshrl.u32 %v248, 16
      %v436 = vrot.slane %v434, 7
      %v437 = vshll.u32 %v248, 16
      %v439 = vor.u32 %v436, %v437
      %v440 = vrot.slane %v436, 4
      %v442 = vshrl.u32 %v249, 16
      %v444 = vrot.slane %v442, 7
      %v445 = vshll.u32 %v249, 16
      %v447 = vor.u32 %v444, %v445
      %v448 = vsel %vm262, %v440, %v447
      %v449 = vrot.slane %v444, 4
      %v451 = vshrl.u32 %v250, 16
      %v453 = vrot.slane %v451, 7
      %v454 = vshll.u32 %v250, 16
      %v456 = vor.u32 %v453, %v454
      %v457 = vrot.slane %v453, 4
      %v459 = vshrl.u32 %v251, 16
      %v461 = vrot.slane %v459, 7
      %v462 = vshll.u32 %v251, 16
      %v464 = vor.u32 %v461, %v462
      %v465 = vsel %vm262, %v457, %v464
      %v466 = vrot.slane %v461, 4
      %v468 = vshrl.u32 %v252, 16
      %v470 = vrot.slane %v468, 7
      %v471 = vshll.u32 %v252, 16
      %v473 = vor.u32 %v470, %v471
      %v474 = vrot.slane %v470, 4
      %v476 = vshrl.u32 %v253, 16
      %v478 = vrot.slane %v476, 7
      %v479 = vshll.u32 %v253, 16
      %v481 = vor.u32 %v478, %v479
      %v482 = vsel %vm262, %v474, %v481
      %v483 = vrot.slane %v478, 4
      %v485 = vshrl.u32 %v254, 16
      %v487 = vrot.slane %v485, 7
      %v488 = vshll.u32 %v254, 16
      %v490 = vor.u32 %v487, %v488
      %v491 = vrot.slane %v487, 4
      %v493 = vshrl.u32 %v255, 16
      %v495 = vrot.slane %v493, 7
      %v496 = vshll.u32 %v255, 16
      %v498 = vor.u32 %v495, %v496
      %v499 = vsel %vm262, %v491, %v498
      %v500 = vrot.slane %v495, 4
      %v502 = vshrl.u32 %v256, 16
      %v504 = vrot.slane %v502, 7
      %v505 = vshll.u32 %v256, 16
      %v507 = vor.u32 %v504, %v505
      %v508 = vrot.slane %v504, 4
      %v510 = vshrl.u32 %v257, 16
      %v512 = vrot.slane %v510, 7
      %v513 = vshll.u32 %v257, 16
      %v515 = vor.u32 %v512, %v513
      %v516 = vsel %vm262, %v508, %v515
      %v517 = vrot.slane %v512, 4
      %v519 = vshrl.u32 %v258, 16
      %v521 = vrot.slane %v519, 7
      %v522 = vshll.u32 %v258, 16
      %v524 = vor.u32 %v521, %v522
      %v525 = vrot.slane %v521, 4
      %v527 = vshrl.u32 %v259, 16
      %v529 = vrot.slane %v527, 7
      %v530 = vshll.u32 %v259, 16
      %v532 = vor.u32 %v529, %v530
      %v533 = vsel %vm262, %v525, %v532
      %v534 = vrot.slane %v529, 4
      %s583 = scalar_lea.vmem [#allocation2], 12
      %vm584 = vcmask 27648
      %vm585 = vsmask.f32 7938
      %vm586 = vmand %vm584, %vm585
      %v587 = vld [vmem:[%s583] sm:$0xf]
      %v588 = vsel %vm586, %v269, %v587
      %589 = vst [vmem:[%s583] sm:$0xf] %v588
      %590 = vst.msk [vmem:[%s583 + $0x4] sm:$0xf] %vm172, %v278
      %vm591 = vcmask 24576
      %vm592 = vmand %vm591, %vm260
      %v593 = vld [vmem:[%s583 + $0x8] sm:$0x1]
      %v594 = vsel %vm592, %v279, %v593
      %595 = vst [vmem:[%s583 + $0x8] sm:$0x1] %v594
      %v596 = vld [vmem:[%s583 + $0xc] sm:$0xf]
      %v597 = vsel %vm586, %v286, %v596
      %598 = vst [vmem:[%s583 + $0xc] sm:$0xf] %v597
      %599 = vst.msk [vmem:[%s583 + $0x10] sm:$0xf] %vm172, %v295
      %v600 = vld [vmem:[%s583 + $0x14] sm:$0x1]
      %v601 = vsel %vm592, %v296, %v600
      %602 = vst [vmem:[%s583 + $0x14] sm:$0x1] %v601
      %v603 = vld [vmem:[%s583 + $0x18] sm:$0xf]
      %v604 = vsel %vm586, %v303, %v603
      %605 = vst [vmem:[%s583 + $0x18] sm:$0xf] %v604
      %606 = vst.msk [vmem:[%s583 + $0x1c] sm:$0xf] %vm172, %v312
      %v607 = vld [vmem:[%s583 + $0x20] sm:$0x1]
      %v608 = vsel %vm592, %v313, %v607
      %609 = vst [vmem:[%s583 + $0x20] sm:$0x1] %v608
      %v610 = vld [vmem:[%s583 + $0x24] sm:$0xf]
      %v611 = vsel %vm586, %v320, %v610
      %612 = vst [vmem:[%s583 + $0x24] sm:$0xf] %v611
      %613 = vst.msk [vmem:[%s583 + $0x28] sm:$0xf] %vm172, %v329
      %v614 = vld [vmem:[%s583 + $0x2c] sm:$0x1]
      %v615 = vsel %vm592, %v330, %v614
      %616 = vst [vmem:[%s583 + $0x2c] sm:$0x1] %v615
      %v617 = vld [vmem:[%s583 + $0x30] sm:$0xf]
      %v618 = vsel %vm586, %v337, %v617
      %619 = vst [vmem:[%s583 + $0x30] sm:$0xf] %v618
      %620 = vst.msk [vmem:[%s583 + $0x34] sm:$0xf] %vm172, %v346
      %v621 = vld [vmem:[%s583 + $0x38] sm:$0x1]
      %v622 = vsel %vm592, %v347, %v621
      %623 = vst [vmem:[%s583 + $0x38] sm:$0x1] %v622
      %v624 = vld [vmem:[%s583 + $0x3c] sm:$0xf]
      %v625 = vsel %vm586, %v354, %v624
      %626 = vst [vmem:[%s583 + $0x3c] sm:$0xf] %v625
      %627 = vst.msk [vmem:[%s583 + $0x40] sm:$0xf] %vm172, %v363
      %v628 = vld [vmem:[%s583 + $0x44] sm:$0x1]
      %v629 = vsel %vm592, %v364, %v628
      %630 = vst [vmem:[%s583 + $0x44] sm:$0x1] %v629
      %v631 = vld [vmem:[%s583 + $0x48] sm:$0xf]
      %v632 = vsel %vm586, %v371, %v631
      %633 = vst [vmem:[%s583 + $0x48] sm:$0xf] %v632
      %634 = vst.msk [vmem:[%s583 + $0x4c] sm:$0xf] %vm172, %v380
      %v635 = vld [vmem:[%s583 + $0x50] sm:$0x1]
      %v636 = vsel %vm592, %v381, %v635
      %637 = vst [vmem:[%s583 + $0x50] sm:$0x1] %v636
      %v638 = vld [vmem:[%s583 + $0x54] sm:$0xf]
      %v639 = vsel %vm586, %v388, %v638
      %640 = vst [vmem:[%s583 + $0x54] sm:$0xf] %v639
      %641 = vst.msk [vmem:[%s583 + $0x58] sm:$0xf] %vm172, %v397
      %v642 = vld [vmem:[%s583 + $0x5c] sm:$0x1]
      %v643 = vsel %vm592, %v398, %v642
      %644 = vst [vmem:[%s583 + $0x5c] sm:$0x1] %v643
      %v645 = vld [vmem:[%s583 + $0x60] sm:$0xf]
      %v646 = vsel %vm586, %v405, %v645
      %647 = vst [vmem:[%s583 + $0x60] sm:$0xf] %v646
      %648 = vst.msk [vmem:[%s583 + $0x64] sm:$0xf] %vm172, %v414
      %v649 = vld [vmem:[%s583 + $0x68] sm:$0x1]
      %v650 = vsel %vm592, %v415, %v649
      %651 = vst [vmem:[%s583 + $0x68] sm:$0x1] %v650
      %v652 = vld [vmem:[%s583 + $0x6c] sm:$0xf]
      %v653 = vsel %vm586, %v422, %v652
      %654 = vst [vmem:[%s583 + $0x6c] sm:$0xf] %v653
      %655 = vst.msk [vmem:[%s583 + $0x70] sm:$0xf] %vm172, %v431
      %v656 = vld [vmem:[%s583 + $0x74] sm:$0x1]
      %v657 = vsel %vm592, %v432, %v656
      %658 = vst [vmem:[%s583 + $0x74] sm:$0x1] %v657
      %v659 = vld [vmem:[%s583 + $0x78] sm:$0xf]
      %v660 = vsel %vm586, %v439, %v659
      %661 = vst [vmem:[%s583 + $0x78] sm:$0xf] %v660
      %662 = vst.msk [vmem:[%s583 + $0x7c] sm:$0xf] %vm172, %v448
      %v663 = vld [vmem:[%s583 + $0x80] sm:$0x1]
      %v664 = vsel %vm592, %v449, %v663
      %665 = vst [vmem:[%s583 + $0x80] sm:$0x1] %v664
      %v666 = vld [vmem:[%s583 + $0x84] sm:$0xf]
      %v667 = vsel %vm586, %v456, %v666
      %668 = vst [vmem:[%s583 + $0x84] sm:$0xf] %v667
      %669 = vst.msk [vmem:[%s583 + $0x88] sm:$0xf] %vm172, %v465
      %v670 = vld [vmem:[%s583 + $0x8c] sm:$0x1]
      %v671 = vsel %vm592, %v466, %v670
      %672 = vst [vmem:[%s583 + $0x8c] sm:$0x1] %v671
      %v673 = vld [vmem:[%s583 + $0x90] sm:$0xf]
      %v674 = vsel %vm586, %v473, %v673
      %675 = vst [vmem:[%s583 + $0x90] sm:$0xf] %v674
      %676 = vst.msk [vmem:[%s583 + $0x94] sm:$0xf] %vm172, %v482
      %v677 = vld [vmem:[%s583 + $0x98] sm:$0x1]
      %v678 = vsel %vm592, %v483, %v677
      %679 = vst [vmem:[%s583 + $0x98] sm:$0x1] %v678
      %v680 = vld [vmem:[%s583 + $0x9c] sm:$0xf]
      %v681 = vsel %vm586, %v490, %v680
      %682 = vst [vmem:[%s583 + $0x9c] sm:$0xf] %v681
      %683 = vst.msk [vmem:[%s583 + $0xa0] sm:$0xf] %vm172, %v499
      %v684 = vld [vmem:[%s583 + $0xa4] sm:$0x1]
      %v685 = vsel %vm592, %v500, %v684
      %686 = vst [vmem:[%s583 + $0xa4] sm:$0x1] %v685
      %v687 = vld [vmem:[%s583 + $0xa8] sm:$0xf]
      %v688 = vsel %vm586, %v507, %v687
      %689 = vst [vmem:[%s583 + $0xa8] sm:$0xf] %v688
      %690 = vst.msk [vmem:[%s583 + $0xac] sm:$0xf] %vm172, %v516
      %v691 = vld [vmem:[%s583 + $0xb0] sm:$0x1]
      %v692 = vsel %vm592, %v517, %v691
      %693 = vst [vmem:[%s583 + $0xb0] sm:$0x1] %v692
      %v694 = vld [vmem:[%s583 + $0xb4] sm:$0xf]
      %v695 = vsel %vm586, %v524, %v694
      %696 = vst [vmem:[%s583 + $0xb4] sm:$0xf] %v695
      %697 = vst.msk [vmem:[%s583 + $0xb8] sm:$0xf] %vm172, %v533
      %v698 = vld [vmem:[%s583 + $0xbc] sm:$0x1]
      %v699 = vsel %vm592, %v534, %v698
      %700 = vst [vmem:[%s583 + $0xbc] sm:$0x1] %v699
      %v701 = vld [vmem:[#allocation2] sm:$0xf]
      %v702 = vld [vmem:[#allocation2 + $0x4] sm:$0xf]
      %v703 = vld [vmem:[#allocation2 + $0xc] sm:$0xf]
      %v704 = vld [vmem:[#allocation2 + $0x10] sm:$0xf]
      %v705 = vld [vmem:[#allocation2 + $0x18] sm:$0xf]
      %v706 = vld [vmem:[#allocation2 + $0x1c] sm:$0xf]
      %v707 = vld [vmem:[#allocation2 + $0x24] sm:$0xf]
      %v708 = vld [vmem:[#allocation2 + $0x28] sm:$0xf]
      %v709 = vld [vmem:[#allocation2 + $0x30] sm:$0xf]
      %v710 = vld [vmem:[#allocation2 + $0x34] sm:$0xf]
      %v711 = vld [vmem:[#allocation2 + $0x3c] sm:$0xf]
      %v712 = vld [vmem:[#allocation2 + $0x40] sm:$0xf]
      %v713 = vld [vmem:[#allocation2 + $0x48] sm:$0xf]
      %v714 = vld [vmem:[#allocation2 + $0x4c] sm:$0xf]
      %v715 = vld [vmem:[#allocation2 + $0x54] sm:$0xf]
      %v716 = vld [vmem:[#allocation2 + $0x58] sm:$0xf]
      %v717 = vld [vmem:[#allocation2 + $0x60] sm:$0xf]
      %v718 = vld [vmem:[#allocation2 + $0x64] sm:$0xf]
      %v719 = vld [vmem:[#allocation2 + $0x6c] sm:$0xf]
      %v720 = vld [vmem:[#allocation2 + $0x70] sm:$0xf]
      %v721 = vld [vmem:[#allocation2 + $0x78] sm:$0xf]
      %v722 = vld [vmem:[#allocation2 + $0x7c] sm:$0xf]
      %v723 = vld [vmem:[#allocation2 + $0x84] sm:$0xf]
      %v724 = vld [vmem:[#allocation2 + $0x88] sm:$0xf]
      %v725 = vld [vmem:[#allocation2 + $0x90] sm:$0xf]
      %v726 = vld [vmem:[#allocation2 + $0x94] sm:$0xf]
      %v727 = vld [vmem:[#allocation2 + $0x9c] sm:$0xf]
      %v728 = vld [vmem:[#allocation2 + $0xa0] sm:$0xf]
      %v729 = vld [vmem:[#allocation2 + $0xa8] sm:$0xf]
      %v730 = vld [vmem:[#allocation2 + $0xac] sm:$0xf]
      %v731 = vld [vmem:[#allocation2 + $0xb4] sm:$0xf]
      %v732 = vld [vmem:[#allocation2 + $0xb8] sm:$0xf]
      %v733 = vld [vmem:[#allocation2 + $0x8] sm:$0x1]
      %v734 = vld [vmem:[#allocation2 + $0x14] sm:$0x1]
      %v735 = vld [vmem:[#allocation2 + $0x20] sm:$0x1]
      %v736 = vld [vmem:[#allocation2 + $0x2c] sm:$0x1]
      %v737 = vld [vmem:[#allocation2 + $0x38] sm:$0x1]
      %v738 = vld [vmem:[#allocation2 + $0x44] sm:$0x1]
      %v739 = vld [vmem:[#allocation2 + $0x50] sm:$0x1]
      %v740 = vld [vmem:[#allocation2 + $0x5c] sm:$0x1]
      %v741 = vld [vmem:[#allocation2 + $0x68] sm:$0x1]
      %v742 = vld [vmem:[#allocation2 + $0x74] sm:$0x1]
      %v743 = vld [vmem:[#allocation2 + $0x80] sm:$0x1]
      %v744 = vld [vmem:[#allocation2 + $0x8c] sm:$0x1]
      %v745 = vld [vmem:[#allocation2 + $0x98] sm:$0x1]
      %v746 = vld [vmem:[#allocation2 + $0xa4] sm:$0x1]
      %v747 = vld [vmem:[#allocation2 + $0xb0] sm:$0x1]
      %v748 = vld [vmem:[#allocation2 + $0xbc] sm:$0x1]
      %v749 = vld [vmem:[#allocation2] sm:$0xe]
      %v750 = vld [vmem:[#allocation2 + $0xc] sm:$0xe]
      %v751 = vld [vmem:[#allocation2 + $0x18] sm:$0xe]
      %v752 = vld [vmem:[#allocation2 + $0x24] sm:$0xe]
      %v753 = vld [vmem:[#allocation2 + $0x30] sm:$0xe]
      %v754 = vld [vmem:[#allocation2 + $0x3c] sm:$0xe]
      %v755 = vld [vmem:[#allocation2 + $0x48] sm:$0xe]
      %v756 = vld [vmem:[#allocation2 + $0x54] sm:$0xe]
      %v757 = vld [vmem:[#allocation2 + $0x60] sm:$0xe]
      %v758 = vld [vmem:[#allocation2 + $0x6c] sm:$0xe]
      %v759 = vld [vmem:[#allocation2 + $0x78] sm:$0xe]
      %v760 = vld [vmem:[#allocation2 + $0x84] sm:$0xe]
      %v761 = vld [vmem:[#allocation2 + $0x90] sm:$0xe]
      %v762 = vld [vmem:[#allocation2 + $0x9c] sm:$0xe]
      %v763 = vld [vmem:[#allocation2 + $0xa8] sm:$0xe]
      %v764 = vld [vmem:[#allocation2 + $0xb4] sm:$0xe]
      %v797 = vunpack.c.l.b16 %v701
      %v798 = vunpack.c.l.b16 %v702
      %v799 = vunpack.c.l.b16 %v703
      %v800 = vunpack.c.l.b16 %v704
      %v801 = vunpack.c.l.b16 %v705
      %v802 = vunpack.c.l.b16 %v706
      %v803 = vunpack.c.l.b16 %v707
      %v804 = vunpack.c.l.b16 %v708
      %v805 = vunpack.c.l.b16 %v709
      %v806 = vunpack.c.l.b16 %v710
      %v807 = vunpack.c.l.b16 %v711
      %v808 = vunpack.c.l.b16 %v712
      %v809 = vunpack.c.l.b16 %v713
      %v810 = vunpack.c.l.b16 %v714
      %v811 = vunpack.c.l.b16 %v715
      %v812 = vunpack.c.l.b16 %v716
      %v813 = vunpack.c.l.b16 %v717
      %v814 = vunpack.c.l.b16 %v718
      %v815 = vunpack.c.l.b16 %v719
      %v816 = vunpack.c.l.b16 %v720
      %v817 = vunpack.c.l.b16 %v721
      %v818 = vunpack.c.l.b16 %v722
      %v819 = vunpack.c.l.b16 %v723
      %v820 = vunpack.c.l.b16 %v724
      %v821 = vunpack.c.l.b16 %v725
      %v822 = vunpack.c.l.b16 %v726
      %v823 = vunpack.c.l.b16 %v727
      %v824 = vunpack.c.l.b16 %v728
      %v825 = vunpack.c.l.b16 %v729
      %v826 = vunpack.c.l.b16 %v730
      %v827 = vunpack.c.l.b16 %v731
      %v828 = vunpack.c.l.b16 %v732
      %v829 = vpack.c.b16 %v798, %v797
      %v830 = vpack.c.b16 %v800, %v799
      %v831 = vpack.c.b16 %v802, %v801
      %v832 = vpack.c.b16 %v804, %v803
      %v833 = vpack.c.b16 %v806, %v805
      %v834 = vpack.c.b16 %v808, %v807
      %v835 = vpack.c.b16 %v810, %v809
      %v836 = vpack.c.b16 %v812, %v811
      %v837 = vpack.c.b16 %v814, %v813
      %v838 = vpack.c.b16 %v816, %v815
      %v839 = vpack.c.b16 %v818, %v817
      %v840 = vpack.c.b16 %v820, %v819
      %v841 = vpack.c.b16 %v822, %v821
      %v842 = vpack.c.b16 %v824, %v823
      %v843 = vpack.c.b16 %v826, %v825
      %v844 = vpack.c.b16 %v828, %v827
      %v861 = vunpack.c.l.b16 %v733
      %v862 = vunpack.c.l.b16 %v734
      %v863 = vunpack.c.l.b16 %v735
      %v864 = vunpack.c.l.b16 %v736
      %v865 = vunpack.c.l.b16 %v737
      %v866 = vunpack.c.l.b16 %v738
      %v867 = vunpack.c.l.b16 %v739
      %v868 = vunpack.c.l.b16 %v740
      %v869 = vunpack.c.l.b16 %v741
      %v870 = vunpack.c.l.b16 %v742
      %v871 = vunpack.c.l.b16 %v743
      %v872 = vunpack.c.l.b16 %v744
      %v873 = vunpack.c.l.b16 %v745
      %v874 = vunpack.c.l.b16 %v746
      %v875 = vunpack.c.l.b16 %v747
      %v876 = vunpack.c.l.b16 %v748
      %v877 = vpack.c.b16 %v861, %v861
      %v878 = vpack.c.b16 %v862, %v862
      %v879 = vpack.c.b16 %v863, %v863
      %v880 = vpack.c.b16 %v864, %v864
      %v881 = vpack.c.b16 %v865, %v865
      %v882 = vpack.c.b16 %v866, %v866
      %v883 = vpack.c.b16 %v867, %v867
      %v884 = vpack.c.b16 %v868, %v868
      %v885 = vpack.c.b16 %v869, %v869
      %v886 = vpack.c.b16 %v870, %v870
      %v887 = vpack.c.b16 %v871, %v871
      %v888 = vpack.c.b16 %v872, %v872
      %v889 = vpack.c.b16 %v873, %v873
      %v890 = vpack.c.b16 %v874, %v874
      %v891 = vpack.c.b16 %v875, %v875
      %v892 = vpack.c.b16 %v876, %v876
      %vm893 = vsmask.f32 7424
      %v895 = vshrl.u32 %v829, 16
      %v897 = vshll.u32 %v829, 16
      %v899 = vrot.slane %v897, 1
      %v900 = vor.u32 %v895, %v899
      %v902 = vshll.u32 %v877, 16
      %v904 = vrot.slane %v902, 1
      %v905 = vsel %vm893, %v900, %v904
      %v907 = vshrl.u32 %v830, 16
      %v909 = vshll.u32 %v830, 16
      %v911 = vrot.slane %v909, 1
      %v912 = vor.u32 %v907, %v911
      %v914 = vshll.u32 %v878, 16
      %v916 = vrot.slane %v914, 1
      %v917 = vsel %vm893, %v912, %v916
      %v919 = vshrl.u32 %v831, 16
      %v921 = vshll.u32 %v831, 16
      %v923 = vrot.slane %v921, 1
      %v924 = vor.u32 %v919, %v923
      %v926 = vshll.u32 %v879, 16
      %v928 = vrot.slane %v926, 1
      %v929 = vsel %vm893, %v924, %v928
      %v931 = vshrl.u32 %v832, 16
      %v933 = vshll.u32 %v832, 16
      %v935 = vrot.slane %v933, 1
      %v936 = vor.u32 %v931, %v935
      %v938 = vshll.u32 %v880, 16
      %v940 = vrot.slane %v938, 1
      %v941 = vsel %vm893, %v936, %v940
      %v943 = vshrl.u32 %v833, 16
      %v945 = vshll.u32 %v833, 16
      %v947 = vrot.slane %v945, 1
      %v948 = vor.u32 %v943, %v947
      %v950 = vshll.u32 %v881, 16
      %v952 = vrot.slane %v950, 1
      %v953 = vsel %vm893, %v948, %v952
      %v955 = vshrl.u32 %v834, 16
      %v957 = vshll.u32 %v834, 16
      %v959 = vrot.slane %v957, 1
      %v960 = vor.u32 %v955, %v959
      %v962 = vshll.u32 %v882, 16
      %v964 = vrot.slane %v962, 1
      %v965 = vsel %vm893, %v960, %v964
      %v967 = vshrl.u32 %v835, 16
      %v969 = vshll.u32 %v835, 16
      %v971 = vrot.slane %v969, 1
      %v972 = vor.u32 %v967, %v971
      %v974 = vshll.u32 %v883, 16
      %v976 = vrot.slane %v974, 1
      %v977 = vsel %vm893, %v972, %v976
      %v979 = vshrl.u32 %v836, 16
      %v981 = vshll.u32 %v836, 16
      %v983 = vrot.slane %v981, 1
      %v984 = vor.u32 %v979, %v983
      %v986 = vshll.u32 %v884, 16
      %v988 = vrot.slane %v986, 1
      %v989 = vsel %vm893, %v984, %v988
      %v991 = vshrl.u32 %v837, 16
      %v993 = vshll.u32 %v837, 16
      %v995 = vrot.slane %v993, 1
      %v996 = vor.u32 %v991, %v995
      %v998 = vshll.u32 %v885, 16
      %v1000 = vrot.slane %v998, 1
      %v1001 = vsel %vm893, %v996, %v1000
      %v1003 = vshrl.u32 %v838, 16
      %v1005 = vshll.u32 %v838, 16
      %v1007 = vrot.slane %v1005, 1
      %v1008 = vor.u32 %v1003, %v1007
      %v1010 = vshll.u32 %v886, 16
      %v1012 = vrot.slane %v1010, 1
      %v1013 = vsel %vm893, %v1008, %v1012
      %v1015 = vshrl.u32 %v839, 16
      %v1017 = vshll.u32 %v839, 16
      %v1019 = vrot.slane %v1017, 1
      %v1020 = vor.u32 %v1015, %v1019
      %v1022 = vshll.u32 %v887, 16
      %v1024 = vrot.slane %v1022, 1
      %v1025 = vsel %vm893, %v1020, %v1024
      %v1027 = vshrl.u32 %v840, 16
      %v1029 = vshll.u32 %v840, 16
      %v1031 = vrot.slane %v1029, 1
      %v1032 = vor.u32 %v1027, %v1031
      %v1034 = vshll.u32 %v888, 16
      %v1036 = vrot.slane %v1034, 1
      %v1037 = vsel %vm893, %v1032, %v1036
      %v1039 = vshrl.u32 %v841, 16
      %v1041 = vshll.u32 %v841, 16
      %v1043 = vrot.slane %v1041, 1
      %v1044 = vor.u32 %v1039, %v1043
      %v1046 = vshll.u32 %v889, 16
      %v1048 = vrot.slane %v1046, 1
      %v1049 = vsel %vm893, %v1044, %v1048
      %v1051 = vshrl.u32 %v842, 16
      %v1053 = vshll.u32 %v842, 16
      %v1055 = vrot.slane %v1053, 1
      %v1056 = vor.u32 %v1051, %v1055
      %v1058 = vshll.u32 %v890, 16
      %v1060 = vrot.slane %v1058, 1
      %v1061 = vsel %vm893, %v1056, %v1060
      %v1063 = vshrl.u32 %v843, 16
      %v1065 = vshll.u32 %v843, 16
      %v1067 = vrot.slane %v1065, 1
      %v1068 = vor.u32 %v1063, %v1067
      %v1070 = vshll.u32 %v891, 16
      %v1072 = vrot.slane %v1070, 1
      %v1073 = vsel %vm893, %v1068, %v1072
      %v1075 = vshrl.u32 %v844, 16
      %v1077 = vshll.u32 %v844, 16
      %v1079 = vrot.slane %v1077, 1
      %v1080 = vor.u32 %v1075, %v1079
      %v1082 = vshll.u32 %v892, 16
      %v1084 = vrot.slane %v1082, 1
      %v1085 = vsel %vm893, %v1080, %v1084
      %1086 = vrot.lane.b32.xlu0 %v905, 4
      %v1087 = vpop.permute.xlu0 %1086
      %1088 = vrot.lane.b32.xlu0 %v917, 4
      %v1089 = vpop.permute.xlu0 %1088
      %1090 = vrot.lane.b32.xlu0 %v929, 4
      %v1091 = vpop.permute.xlu0 %1090
      %1092 = vrot.lane.b32.xlu0 %v941, 4
      %v1093 = vpop.permute.xlu0 %1092
      %1094 = vrot.lane.b32.xlu0 %v953, 4
      %v1095 = vpop.permute.xlu0 %1094
      %1096 = vrot.lane.b32.xlu0 %v965, 4
      %v1097 = vpop.permute.xlu0 %1096
      %1098 = vrot.lane.b32.xlu0 %v977, 4
      %v1099 = vpop.permute.xlu0 %1098
      %1100 = vrot.lane.b32.xlu0 %v989, 4
      %v1101 = vpop.permute.xlu0 %1100
      %1102 = vrot.lane.b32.xlu0 %v1001, 4
      %v1103 = vpop.permute.xlu0 %1102
      %1104 = vrot.lane.b32.xlu0 %v1013, 4
      %v1105 = vpop.permute.xlu0 %1104
      %1106 = vrot.lane.b32.xlu0 %v1025, 4
      %v1107 = vpop.permute.xlu0 %1106
      %1108 = vrot.lane.b32.xlu0 %v1037, 4
      %v1109 = vpop.permute.xlu0 %1108
      %1110 = vrot.lane.b32.xlu0 %v1049, 4
      %v1111 = vpop.permute.xlu0 %1110
      %1112 = vrot.lane.b32.xlu0 %v1061, 4
      %v1113 = vpop.permute.xlu0 %1112
      %1114 = vrot.lane.b32.xlu0 %v1073, 4
      %v1115 = vpop.permute.xlu0 %1114
      %1116 = vrot.lane.b32.xlu0 %v1085, 4
      %v1117 = vpop.permute.xlu0 %1116
      %v1134 = vunpack.c.l.b16 %v749
      %v1135 = vunpack.c.l.b16 %v750
      %v1136 = vunpack.c.l.b16 %v751
      %v1137 = vunpack.c.l.b16 %v752
      %v1138 = vunpack.c.l.b16 %v753
      %v1139 = vunpack.c.l.b16 %v754
      %v1140 = vunpack.c.l.b16 %v755
      %v1141 = vunpack.c.l.b16 %v756
      %v1142 = vunpack.c.l.b16 %v757
      %v1143 = vunpack.c.l.b16 %v758
      %v1144 = vunpack.c.l.b16 %v759
      %v1145 = vunpack.c.l.b16 %v760
      %v1146 = vunpack.c.l.b16 %v761
      %v1147 = vunpack.c.l.b16 %v762
      %v1148 = vunpack.c.l.b16 %v763
      %v1149 = vunpack.c.l.b16 %v764
      %v1150 = vpack.c.b16 %v798, %v1134
      %v1151 = vpack.c.b16 %v800, %v1135
      %v1152 = vpack.c.b16 %v802, %v1136
      %v1153 = vpack.c.b16 %v804, %v1137
      %v1154 = vpack.c.b16 %v806, %v1138
      %v1155 = vpack.c.b16 %v808, %v1139
      %v1156 = vpack.c.b16 %v810, %v1140
      %v1157 = vpack.c.b16 %v812, %v1141
      %v1158 = vpack.c.b16 %v814, %v1142
      %v1159 = vpack.c.b16 %v816, %v1143
      %v1160 = vpack.c.b16 %v818, %v1144
      %v1161 = vpack.c.b16 %v820, %v1145
      %v1162 = vpack.c.b16 %v822, %v1146
      %v1163 = vpack.c.b16 %v824, %v1147
      %v1164 = vpack.c.b16 %v826, %v1148
      %v1165 = vpack.c.b16 %v828, %v1149
      %vm1166 = vcmask 1046528
      %v1167 = vrot.slane %v1150, 1
      %v1168 = vrot.slane %v877, 1
      %v1169 = vsel %vm1166, %v1167, %v1168
      %v1170 = vrot.slane %v1151, 1
      %v1171 = vrot.slane %v878, 1
      %v1172 = vsel %vm1166, %v1170, %v1171
      %v1173 = vrot.slane %v1152, 1
      %v1174 = vrot.slane %v879, 1
      %v1175 = vsel %vm1166, %v1173, %v1174
      %v1176 = vrot.slane %v1153, 1
      %v1177 = vrot.slane %v880, 1
      %v1178 = vsel %vm1166, %v1176, %v1177
      %v1179 = vrot.slane %v1154, 1
      %v1180 = vrot.slane %v881, 1
      %v1181 = vsel %vm1166, %v1179, %v1180
      %v1182 = vrot.slane %v1155, 1
      %v1183 = vrot.slane %v882, 1
      %v1184 = vsel %vm1166, %v1182, %v1183
      %v1185 = vrot.slane %v1156, 1
      %v1186 = vrot.slane %v883, 1
      %v1187 = vsel %vm1166, %v1185, %v1186
      %v1188 = vrot.slane %v1157, 1
      %v1189 = vrot.slane %v884, 1
      %v1190 = vsel %vm1166, %v1188, %v1189
      %v1191 = vrot.slane %v1158, 1
      %v1192 = vrot.slane %v885, 1
      %v1193 = vsel %vm1166, %v1191, %v1192
      %v1194 = vrot.slane %v1159, 1
      %v1195 = vrot.slane %v886, 1
      %v1196 = vsel %vm1166, %v1194, %v1195
      %v1197 = vrot.slane %v1160, 1
      %v1198 = vrot.slane %v887, 1
      %v1199 = vsel %vm1166, %v1197, %v1198
      %v1200 = vrot.slane %v1161, 1
      %v1201 = vrot.slane %v888, 1
      %v1202 = vsel %vm1166, %v1200, %v1201
      %v1203 = vrot.slane %v1162, 1
      %v1204 = vrot.slane %v889, 1
      %v1205 = vsel %vm1166, %v1203, %v1204
      %v1206 = vrot.slane %v1163, 1
      %v1207 = vrot.slane %v890, 1
      %v1208 = vsel %vm1166, %v1206, %v1207
      %v1209 = vrot.slane %v1164, 1
      %v1210 = vrot.slane %v891, 1
      %v1211 = vsel %vm1166, %v1209, %v1210
      %v1212 = vrot.slane %v1165, 1
      %v1213 = vrot.slane %v892, 1
      %v1214 = vsel %vm1166, %v1212, %v1213
      %1215 = vrot.lane.b32.xlu0 %v1169, 8
      %v1216 = vpop.permute.xlu0 %1215
      %1217 = vrot.lane.b32.xlu0 %v1172, 8
      %v1218 = vpop.permute.xlu0 %1217
      %1219 = vrot.lane.b32.xlu0 %v1175, 8
      %v1220 = vpop.permute.xlu0 %1219
      %1221 = vrot.lane.b32.xlu0 %v1178, 8
      %v1222 = vpop.permute.xlu0 %1221
      %1223 = vrot.lane.b32.xlu0 %v1181, 8
      %v1224 = vpop.permute.xlu0 %1223
      %1225 = vrot.lane.b32.xlu0 %v1184, 8
      %v1226 = vpop.permute.xlu0 %1225
      %1227 = vrot.lane.b32.xlu0 %v1187, 8
      %v1228 = vpop.permute.xlu0 %1227
      %1229 = vrot.lane.b32.xlu0 %v1190, 8
      %v1230 = vpop.permute.xlu0 %1229
      %1231 = vrot.lane.b32.xlu0 %v1193, 8
      %v1232 = vpop.permute.xlu0 %1231
      %1233 = vrot.lane.b32.xlu0 %v1196, 8
      %v1234 = vpop.permute.xlu0 %1233
      %1235 = vrot.lane.b32.xlu0 %v1199, 8
      %v1236 = vpop.permute.xlu0 %1235
      %1237 = vrot.lane.b32.xlu0 %v1202, 8
      %v1238 = vpop.permute.xlu0 %1237
      %1239 = vrot.lane.b32.xlu0 %v1205, 8
      %v1240 = vpop.permute.xlu0 %1239
      %1241 = vrot.lane.b32.xlu0 %v1208, 8
      %v1242 = vpop.permute.xlu0 %1241
      %1243 = vrot.lane.b32.xlu0 %v1211, 8
      %v1244 = vpop.permute.xlu0 %1243
      %1245 = vrot.lane.b32.xlu0 %v1214, 8
      %v1246 = vpop.permute.xlu0 %1245
      %vm1247 = vcmask 31744
      %v1249 = vsel %vm1247, %v829, %v1087
      %v1251 = vsel %vm1247, %v830, %v1089
      %v1253 = vsel %vm1247, %v831, %v1091
      %v1255 = vsel %vm1247, %v832, %v1093
      %v1257 = vsel %vm1247, %v833, %v1095
      %v1259 = vsel %vm1247, %v834, %v1097
      %v1261 = vsel %vm1247, %v835, %v1099
      %v1263 = vsel %vm1247, %v836, %v1101
      %v1265 = vsel %vm1247, %v837, %v1103
      %v1267 = vsel %vm1247, %v838, %v1105
      %v1269 = vsel %vm1247, %v839, %v1107
      %v1271 = vsel %vm1247, %v840, %v1109
      %v1273 = vsel %vm1247, %v841, %v1111
      %v1275 = vsel %vm1247, %v842, %v1113
      %v1277 = vsel %vm1247, %v843, %v1115
      %v1279 = vsel %vm1247, %v844, %v1117
      %vm1280 = vcmask 64512
      %v1282 = vsel %vm1280, %v1249, %v1216
      %v1284 = vsel %vm1280, %v1251, %v1218
      %v1286 = vsel %vm1280, %v1253, %v1220
      %v1288 = vsel %vm1280, %v1255, %v1222
      %v1290 = vsel %vm1280, %v1257, %v1224
      %v1292 = vsel %vm1280, %v1259, %v1226
      %v1294 = vsel %vm1280, %v1261, %v1228
      %v1296 = vsel %vm1280, %v1263, %v1230
      %v1298 = vsel %vm1280, %v1265, %v1232
      %v1300 = vsel %vm1280, %v1267, %v1234
      %v1302 = vsel %vm1280, %v1269, %v1236
      %v1304 = vsel %vm1280, %v1271, %v1238
      %v1306 = vsel %vm1280, %v1273, %v1240
      %v1308 = vsel %vm1280, %v1275, %v1242
      %v1310 = vsel %vm1280, %v1277, %v1244
      %v1312 = vsel %vm1280, %v1279, %v1246
      %v1313 = vld [vmem:[%s1] sm:$0xf]
      %v1314 = vld [vmem:[%s1 + $0x4] sm:$0x3]
      %v1315 = vld [vmem:[%s583] sm:$0xf]
      %v1316 = vld [vmem:[%s583 + $0x4] sm:$0xf]
      %v1317 = vld [vmem:[%s583 + $0xc] sm:$0xf]
      %v1318 = vld [vmem:[%s583 + $0x10] sm:$0xf]
      %v1319 = vld [vmem:[%s583 + $0x18] sm:$0xf]
      %v1320 = vld [vmem:[%s583 + $0x1c] sm:$0xf]
      %v1321 = vld [vmem:[%s583 + $0x24] sm:$0xf]
      %v1322 = vld [vmem:[%s583 + $0x28] sm:$0xf]
      %v1323 = vld [vmem:[%s583 + $0x30] sm:$0xf]
      %v1324 = vld [vmem:[%s583 + $0x34] sm:$0xf]
      %v1325 = vld [vmem:[%s583 + $0x3c] sm:$0xf]
      %v1326 = vld [vmem:[%s583 + $0x40] sm:$0xf]
      %v1327 = vld [vmem:[%s583 + $0x48] sm:$0xf]
      %v1328 = vld [vmem:[%s583 + $0x4c] sm:$0xf]
      %v1329 = vld [vmem:[%s583 + $0x54] sm:$0xf]
      %v1330 = vld [vmem:[%s583 + $0x58] sm:$0xf]
      %v1331 = vld [vmem:[%s583 + $0x60] sm:$0xf]
      %v1332 = vld [vmem:[%s583 + $0x64] sm:$0xf]
      %v1333 = vld [vmem:[%s583 + $0x6c] sm:$0xf]
      %v1334 = vld [vmem:[%s583 + $0x70] sm:$0xf]
      %v1335 = vld [vmem:[%s583 + $0x78] sm:$0xf]
      %v1336 = vld [vmem:[%s583 + $0x7c] sm:$0xf]
      %v1337 = vld [vmem:[%s583 + $0x84] sm:$0xf]
      %v1338 = vld [vmem:[%s583 + $0x88] sm:$0xf]
      %v1339 = vld [vmem:[%s583 + $0x90] sm:$0xf]
      %v1340 = vld [vmem:[%s583 + $0x94] sm:$0xf]
      %v1341 = vld [vmem:[%s583 + $0x9c] sm:$0xf]
      %v1342 = vld [vmem:[%s583 + $0xa0] sm:$0xf]
      %v1343 = vld [vmem:[%s583 + $0xa8] sm:$0xf]
      %v1344 = vld [vmem:[%s583 + $0xac] sm:$0xf]
      %v1345 = vld [vmem:[%s583 + $0xb4] sm:$0xf]
      %v1346 = vld [vmem:[%s583 + $0xb8] sm:$0xf]
      %v1347 = vld [vmem:[%s583 + $0x8] sm:$0x1]
      %v1348 = vld [vmem:[%s583 + $0x14] sm:$0x1]
      %v1349 = vld [vmem:[%s583 + $0x20] sm:$0x1]
      %v1350 = vld [vmem:[%s583 + $0x2c] sm:$0x1]
      %v1351 = vld [vmem:[%s583 + $0x38] sm:$0x1]
      %v1352 = vld [vmem:[%s583 + $0x44] sm:$0x1]
      %v1353 = vld [vmem:[%s583 + $0x50] sm:$0x1]
      %v1354 = vld [vmem:[%s583 + $0x5c] sm:$0x1]
      %v1355 = vld [vmem:[%s583 + $0x68] sm:$0x1]
      %v1356 = vld [vmem:[%s583 + $0x74] sm:$0x1]
      %v1357 = vld [vmem:[%s583 + $0x80] sm:$0x1]
      %v1358 = vld [vmem:[%s583 + $0x8c] sm:$0x1]
      %v1359 = vld [vmem:[%s583 + $0x98] sm:$0x1]
      %v1360 = vld [vmem:[%s583 + $0xa4] sm:$0x1]
      %v1361 = vld [vmem:[%s583 + $0xb0] sm:$0x1]
      %v1362 = vld [vmem:[%s583 + $0xbc] sm:$0x1]
      %v1363 = vld [vmem:[%s583] sm:$0xe]
      %v1364 = vld [vmem:[%s583 + $0xc] sm:$0xe]
      %v1365 = vld [vmem:[%s583 + $0x18] sm:$0xe]
      %v1366 = vld [vmem:[%s583 + $0x24] sm:$0xe]
      %v1367 = vld [vmem:[%s583 + $0x30] sm:$0xe]
      %v1368 = vld [vmem:[%s583 + $0x3c] sm:$0xe]
      %v1369 = vld [vmem:[%s583 + $0x48] sm:$0xe]
      %v1370 = vld [vmem:[%s583 + $0x54] sm:$0xe]
      %v1371 = vld [vmem:[%s583 + $0x60] sm:$0xe]
      %v1372 = vld [vmem:[%s583 + $0x6c] sm:$0xe]
      %v1373 = vld [vmem:[%s583 + $0x78] sm:$0xe]
      %v1374 = vld [vmem:[%s583 + $0x84] sm:$0xe]
      %v1375 = vld [vmem:[%s583 + $0x90] sm:$0xe]
      %v1376 = vld [vmem:[%s583 + $0x9c] sm:$0xe]
      %v1377 = vld [vmem:[%s583 + $0xa8] sm:$0xe]
      %v1378 = vld [vmem:[%s583 + $0xb4] sm:$0xe]
      %v1411 = vunpack.c.l.b16 %v1315
      %v1412 = vunpack.c.l.b16 %v1316
      %v1413 = vunpack.c.l.b16 %v1317
      %v1414 = vunpack.c.l.b16 %v1318
      %v1415 = vunpack.c.l.b16 %v1319
      %v1416 = vunpack.c.l.b16 %v1320
      %v1417 = vunpack.c.l.b16 %v1321
      %v1418 = vunpack.c.l.b16 %v1322
      %v1419 = vunpack.c.l.b16 %v1323
      %v1420 = vunpack.c.l.b16 %v1324
      %v1421 = vunpack.c.l.b16 %v1325
      %v1422 = vunpack.c.l.b16 %v1326
      %v1423 = vunpack.c.l.b16 %v1327
      %v1424 = vunpack.c.l.b16 %v1328
      %v1425 = vunpack.c.l.b16 %v1329
      %v1426 = vunpack.c.l.b16 %v1330
      %v1427 = vunpack.c.l.b16 %v1331
      %v1428 = vunpack.c.l.b16 %v1332
      %v1429 = vunpack.c.l.b16 %v1333
      %v1430 = vunpack.c.l.b16 %v1334
      %v1431 = vunpack.c.l.b16 %v1335
      %v1432 = vunpack.c.l.b16 %v1336
      %v1433 = vunpack.c.l.b16 %v1337
      %v1434 = vunpack.c.l.b16 %v1338
      %v1435 = vunpack.c.l.b16 %v1339
      %v1436 = vunpack.c.l.b16 %v1340
      %v1437 = vunpack.c.l.b16 %v1341
      %v1438 = vunpack.c.l.b16 %v1342
      %v1439 = vunpack.c.l.b16 %v1343
      %v1440 = vunpack.c.l.b16 %v1344
      %v1441 = vunpack.c.l.b16 %v1345
      %v1442 = vunpack.c.l.b16 %v1346
      %v1443 = vpack.c.b16 %v1412, %v1411
      %v1444 = vpack.c.b16 %v1414, %v1413
      %v1445 = vpack.c.b16 %v1416, %v1415
      %v1446 = vpack.c.b16 %v1418, %v1417
      %v1447 = vpack.c.b16 %v1420, %v1419
      %v1448 = vpack.c.b16 %v1422, %v1421
      %v1449 = vpack.c.b16 %v1424, %v1423
      %v1450 = vpack.c.b16 %v1426, %v1425
      %v1451 = vpack.c.b16 %v1428, %v1427
      %v1452 = vpack.c.b16 %v1430, %v1429
      %v1453 = vpack.c.b16 %v1432, %v1431
      %v1454 = vpack.c.b16 %v1434, %v1433
      %v1455 = vpack.c.b16 %v1436, %v1435
      %v1456 = vpack.c.b16 %v1438, %v1437
      %v1457 = vpack.c.b16 %v1440, %v1439
      %v1458 = vpack.c.b16 %v1442, %v1441
      %v1475 = vunpack.c.l.b16 %v1347
      %v1476 = vunpack.c.l.b16 %v1348
      %v1477 = vunpack.c.l.b16 %v1349
      %v1478 = vunpack.c.l.b16 %v1350
      %v1479 = vunpack.c.l.b16 %v1351
      %v1480 = vunpack.c.l.b16 %v1352
      %v1481 = vunpack.c.l.b16 %v1353
      %v1482 = vunpack.c.l.b16 %v1354
      %v1483 = vunpack.c.l.b16 %v1355
      %v1484 = vunpack.c.l.b16 %v1356
      %v1485 = vunpack.c.l.b16 %v1357
      %v1486 = vunpack.c.l.b16 %v1358
      %v1487 = vunpack.c.l.b16 %v1359
      %v1488 = vunpack.c.l.b16 %v1360
      %v1489 = vunpack.c.l.b16 %v1361
      %v1490 = vunpack.c.l.b16 %v1362
      %v1491 = vpack.c.b16 %v1475, %v1475
      %v1492 = vpack.c.b16 %v1476, %v1476
      %v1493 = vpack.c.b16 %v1477, %v1477
      %v1494 = vpack.c.b16 %v1478, %v1478
      %v1495 = vpack.c.b16 %v1479, %v1479
      %v1496 = vpack.c.b16 %v1480, %v1480
      %v1497 = vpack.c.b16 %v1481, %v1481
      %v1498 = vpack.c.b16 %v1482, %v1482
      %v1499 = vpack.c.b16 %v1483, %v1483
      %v1500 = vpack.c.b16 %v1484, %v1484
      %v1501 = vpack.c.b16 %v1485, %v1485
      %v1502 = vpack.c.b16 %v1486, %v1486
      %v1503 = vpack.c.b16 %v1487, %v1487
      %v1504 = vpack.c.b16 %v1488, %v1488
      %v1505 = vpack.c.b16 %v1489, %v1489
      %v1506 = vpack.c.b16 %v1490, %v1490
      %v1508 = vshrl.u32 %v1443, 16
      %v1510 = vshll.u32 %v1443, 16
      %v1512 = vrot.slane %v1510, 1
      %v1513 = vor.u32 %v1508, %v1512
      %v1515 = vshll.u32 %v1491, 16
      %v1517 = vrot.slane %v1515, 1
      %v1518 = vsel %vm893, %v1513, %v1517
      %v1520 = vshrl.u32 %v1444, 16
      %v1522 = vshll.u32 %v1444, 16
      %v1524 = vrot.slane %v1522, 1
      %v1525 = vor.u32 %v1520, %v1524
      %v1527 = vshll.u32 %v1492, 16
      %v1529 = vrot.slane %v1527, 1
      %v1530 = vsel %vm893, %v1525, %v1529
      %v1532 = vshrl.u32 %v1445, 16
      %v1534 = vshll.u32 %v1445, 16
      %v1536 = vrot.slane %v1534, 1
      %v1537 = vor.u32 %v1532, %v1536
      %v1539 = vshll.u32 %v1493, 16
      %v1541 = vrot.slane %v1539, 1
      %v1542 = vsel %vm893, %v1537, %v1541
      %v1544 = vshrl.u32 %v1446, 16
      %v1546 = vshll.u32 %v1446, 16
      %v1548 = vrot.slane %v1546, 1
      %v1549 = vor.u32 %v1544, %v1548
      %v1551 = vshll.u32 %v1494, 16
      %v1553 = vrot.slane %v1551, 1
      %v1554 = vsel %vm893, %v1549, %v1553
      %v1556 = vshrl.u32 %v1447, 16
      %v1558 = vshll.u32 %v1447, 16
      %v1560 = vrot.slane %v1558, 1
      %v1561 = vor.u32 %v1556, %v1560
      %v1563 = vshll.u32 %v1495, 16
      %v1565 = vrot.slane %v1563, 1
      %v1566 = vsel %vm893, %v1561, %v1565
      %v1568 = vshrl.u32 %v1448, 16
      %v1570 = vshll.u32 %v1448, 16
      %v1572 = vrot.slane %v1570, 1
      %v1573 = vor.u32 %v1568, %v1572
      %v1575 = vshll.u32 %v1496, 16
      %v1577 = vrot.slane %v1575, 1
      %v1578 = vsel %vm893, %v1573, %v1577
      %v1580 = vshrl.u32 %v1449, 16
      %v1582 = vshll.u32 %v1449, 16
      %v1584 = vrot.slane %v1582, 1
      %v1585 = vor.u32 %v1580, %v1584
      %v1587 = vshll.u32 %v1497, 16
      %v1589 = vrot.slane %v1587, 1
      %v1590 = vsel %vm893, %v1585, %v1589
      %v1592 = vshrl.u32 %v1450, 16
      %v1594 = vshll.u32 %v1450, 16
      %v1596 = vrot.slane %v1594, 1
      %v1597 = vor.u32 %v1592, %v1596
      %v1599 = vshll.u32 %v1498, 16
      %v1601 = vrot.slane %v1599, 1
      %v1602 = vsel %vm893, %v1597, %v1601
      %v1604 = vshrl.u32 %v1451, 16
      %v1606 = vshll.u32 %v1451, 16
      %v1608 = vrot.slane %v1606, 1
      %v1609 = vor.u32 %v1604, %v1608
      %v1611 = vshll.u32 %v1499, 16
      %v1613 = vrot.slane %v1611, 1
      %v1614 = vsel %vm893, %v1609, %v1613
      %v1616 = vshrl.u32 %v1452, 16
      %v1618 = vshll.u32 %v1452, 16
      %v1620 = vrot.slane %v1618, 1
      %v1621 = vor.u32 %v1616, %v1620
      %v1623 = vshll.u32 %v1500, 16
      %v1625 = vrot.slane %v1623, 1
      %v1626 = vsel %vm893, %v1621, %v1625
      %v1628 = vshrl.u32 %v1453, 16
      %v1630 = vshll.u32 %v1453, 16
      %v1632 = vrot.slane %v1630, 1
      %v1633 = vor.u32 %v1628, %v1632
      %v1635 = vshll.u32 %v1501, 16
      %v1637 = vrot.slane %v1635, 1
      %v1638 = vsel %vm893, %v1633, %v1637
      %v1640 = vshrl.u32 %v1454, 16
      %v1642 = vshll.u32 %v1454, 16
      %v1644 = vrot.slane %v1642, 1
      %v1645 = vor.u32 %v1640, %v1644
      %v1647 = vshll.u32 %v1502, 16
      %v1649 = vrot.slane %v1647, 1
      %v1650 = vsel %vm893, %v1645, %v1649
      %v1652 = vshrl.u32 %v1455, 16
      %v1654 = vshll.u32 %v1455, 16
      %v1656 = vrot.slane %v1654, 1
      %v1657 = vor.u32 %v1652, %v1656
      %v1659 = vshll.u32 %v1503, 16
      %v1661 = vrot.slane %v1659, 1
      %v1662 = vsel %vm893, %v1657, %v1661
      %v1664 = vshrl.u32 %v1456, 16
      %v1666 = vshll.u32 %v1456, 16
      %v1668 = vrot.slane %v1666, 1
      %v1669 = vor.u32 %v1664, %v1668
      %v1671 = vshll.u32 %v1504, 16
      %v1673 = vrot.slane %v1671, 1
      %v1674 = vsel %vm893, %v1669, %v1673
      %v1676 = vshrl.u32 %v1457, 16
      %v1678 = vshll.u32 %v1457, 16
      %v1680 = vrot.slane %v1678, 1
      %v1681 = vor.u32 %v1676, %v1680
      %v1683 = vshll.u32 %v1505, 16
      %v1685 = vrot.slane %v1683, 1
      %v1686 = vsel %vm893, %v1681, %v1685
      %v1688 = vshrl.u32 %v1458, 16
      %v1690 = vshll.u32 %v1458, 16
      %v1692 = vrot.slane %v1690, 1
      %v1693 = vor.u32 %v1688, %v1692
      %v1695 = vshll.u32 %v1506, 16
      %v1697 = vrot.slane %v1695, 1
      %v1698 = vsel %vm893, %v1693, %v1697
      %1699 = vrot.lane.b32.xlu0 %v1518, 4
      %v1700 = vpop.permute.xlu0 %1699
      %1701 = vrot.lane.b32.xlu0 %v1530, 4
      %v1702 = vpop.permute.xlu0 %1701
      %1703 = vrot.lane.b32.xlu0 %v1542, 4
      %v1704 = vpop.permute.xlu0 %1703
      %1705 = vrot.lane.b32.xlu0 %v1554, 4
      %v1706 = vpop.permute.xlu0 %1705
      %1707 = vrot.lane.b32.xlu0 %v1566, 4
      %v1708 = vpop.permute.xlu0 %1707
      %1709 = vrot.lane.b32.xlu0 %v1578, 4
      %v1710 = vpop.permute.xlu0 %1709
      %1711 = vrot.lane.b32.xlu0 %v1590, 4
      %v1712 = vpop.permute.xlu0 %1711
      %1713 = vrot.lane.b32.xlu0 %v1602, 4
      %v1714 = vpop.permute.xlu0 %1713
      %1715 = vrot.lane.b32.xlu0 %v1614, 4
      %v1716 = vpop.permute.xlu0 %1715
      %1717 = vrot.lane.b32.xlu0 %v1626, 4
      %v1718 = vpop.permute.xlu0 %1717
      %1719 = vrot.lane.b32.xlu0 %v1638, 4
      %v1720 = vpop.permute.xlu0 %1719
      %1721 = vrot.lane.b32.xlu0 %v1650, 4
      %v1722 = vpop.permute.xlu0 %1721
      %1723 = vrot.lane.b32.xlu0 %v1662, 4
      %v1724 = vpop.permute.xlu0 %1723
      %1725 = vrot.lane.b32.xlu0 %v1674, 4
      %v1726 = vpop.permute.xlu0 %1725
      %1727 = vrot.lane.b32.xlu0 %v1686, 4
      %v1728 = vpop.permute.xlu0 %1727
      %1729 = vrot.lane.b32.xlu0 %v1698, 4
      %v1730 = vpop.permute.xlu0 %1729
      %v1747 = vunpack.c.l.b16 %v1363
      %v1748 = vunpack.c.l.b16 %v1364
      %v1749 = vunpack.c.l.b16 %v1365
      %v1750 = vunpack.c.l.b16 %v1366
      %v1751 = vunpack.c.l.b16 %v1367
      %v1752 = vunpack.c.l.b16 %v1368
      %v1753 = vunpack.c.l.b16 %v1369
      %v1754 = vunpack.c.l.b16 %v1370
      %v1755 = vunpack.c.l.b16 %v1371
      %v1756 = vunpack.c.l.b16 %v1372
      %v1757 = vunpack.c.l.b16 %v1373
      %v1758 = vunpack.c.l.b16 %v1374
      %v1759 = vunpack.c.l.b16 %v1375
      %v1760 = vunpack.c.l.b16 %v1376
      %v1761 = vunpack.c.l.b16 %v1377
      %v1762 = vunpack.c.l.b16 %v1378
      %v1763 = vpack.c.b16 %v1412, %v1747
      %v1764 = vpack.c.b16 %v1414, %v1748
      %v1765 = vpack.c.b16 %v1416, %v1749
      %v1766 = vpack.c.b16 %v1418, %v1750
      %v1767 = vpack.c.b16 %v1420, %v1751
      %v1768 = vpack.c.b16 %v1422, %v1752
      %v1769 = vpack.c.b16 %v1424, %v1753
      %v1770 = vpack.c.b16 %v1426, %v1754
      %v1771 = vpack.c.b16 %v1428, %v1755
      %v1772 = vpack.c.b16 %v1430, %v1756
      %v1773 = vpack.c.b16 %v1432, %v1757
      %v1774 = vpack.c.b16 %v1434, %v1758
      %v1775 = vpack.c.b16 %v1436, %v1759
      %v1776 = vpack.c.b16 %v1438, %v1760
      %v1777 = vpack.c.b16 %v1440, %v1761
      %v1778 = vpack.c.b16 %v1442, %v1762
      %v1779 = vrot.slane %v1763, 1
      %v1780 = vrot.slane %v1491, 1
      %v1781 = vsel %vm1166, %v1779, %v1780
      %v1782 = vrot.slane %v1764, 1
      %v1783 = vrot.slane %v1492, 1
      %v1784 = vsel %vm1166, %v1782, %v1783
      %v1785 = vrot.slane %v1765, 1
      %v1786 = vrot.slane %v1493, 1
      %v1787 = vsel %vm1166, %v1785, %v1786
      %v1788 = vrot.slane %v1766, 1
      %v1789 = vrot.slane %v1494, 1
      %v1790 = vsel %vm1166, %v1788, %v1789
      %v1791 = vrot.slane %v1767, 1
      %v1792 = vrot.slane %v1495, 1
      %v1793 = vsel %vm1166, %v1791, %v1792
      %v1794 = vrot.slane %v1768, 1
      %v1795 = vrot.slane %v1496, 1
      %v1796 = vsel %vm1166, %v1794, %v1795
      %v1797 = vrot.slane %v1769, 1
      %v1798 = vrot.slane %v1497, 1
      %v1799 = vsel %vm1166, %v1797, %v1798
      %v1800 = vrot.slane %v1770, 1
      %v1801 = vrot.slane %v1498, 1
      %v1802 = vsel %vm1166, %v1800, %v1801
      %v1803 = vrot.slane %v1771, 1
      %v1804 = vrot.slane %v1499, 1
      %v1805 = vsel %vm1166, %v1803, %v1804
      %v1806 = vrot.slane %v1772, 1
      %v1807 = vrot.slane %v1500, 1
      %v1808 = vsel %vm1166, %v1806, %v1807
      %v1809 = vrot.slane %v1773, 1
      %v1810 = vrot.slane %v1501, 1
      %v1811 = vsel %vm1166, %v1809, %v1810
      %v1812 = vrot.slane %v1774, 1
      %v1813 = vrot.slane %v1502, 1
      %v1814 = vsel %vm1166, %v1812, %v1813
      %v1815 = vrot.slane %v1775, 1
      %v1816 = vrot.slane %v1503, 1
      %v1817 = vsel %vm1166, %v1815, %v1816
      %v1818 = vrot.slane %v1776, 1
      %v1819 = vrot.slane %v1504, 1
      %v1820 = vsel %vm1166, %v1818, %v1819
      %v1821 = vrot.slane %v1777, 1
      %v1822 = vrot.slane %v1505, 1
      %v1823 = vsel %vm1166, %v1821, %v1822
      %v1824 = vrot.slane %v1778, 1
      %v1825 = vrot.slane %v1506, 1
      %v1826 = vsel %vm1166, %v1824, %v1825
      %1827 = vrot.lane.b32.xlu0 %v1781, 8
      %v1828 = vpop.permute.xlu0 %1827
      %1829 = vrot.lane.b32.xlu0 %v1784, 8
      %v1830 = vpop.permute.xlu0 %1829
      %1831 = vrot.lane.b32.xlu0 %v1787, 8
      %v1832 = vpop.permute.xlu0 %1831
      %1833 = vrot.lane.b32.xlu0 %v1790, 8
      %v1834 = vpop.permute.xlu0 %1833
      %1835 = vrot.lane.b32.xlu0 %v1793, 8
      %v1836 = vpop.permute.xlu0 %1835
      %1837 = vrot.lane.b32.xlu0 %v1796, 8
      %v1838 = vpop.permute.xlu0 %1837
      %1839 = vrot.lane.b32.xlu0 %v1799, 8
      %v1840 = vpop.permute.xlu0 %1839
      %1841 = vrot.lane.b32.xlu0 %v1802, 8
      %v1842 = vpop.permute.xlu0 %1841
      %1843 = vrot.lane.b32.xlu0 %v1805, 8
      %v1844 = vpop.permute.xlu0 %1843
      %1845 = vrot.lane.b32.xlu0 %v1808, 8
      %v1846 = vpop.permute.xlu0 %1845
      %1847 = vrot.lane.b32.xlu0 %v1811, 8
      %v1848 = vpop.permute.xlu0 %1847
      %1849 = vrot.lane.b32.xlu0 %v1814, 8
      %v1850 = vpop.permute.xlu0 %1849
      %1851 = vrot.lane.b32.xlu0 %v1817, 8
      %v1852 = vpop.permute.xlu0 %1851
      %1853 = vrot.lane.b32.xlu0 %v1820, 8
      %v1854 = vpop.permute.xlu0 %1853
      %1855 = vrot.lane.b32.xlu0 %v1823, 8
      %v1856 = vpop.permute.xlu0 %1855
      %1857 = vrot.lane.b32.xlu0 %v1826, 8
      %v1858 = vpop.permute.xlu0 %1857
      %v1860 = vsel %vm1247, %v1443, %v1700
      %v1862 = vsel %vm1247, %v1444, %v1702
      %v1864 = vsel %vm1247, %v1445, %v1704
      %v1866 = vsel %vm1247, %v1446, %v1706
      %v1868 = vsel %vm1247, %v1447, %v1708
      %v1870 = vsel %vm1247, %v1448, %v1710
      %v1872 = vsel %vm1247, %v1449, %v1712
      %v1874 = vsel %vm1247, %v1450, %v1714
      %v1876 = vsel %vm1247, %v1451, %v1716
      %v1878 = vsel %vm1247, %v1452, %v1718
      %v1880 = vsel %vm1247, %v1453, %v1720
      %v1882 = vsel %vm1247, %v1454, %v1722
      %v1884 = vsel %vm1247, %v1455, %v1724
      %v1886 = vsel %vm1247, %v1456, %v1726
      %v1888 = vsel %vm1247, %v1457, %v1728
      %v1890 = vsel %vm1247, %v1458, %v1730
      %v1892 = vsel %vm1280, %v1860, %v1828
      %v1894 = vsel %vm1280, %v1862, %v1830
      %v1896 = vsel %vm1280, %v1864, %v1832
      %v1898 = vsel %vm1280, %v1866, %v1834
      %v1900 = vsel %vm1280, %v1868, %v1836
      %v1902 = vsel %vm1280, %v1870, %v1838
      %v1904 = vsel %vm1280, %v1872, %v1840
      %v1906 = vsel %vm1280, %v1874, %v1842
      %v1908 = vsel %vm1280, %v1876, %v1844
      %v1910 = vsel %vm1280, %v1878, %v1846
      %v1912 = vsel %vm1280, %v1880, %v1848
      %v1914 = vsel %vm1280, %v1882, %v1850
      %v1916 = vsel %vm1280, %v1884, %v1852
      %v1918 = vsel %vm1280, %v1886, %v1854
      %v1920 = vsel %vm1280, %v1888, %v1856
      %v1922 = vsel %vm1280, %v1890, %v1858
      %s1923 = scalar_lea.vmem %s1, 8
      %v1924 = vld [vmem:[%s1923] sm:$0xf]
      %v1925 = vld [vmem:[%s1923 + $0x4] sm:$0x3]
      %v1928 = vunpack.c.l.b16 %v1924
      %v1929 = vunpack.c.l.b16 %v1925
      %v1930 = vpack.c.b16 %v1929, %v1928
      %vm1931 = vcmask 97280
      %v1932 = vsel %vm1931, %v1892, 0
      %v1934 = vsel %vm1931, %v1894, 0
      %v1936 = vsel %vm1931, %v1896, 0
      %v1938 = vsel %vm1931, %v1898, 0
      %v1940 = vsel %vm1931, %v1900, 0
      %v1942 = vsel %vm1931, %v1902, 0
      %v1944 = vsel %vm1931, %v1904, 0
      %v1946 = vsel %vm1931, %v1906, 0
      %v1948 = vsel %vm1931, %v1908, 0
      %v1950 = vsel %vm1931, %v1910, 0
      %v1952 = vsel %vm1931, %v1912, 0
      %v1954 = vsel %vm1931, %v1914, 0
      %v1956 = vsel %vm1931, %v1916, 0
      %v1958 = vsel %vm1931, %v1918, 0
      %v1960 = vsel %vm1931, %v1920, 0
      %v1962 = vsel %vm1931, %v1922, 0
      %vm1964 = vcmask 1045504
      %v1966 = vsel %vm1964, %v1930, 0
      %1968 = vmatprep.subr.bf16.mxu0 0
      %1969 = vmatpush1.bf16.msra.mxu0 %v1966
      %1970 = vmatprep.subr.bf16.mxu0 0
      %1971 = vmatpush1.bf16.msra.mxu0 0
      %1972 = vmatprep.subr.bf16.mxu0 0
      %1973 = vmatpush1.bf16.msra.mxu0 0
      %1974 = vmatprep.subr.bf16.mxu0 0
      %1975 = vmatpush1.bf16.msra.mxu0 0
      %1976 = vmatprep.subr.bf16.mxu0 0
      %1977 = vmatpush1.bf16.msra.mxu0 0
      %1978 = vmatprep.subr.bf16.mxu0 0
      %1979 = vmatpush1.bf16.msra.mxu0 0
      %1980 = vmatprep.subr.bf16.mxu0 0
      %1981 = vmatpush1.bf16.msra.mxu0 0
      %1982 = vmatprep.subr.bf16.mxu0 0
      %1983 = vmatpush1.bf16.msra.mxu0 0
      %1984 = vmatprep.subr.bf16.mxu0 0
      %1985 = vmatpush1.bf16.msra.mxu0 0
      %1986 = vmatprep.subr.bf16.mxu0 0
      %1987 = vmatpush1.bf16.msra.mxu0 0
      %1988 = vmatprep.subr.bf16.mxu0 0
      %1989 = vmatpush1.bf16.msra.mxu0 0
      %1990 = vmatprep.subr.bf16.mxu0 0
      %1991 = vmatpush1.bf16.msra.mxu0 0
      %1992 = vmatprep.subr.bf16.mxu0 0
      %1993 = vmatpush1.bf16.msra.mxu0 0
      %1994 = vmatprep.subr.bf16.mxu0 0
      %1995 = vmatpush1.bf16.msra.mxu0 0
      %1996 = vmatprep.subr.bf16.mxu0 0
      %1997 = vmatpush1.bf16.msra.mxu0 0
      %1998 = vmatprep.subr.bf16.mxu0 0
      %1999 = vmatpush1.bf16.msra.mxu0 0
      %2000 = vmatprep.mubr.bf16.mxu0 0
      %2001 = vmatmul.mubr.bf16.gmra.mrb[0].mxu0 %v1932
      %v2002 = vpop.f32.mrb[0].mxu0
      %v2003 = vadd.f32 0.0, %v2002
      %v2004 = vpop.f32.mrb[0].mxu0
      %v2005 = vpop.f32.mrb[0].mxu0
      %v2006 = vadd.f32 0.0, %v2005
      %v2007 = vpop.f32.mrb[0].mxu0
      %2008 = vmatprep.mubr.bf16.mxu0 0
      %2009 = vmatmul.mubr.bf16.gmra.mrb[0].mxu0 %v1934
      %v2010 = vpop.f32.mrb[0].mxu0
      %v2011 = vadd.f32 0.0, %v2010
      %v2012 = vpop.f32.mrb[0].mxu0
      %v2013 = vpop.f32.mrb[0].mxu0
      %v2014 = vadd.f32 0.0, %v2013
      %v2015 = vpop.f32.mrb[0].mxu0
      %2016 = vmatprep.mubr.bf16.mxu0 0
      %2017 = vmatmul.mubr.bf16.gmra.mrb[0].mxu0 %v1936
      %v2018 = vpop.f32.mrb[0].mxu0
      %v2019 = vadd.f32 0.0, %v2018
      %v2020 = vpop.f32.mrb[0].mxu0
      %v2021 = vpop.f32.mrb[0].mxu0
      %v2022 = vadd.f32 0.0, %v2021
      %v2023 = vpop.f32.mrb[0].mxu0
      %2024 = vmatprep.mubr.bf16.mxu0 0
      %2025 = vmatmul.mubr.bf16.gmra.mrb[0].mxu0 %v1938
      %v2026 = vpop.f32.mrb[0].mxu0
      %v2027 = vadd.f32 0.0, %v2026
      %v2028 = vpop.f32.mrb[0].mxu0
      %v2029 = vpop.f32.mrb[0].mxu0
      %v2030 = vadd.f32 0.0, %v2029
      %v2031 = vpop.f32.mrb[0].mxu0
      %2032 = vmatprep.mubr.bf16.mxu0 0
      %2033 = vmatmul.mubr.bf16.gmra.mrb[0].mxu0 %v1940
      %v2034 = vpop.f32.mrb[0].mxu0
      %v2035 = vadd.f32 0.0, %v2034
      %v2036 = vpop.f32.mrb[0].mxu0
      %v2037 = vpop.f32.mrb[0].mxu0
      %v2038 = vadd.f32 0.0, %v2037
      %v2039 = vpop.f32.mrb[0].mxu0
      %2040 = vmatprep.mubr.bf16.mxu0 0
      %2041 = vmatmul.mubr.bf16.gmra.mrb[0].mxu0 %v1942
      %v2042 = vpop.f32.mrb[0].mxu0
      %v2043 = vadd.f32 0.0, %v2042
      %v2044 = vpop.f32.mrb[0].mxu0
      %v2045 = vpop.f32.mrb[0].mxu0
      %v2046 = vadd.f32 0.0, %v2045
      %v2047 = vpop.f32.mrb[0].mxu0
      %2048 = vmatprep.mubr.bf16.mxu0 0
      %2049 = vmatmul.mubr.bf16.gmra.mrb[0].mxu0 %v1944
      %v2050 = vpop.f32.mrb[0].mxu0
      %v2051 = vadd.f32 0.0, %v2050
      %v2052 = vpop.f32.mrb[0].mxu0
      %v2053 = vpop.f32.mrb[0].mxu0
      %v2054 = vadd.f32 0.0, %v2053
      %v2055 = vpop.f32.mrb[0].mxu0
      %2056 = vmatprep.mubr.bf16.mxu0 0
      %2057 = vmatmul.mubr.bf16.gmra.mrb[0].mxu0 %v1946
      %v2058 = vpop.f32.mrb[0].mxu0
      %v2059 = vadd.f32 0.0, %v2058
      %v2060 = vpop.f32.mrb[0].mxu0
      %v2061 = vpop.f32.mrb[0].mxu0
      %v2062 = vadd.f32 0.0, %v2061
      %v2063 = vpop.f32.mrb[0].mxu0
      %2064 = vmatprep.mubr.bf16.mxu0 0
      %2065 = vmatmul.mubr.bf16.gmra.mrb[0].mxu0 %v1948
      %v2066 = vpop.f32.mrb[0].mxu0
      %v2067 = vadd.f32 0.0, %v2066
      %v2068 = vpop.f32.mrb[0].mxu0
      %v2069 = vpop.f32.mrb[0].mxu0
      %v2070 = vadd.f32 0.0, %v2069
      %v2071 = vpop.f32.mrb[0].mxu0
      %2072 = vmatprep.mubr.bf16.mxu0 0
      %2073 = vmatmul.mubr.bf16.gmra.mrb[0].mxu0 %v1950
      %v2074 = vpop.f32.mrb[0].mxu0
      %v2075 = vadd.f32 0.0, %v2074
      %v2076 = vpop.f32.mrb[0].mxu0
      %v2077 = vpop.f32.mrb[0].mxu0
      %v2078 = vadd.f32 0.0, %v2077
      %v2079 = vpop.f32.mrb[0].mxu0
      %2080 = vmatprep.mubr.bf16.mxu0 0
      %2081 = vmatmul.mubr.bf16.gmra.mrb[0].mxu0 %v1952
      %v2082 = vpop.f32.mrb[0].mxu0
      %v2083 = vadd.f32 0.0, %v2082
      %v2084 = vpop.f32.mrb[0].mxu0
      %v2085 = vpop.f32.mrb[0].mxu0
      %v2086 = vadd.f32 0.0, %v2085
      %v2087 = vpop.f32.mrb[0].mxu0
      %2088 = vmatprep.mubr.bf16.mxu0 0
      %2089 = vmatmul.mubr.bf16.gmra.mrb[0].mxu0 %v1954
      %v2090 = vpop.f32.mrb[0].mxu0
      %v2091 = vadd.f32 0.0, %v2090
      %v2092 = vpop.f32.mrb[0].mxu0
      %v2093 = vpop.f32.mrb[0].mxu0
      %v2094 = vadd.f32 0.0, %v2093
      %v2095 = vpop.f32.mrb[0].mxu0
      %2096 = vmatprep.mubr.bf16.mxu0 0
      %2097 = vmatmul.mubr.bf16.gmra.mrb[0].mxu0 %v1956
      %v2098 = vpop.f32.mrb[0].mxu0
      %v2099 = vadd.f32 0.0, %v2098
      %v2100 = vpop.f32.mrb[0].mxu0
      %v2101 = vpop.f32.mrb[0].mxu0
      %v2102 = vadd.f32 0.0, %v2101
      %v2103 = vpop.f32.mrb[0].mxu0
      %2104 = vmatprep.mubr.bf16.mxu0 0
      %2105 = vmatmul.mubr.bf16.gmra.mrb[0].mxu0 %v1958
      %v2106 = vpop.f32.mrb[0].mxu0
      %v2107 = vadd.f32 0.0, %v2106
      %v2108 = vpop.f32.mrb[0].mxu0
      %v2109 = vpop.f32.mrb[0].mxu0
      %v2110 = vadd.f32 0.0, %v2109
      %v2111 = vpop.f32.mrb[0].mxu0
      %2112 = vmatprep.mubr.bf16.mxu0 0
      %2113 = vmatmul.mubr.bf16.gmra.mrb[0].mxu0 %v1960
      %v2114 = vpop.f32.mrb[0].mxu0
      %v2115 = vadd.f32 0.0, %v2114
      %v2116 = vpop.f32.mrb[0].mxu0
      %v2117 = vpop.f32.mrb[0].mxu0
      %v2118 = vadd.f32 0.0, %v2117
      %v2119 = vpop.f32.mrb[0].mxu0
      %2120 = vmatprep.mubr.bf16.mxu0 0
      %2121 = vmatmul.mubr.bf16.gmra.mrb[0].mxu0 %v1962
      %v2122 = vpop.f32.mrb[0].mxu0
      %v2123 = vadd.f32 0.0, %v2122
      %v2124 = vpop.f32.mrb[0].mxu0
      %v2125 = vpop.f32.mrb[0].mxu0
      %v2126 = vadd.f32 0.0, %v2125
      %v2127 = vpop.f32.mrb[0].mxu0
      %2128 = vdwg.mxu0
      %v2131 = vunpack.c.l.b16 %v1313
      %v2132 = vunpack.c.l.b16 %v1314
      %v2133 = vpack.c.b16 %v2132, %v2131
      %v2134 = vsel %vm1931, %v1282, 0
      %v2136 = vsel %vm1931, %v1284, 0
      %v2138 = vsel %vm1931, %v1286, 0
      %v2140 = vsel %vm1931, %v1288, 0
      %v2142 = vsel %vm1931, %v1290, 0
      %v2144 = vsel %vm1931, %v1292, 0
      %v2146 = vsel %vm1931, %v1294, 0
      %v2148 = vsel %vm1931, %v1296, 0
      %v2150 = vsel %vm1931, %v1298, 0
      %v2152 = vsel %vm1931, %v1300, 0
      %v2154 = vsel %vm1931, %v1302, 0
      %v2156 = vsel %vm1931, %v1304, 0
      %v2158 = vsel %vm1931, %v1306, 0
      %v2160 = vsel %vm1931, %v1308, 0
      %v2162 = vsel %vm1931, %v1310, 0
      %v2164 = vsel %vm1931, %v1312, 0
      %v2167 = vsel %vm1964, %v2133, 0
      %2169 = vmatprep.subr.bf16.mxu0 0
      %2170 = vmatpush1.bf16.msra.mxu0 %v2167
      %2171 = vmatprep.subr.bf16.mxu0 0
      %2172 = vmatpush1.bf16.msra.mxu0 0
      %2173 = vmatprep.subr.bf16.mxu0 0
      %2174 = vmatpush1.bf16.msra.mxu0 0
      %2175 = vmatprep.subr.bf16.mxu0 0
      %2176 = vmatpush1.bf16.msra.mxu0 0
      %2177 = vmatprep.subr.bf16.mxu0 0
      %2178 = vmatpush1.bf16.msra.mxu0 0
      %2179 = vmatprep.subr.bf16.mxu0 0
      %2180 = vmatpush1.bf16.msra.mxu0 0
      %2181 = vmatprep.subr.bf16.mxu0 0
      %2182 = vmatpush1.bf16.msra.mxu0 0
      %2183 = vmatprep.subr.bf16.mxu0 0
      %2184 = vmatpush1.bf16.msra.mxu0 0
      %2185 = vmatprep.subr.bf16.mxu0 0
      %2186 = vmatpush1.bf16.msra.mxu0 0
      %2187 = vmatprep.subr.bf16.mxu0 0
      %2188 = vmatpush1.bf16.msra.mxu0 0
      %2189 = vmatprep.subr.bf16.mxu0 0
      %2190 = vmatpush1.bf16.msra.mxu0 0
      %2191 = vmatprep.subr.bf16.mxu0 0
      %2192 = vmatpush1.bf16.msra.mxu0 0
      %2193 = vmatprep.subr.bf16.mxu0 0
      %2194 = vmatpush1.bf16.msra.mxu0 0
      %2195 = vmatprep.subr.bf16.mxu0 0
      %2196 = vmatpush1.bf16.msra.mxu0 0
      %2197 = vmatprep.subr.bf16.mxu0 0
      %2198 = vmatpush1.bf16.msra.mxu0 0
      %2199 = vmatprep.subr.bf16.mxu0 0
      %2200 = vmatpush1.bf16.msra.mxu0 0
      %2201 = vmatprep.mubr.bf16.mxu0 0
      %2202 = vmatmul.mubr.bf16.gmra.mrb[0].mxu0 %v2134
      %v2203 = vpop.f32.mrb[0].mxu0
      %v2204 = vadd.f32 %v2003, %v2203
      %v2205 = vpop.f32.mrb[0].mxu0
      %v2206 = vpop.f32.mrb[0].mxu0
      %v2207 = vadd.f32 %v2006, %v2206
      %v2208 = vpop.f32.mrb[0].mxu0
      %2209 = vmatprep.mubr.bf16.mxu0 0
      %2210 = vmatmul.mubr.bf16.gmra.mrb[0].mxu0 %v2136
      %v2211 = vpop.f32.mrb[0].mxu0
      %v2212 = vadd.f32 %v2011, %v2211
      %v2213 = vpop.f32.mrb[0].mxu0
      %v2214 = vpop.f32.mrb[0].mxu0
      %v2215 = vadd.f32 %v2014, %v2214
      %v2216 = vpop.f32.mrb[0].mxu0
      %2217 = vmatprep.mubr.bf16.mxu0 0
      %2218 = vmatmul.mubr.bf16.gmra.mrb[0].mxu0 %v2138
      %v2219 = vpop.f32.mrb[0].mxu0
      %v2220 = vadd.f32 %v2019, %v2219
      %v2221 = vpop.f32.mrb[0].mxu0
      %v2222 = vpop.f32.mrb[0].mxu0
      %v2223 = vadd.f32 %v2022, %v2222
      %v2224 = vpop.f32.mrb[0].mxu0
      %2225 = vmatprep.mubr.bf16.mxu0 0
      %2226 = vmatmul.mubr.bf16.gmra.mrb[0].mxu0 %v2140
      %v2227 = vpop.f32.mrb[0].mxu0
      %v2228 = vadd.f32 %v2027, %v2227
      %v2229 = vpop.f32.mrb[0].mxu0
      %v2230 = vpop.f32.mrb[0].mxu0
      %v2231 = vadd.f32 %v2030, %v2230
      %v2232 = vpop.f32.mrb[0].mxu0
      %2233 = vmatprep.mubr.bf16.mxu0 0
      %2234 = vmatmul.mubr.bf16.gmra.mrb[0].mxu0 %v2142
      %v2235 = vpop.f32.mrb[0].mxu0
      %v2236 = vadd.f32 %v2035, %v2235
      %v2237 = vpop.f32.mrb[0].mxu0
      %v2238 = vpop.f32.mrb[0].mxu0
      %v2239 = vadd.f32 %v2038, %v2238
      %v2240 = vpop.f32.mrb[0].mxu0
      %2241 = vmatprep.mubr.bf16.mxu0 0
      %2242 = vmatmul.mubr.bf16.gmra.mrb[0].mxu0 %v2144
      %v2243 = vpop.f32.mrb[0].mxu0
      %v2244 = vadd.f32 %v2043, %v2243
      %v2245 = vpop.f32.mrb[0].mxu0
      %v2246 = vpop.f32.mrb[0].mxu0
      %v2247 = vadd.f32 %v2046, %v2246
      %v2248 = vpop.f32.mrb[0].mxu0
      %2249 = vmatprep.mubr.bf16.mxu0 0
      %2250 = vmatmul.mubr.bf16.gmra.mrb[0].mxu0 %v2146
      %v2251 = vpop.f32.mrb[0].mxu0
      %v2252 = vadd.f32 %v2051, %v2251
      %v2253 = vpop.f32.mrb[0].mxu0
      %v2254 = vpop.f32.mrb[0].mxu0
      %v2255 = vadd.f32 %v2054, %v2254
      %v2256 = vpop.f32.mrb[0].mxu0
      %2257 = vmatprep.mubr.bf16.mxu0 0
      %2258 = vmatmul.mubr.bf16.gmra.mrb[0].mxu0 %v2148
      %v2259 = vpop.f32.mrb[0].mxu0
      %v2260 = vadd.f32 %v2059, %v2259
      %v2261 = vpop.f32.mrb[0].mxu0
      %v2262 = vpop.f32.mrb[0].mxu0
      %v2263 = vadd.f32 %v2062, %v2262
      %v2264 = vpop.f32.mrb[0].mxu0
      %2265 = vmatprep.mubr.bf16.mxu0 0
      %2266 = vmatmul.mubr.bf16.gmra.mrb[0].mxu0 %v2150
      %v2267 = vpop.f32.mrb[0].mxu0
      %v2268 = vadd.f32 %v2067, %v2267
      %v2269 = vpop.f32.mrb[0].mxu0
      %v2270 = vpop.f32.mrb[0].mxu0
      %v2271 = vadd.f32 %v2070, %v2270
      %v2272 = vpop.f32.mrb[0].mxu0
      %2273 = vmatprep.mubr.bf16.mxu0 0
      %2274 = vmatmul.mubr.bf16.gmra.mrb[0].mxu0 %v2152
      %v2275 = vpop.f32.mrb[0].mxu0
      %v2276 = vadd.f32 %v2075, %v2275
      %v2277 = vpop.f32.mrb[0].mxu0
      %v2278 = vpop.f32.mrb[0].mxu0
      %v2279 = vadd.f32 %v2078, %v2278
      %v2280 = vpop.f32.mrb[0].mxu0
      %2281 = vmatprep.mubr.bf16.mxu0 0
      %2282 = vmatmul.mubr.bf16.gmra.mrb[0].mxu0 %v2154
      %v2283 = vpop.f32.mrb[0].mxu0
      %v2284 = vadd.f32 %v2083, %v2283
      %v2285 = vpop.f32.mrb[0].mxu0
      %v2286 = vpop.f32.mrb[0].mxu0
      %v2287 = vadd.f32 %v2086, %v2286
      %v2288 = vpop.f32.mrb[0].mxu0
      %2289 = vmatprep.mubr.bf16.mxu0 0
      %2290 = vmatmul.mubr.bf16.gmra.mrb[0].mxu0 %v2156
      %v2291 = vpop.f32.mrb[0].mxu0
      %v2292 = vadd.f32 %v2091, %v2291
      %v2293 = vpop.f32.mrb[0].mxu0
      %v2294 = vpop.f32.mrb[0].mxu0
      %v2295 = vadd.f32 %v2094, %v2294
      %v2296 = vpop.f32.mrb[0].mxu0
      %2297 = vmatprep.mubr.bf16.mxu0 0
      %2298 = vmatmul.mubr.bf16.gmra.mrb[0].mxu0 %v2158
      %v2299 = vpop.f32.mrb[0].mxu0
      %v2300 = vadd.f32 %v2099, %v2299
      %v2301 = vpop.f32.mrb[0].mxu0
      %v2302 = vpop.f32.mrb[0].mxu0
      %v2303 = vadd.f32 %v2102, %v2302
      %v2304 = vpop.f32.mrb[0].mxu0
      %2305 = vmatprep.mubr.bf16.mxu0 0
      %2306 = vmatmul.mubr.bf16.gmra.mrb[0].mxu0 %v2160
      %v2307 = vpop.f32.mrb[0].mxu0
      %v2308 = vadd.f32 %v2107, %v2307
      %v2309 = vpop.f32.mrb[0].mxu0
      %v2310 = vpop.f32.mrb[0].mxu0
      %v2311 = vadd.f32 %v2110, %v2310
      %v2312 = vpop.f32.mrb[0].mxu0
      %2313 = vmatprep.mubr.bf16.mxu0 0
      %2314 = vmatmul.mubr.bf16.gmra.mrb[0].mxu0 %v2162
      %v2315 = vpop.f32.mrb[0].mxu0
      %v2316 = vadd.f32 %v2115, %v2315
      %v2317 = vpop.f32.mrb[0].mxu0
      %v2318 = vpop.f32.mrb[0].mxu0
      %v2319 = vadd.f32 %v2118, %v2318
      %v2320 = vpop.f32.mrb[0].mxu0
      %2321 = vmatprep.mubr.bf16.mxu0 0
      %2322 = vmatmul.mubr.bf16.gmra.mrb[0].mxu0 %v2164
      %v2323 = vpop.f32.mrb[0].mxu0
      %v2324 = vadd.f32 %v2123, %v2323
      %v2325 = vpop.f32.mrb[0].mxu0
      %v2326 = vpop.f32.mrb[0].mxu0
      %v2327 = vadd.f32 %v2126, %v2326
      %v2328 = vpop.f32.mrb[0].mxu0
      %2329 = vdwg.mxu0
      %s2330 = scalar_lea.vmem [#allocation2], 24
      %v2331 = vld [vmem:[%s2330] sm:$0xf]
      %v2332 = vld [vmem:[%s2330 + $0x4] sm:$0xf]
      %v2333 = vld [vmem:[%s2330 + $0xc] sm:$0xf]
      %v2334 = vld [vmem:[%s2330 + $0x10] sm:$0xf]
      %v2335 = vld [vmem:[%s2330 + $0x18] sm:$0xf]
      %v2336 = vld [vmem:[%s2330 + $0x1c] sm:$0xf]
      %v2337 = vld [vmem:[%s2330 + $0x24] sm:$0xf]
      %v2338 = vld [vmem:[%s2330 + $0x28] sm:$0xf]
      %v2339 = vld [vmem:[%s2330 + $0x30] sm:$0xf]
      %v2340 = vld [vmem:[%s2330 + $0x34] sm:$0xf]
      %v2341 = vld [vmem:[%s2330 + $0x3c] sm:$0xf]
      %v2342 = vld [vmem:[%s2330 + $0x40] sm:$0xf]
      %v2343 = vld [vmem:[%s2330 + $0x48] sm:$0xf]
      %v2344 = vld [vmem:[%s2330 + $0x4c] sm:$0xf]
      %v2345 = vld [vmem:[%s2330 + $0x54] sm:$0xf]
      %v2346 = vld [vmem:[%s2330 + $0x58] sm:$0xf]
      %v2347 = vld [vmem:[%s2330 + $0x60] sm:$0xf]
      %v2348 = vld [vmem:[%s2330 + $0x64] sm:$0xf]
      %v2349 = vld [vmem:[%s2330 + $0x6c] sm:$0xf]
      %v2350 = vld [vmem:[%s2330 + $0x70] sm:$0xf]
      %v2351 = vld [vmem:[%s2330 + $0x78] sm:$0xf]
      %v2352 = vld [vmem:[%s2330 + $0x7c] sm:$0xf]
      %v2353 = vld [vmem:[%s2330 + $0x84] sm:$0xf]
      %v2354 = vld [vmem:[%s2330 + $0x88] sm:$0xf]
      %v2355 = vld [vmem:[%s2330 + $0x90] sm:$0xf]
      %v2356 = vld [vmem:[%s2330 + $0x94] sm:$0xf]
      %v2357 = vld [vmem:[%s2330 + $0x9c] sm:$0xf]
      %v2358 = vld [vmem:[%s2330 + $0xa0] sm:$0xf]
      %v2359 = vld [vmem:[%s2330 + $0xa8] sm:$0xf]
      %v2360 = vld [vmem:[%s2330 + $0xac] sm:$0xf]
      %v2361 = vld [vmem:[%s2330 + $0xb4] sm:$0xf]
      %v2362 = vld [vmem:[%s2330 + $0xb8] sm:$0xf]
      %v2363 = vld [vmem:[%s2330 + $0x8] sm:$0x1]
      %v2364 = vld [vmem:[%s2330 + $0x14] sm:$0x1]
      %v2365 = vld [vmem:[%s2330 + $0x20] sm:$0x1]
      %v2366 = vld [vmem:[%s2330 + $0x2c] sm:$0x1]
      %v2367 = vld [vmem:[%s2330 + $0x38] sm:$0x1]
      %v2368 = vld [vmem:[%s2330 + $0x44] sm:$0x1]
      %v2369 = vld [vmem:[%s2330 + $0x50] sm:$0x1]
      %v2370 = vld [vmem:[%s2330 + $0x5c] sm:$0x1]
      %v2371 = vld [vmem:[%s2330 + $0x68] sm:$0x1]
      %v2372 = vld [vmem:[%s2330 + $0x74] sm:$0x1]
      %v2373 = vld [vmem:[%s2330 + $0x80] sm:$0x1]
      %v2374 = vld [vmem:[%s2330 + $0x8c] sm:$0x1]
      %v2375 = vld [vmem:[%s2330 + $0x98] sm:$0x1]
      %v2376 = vld [vmem:[%s2330 + $0xa4] sm:$0x1]
      %v2377 = vld [vmem:[%s2330 + $0xb0] sm:$0x1]
      %v2378 = vld [vmem:[%s2330 + $0xbc] sm:$0x1]
      %v2379 = vld [vmem:[%s2330] sm:$0xe]
      %v2380 = vld [vmem:[%s2330 + $0xc] sm:$0xe]
      %v2381 = vld [vmem:[%s2330 + $0x18] sm:$0xe]
      %v2382 = vld [vmem:[%s2330 + $0x24] sm:$0xe]
      %v2383 = vld [vmem:[%s2330 + $0x30] sm:$0xe]
      %v2384 = vld [vmem:[%s2330 + $0x3c] sm:$0xe]
      %v2385 = vld [vmem:[%s2330 + $0x48] sm:$0xe]
      %v2386 = vld [vmem:[%s2330 + $0x54] sm:$0xe]
      %v2387 = vld [vmem:[%s2330 + $0x60] sm:$0xe]
      %v2388 = vld [vmem:[%s2330 + $0x6c] sm:$0xe]
      %v2389 = vld [vmem:[%s2330 + $0x78] sm:$0xe]
      %v2390 = vld [vmem:[%s2330 + $0x84] sm:$0xe]
      %v2391 = vld [vmem:[%s2330 + $0x90] sm:$0xe]
      %v2392 = vld [vmem:[%s2330 + $0x9c] sm:$0xe]
      %v2393 = vld [vmem:[%s2330 + $0xa8] sm:$0xe]
      %v2394 = vld [vmem:[%s2330 + $0xb4] sm:$0xe]
      %v2427 = vunpack.c.l.b16 %v2331
      %v2428 = vunpack.c.l.b16 %v2332
      %v2429 = vunpack.c.l.b16 %v2333
      %v2430 = vunpack.c.l.b16 %v2334
      %v2431 = vunpack.c.l.b16 %v2335
      %v2432 = vunpack.c.l.b16 %v2336
      %v2433 = vunpack.c.l.b16 %v2337
      %v2434 = vunpack.c.l.b16 %v2338
      %v2435 = vunpack.c.l.b16 %v2339
      %v2436 = vunpack.c.l.b16 %v2340
      %v2437 = vunpack.c.l.b16 %v2341
      %v2438 = vunpack.c.l.b16 %v2342
      %v2439 = vunpack.c.l.b16 %v2343
      %v2440 = vunpack.c.l.b16 %v2344
      %v2441 = vunpack.c.l.b16 %v2345
      %v2442 = vunpack.c.l.b16 %v2346
      %v2443 = vunpack.c.l.b16 %v2347
      %v2444 = vunpack.c.l.b16 %v2348
      %v2445 = vunpack.c.l.b16 %v2349
      %v2446 = vunpack.c.l.b16 %v2350
      %v2447 = vunpack.c.l.b16 %v2351
      %v2448 = vunpack.c.l.b16 %v2352
      %v2449 = vunpack.c.l.b16 %v2353
      %v2450 = vunpack.c.l.b16 %v2354
      %v2451 = vunpack.c.l.b16 %v2355
      %v2452 = vunpack.c.l.b16 %v2356
      %v2453 = vunpack.c.l.b16 %v2357
      %v2454 = vunpack.c.l.b16 %v2358
      %v2455 = vunpack.c.l.b16 %v2359
      %v2456 = vunpack.c.l.b16 %v2360
      %v2457 = vunpack.c.l.b16 %v2361
      %v2458 = vunpack.c.l.b16 %v2362
      %v2459 = vpack.c.b16 %v2428, %v2427
      %v2460 = vpack.c.b16 %v2430, %v2429
      %v2461 = vpack.c.b16 %v2432, %v2431
      %v2462 = vpack.c.b16 %v2434, %v2433
      %v2463 = vpack.c.b16 %v2436, %v2435
      %v2464 = vpack.c.b16 %v2438, %v2437
      %v2465 = vpack.c.b16 %v2440, %v2439
      %v2466 = vpack.c.b16 %v2442, %v2441
      %v2467 = vpack.c.b16 %v2444, %v2443
      %v2468 = vpack.c.b16 %v2446, %v2445
      %v2469 = vpack.c.b16 %v2448, %v2447
      %v2470 = vpack.c.b16 %v2450, %v2449
      %v2471 = vpack.c.b16 %v2452, %v2451
      %v2472 = vpack.c.b16 %v2454, %v2453
      %v2473 = vpack.c.b16 %v2456, %v2455
      %v2474 = vpack.c.b16 %v2458, %v2457
      %v2491 = vunpack.c.l.b16 %v2363
      %v2492 = vunpack.c.l.b16 %v2364
      %v2493 = vunpack.c.l.b16 %v2365
      %v2494 = vunpack.c.l.b16 %v2366
      %v2495 = vunpack.c.l.b16 %v2367
      %v2496 = vunpack.c.l.b16 %v2368
      %v2497 = vunpack.c.l.b16 %v2369
      %v2498 = vunpack.c.l.b16 %v2370
      %v2499 = vunpack.c.l.b16 %v2371
      %v2500 = vunpack.c.l.b16 %v2372
      %v2501 = vunpack.c.l.b16 %v2373
      %v2502 = vunpack.c.l.b16 %v2374
      %v2503 = vunpack.c.l.b16 %v2375
      %v2504 = vunpack.c.l.b16 %v2376
      %v2505 = vunpack.c.l.b16 %v2377
      %v2506 = vunpack.c.l.b16 %v2378
      %v2507 = vpack.c.b16 %v2491, %v2491
      %v2508 = vpack.c.b16 %v2492, %v2492
      %v2509 = vpack.c.b16 %v2493, %v2493
      %v2510 = vpack.c.b16 %v2494, %v2494
      %v2511 = vpack.c.b16 %v2495, %v2495
      %v2512 = vpack.c.b16 %v2496, %v2496
      %v2513 = vpack.c.b16 %v2497, %v2497
      %v2514 = vpack.c.b16 %v2498, %v2498
      %v2515 = vpack.c.b16 %v2499, %v2499
      %v2516 = vpack.c.b16 %v2500, %v2500
      %v2517 = vpack.c.b16 %v2501, %v2501
      %v2518 = vpack.c.b16 %v2502, %v2502
      %v2519 = vpack.c.b16 %v2503, %v2503
      %v2520 = vpack.c.b16 %v2504, %v2504
      %v2521 = vpack.c.b16 %v2505, %v2505
      %v2522 = vpack.c.b16 %v2506, %v2506
      %v2524 = vshrl.u32 %v2459, 16
      %v2526 = vshll.u32 %v2459, 16
      %v2528 = vrot.slane %v2526, 1
      %v2529 = vor.u32 %v2524, %v2528
      %v2531 = vshll.u32 %v2507, 16
      %v2533 = vrot.slane %v2531, 1
      %v2534 = vsel %vm893, %v2529, %v2533
      %v2536 = vshrl.u32 %v2460, 16
      %v2538 = vshll.u32 %v2460, 16
      %v2540 = vrot.slane %v2538, 1
      %v2541 = vor.u32 %v2536, %v2540
      %v2543 = vshll.u32 %v2508, 16
      %v2545 = vrot.slane %v2543, 1
      %v2546 = vsel %vm893, %v2541, %v2545
      %v2548 = vshrl.u32 %v2461, 16
      %v2550 = vshll.u32 %v2461, 16
      %v2552 = vrot.slane %v2550, 1
      %v2553 = vor.u32 %v2548, %v2552
      %v2555 = vshll.u32 %v2509, 16
      %v2557 = vrot.slane %v2555, 1
      %v2558 = vsel %vm893, %v2553, %v2557
      %v2560 = vshrl.u32 %v2462, 16
      %v2562 = vshll.u32 %v2462, 16
      %v2564 = vrot.slane %v2562, 1
      %v2565 = vor.u32 %v2560, %v2564
      %v2567 = vshll.u32 %v2510, 16
      %v2569 = vrot.slane %v2567, 1
      %v2570 = vsel %vm893, %v2565, %v2569
      %v2572 = vshrl.u32 %v2463, 16
      %v2574 = vshll.u32 %v2463, 16
      %v2576 = vrot.slane %v2574, 1
      %v2577 = vor.u32 %v2572, %v2576
      %v2579 = vshll.u32 %v2511, 16
      %v2581 = vrot.slane %v2579, 1
      %v2582 = vsel %vm893, %v2577, %v2581
      %v2584 = vshrl.u32 %v2464, 16
      %v2586 = vshll.u32 %v2464, 16
      %v2588 = vrot.slane %v2586, 1
      %v2589 = vor.u32 %v2584, %v2588
      %v2591 = vshll.u32 %v2512, 16
      %v2593 = vrot.slane %v2591, 1
      %v2594 = vsel %vm893, %v2589, %v2593
      %v2596 = vshrl.u32 %v2465, 16
      %v2598 = vshll.u32 %v2465, 16
      %v2600 = vrot.slane %v2598, 1
      %v2601 = vor.u32 %v2596, %v2600
      %v2603 = vshll.u32 %v2513, 16
      %v2605 = vrot.slane %v2603, 1
      %v2606 = vsel %vm893, %v2601, %v2605
      %v2608 = vshrl.u32 %v2466, 16
      %v2610 = vshll.u32 %v2466, 16
      %v2612 = vrot.slane %v2610, 1
      %v2613 = vor.u32 %v2608, %v2612
      %v2615 = vshll.u32 %v2514, 16
      %v2617 = vrot.slane %v2615, 1
      %v2618 = vsel %vm893, %v2613, %v2617
      %v2620 = vshrl.u32 %v2467, 16
      %v2622 = vshll.u32 %v2467, 16
      %v2624 = vrot.slane %v2622, 1
      %v2625 = vor.u32 %v2620, %v2624
      %v2627 = vshll.u32 %v2515, 16
      %v2629 = vrot.slane %v2627, 1
      %v2630 = vsel %vm893, %v2625, %v2629
      %v2632 = vshrl.u32 %v2468, 16
      %v2634 = vshll.u32 %v2468, 16
      %v2636 = vrot.slane %v2634, 1
      %v2637 = vor.u32 %v2632, %v2636
      %v2639 = vshll.u32 %v2516, 16
      %v2641 = vrot.slane %v2639, 1
      %v2642 = vsel %vm893, %v2637, %v2641
      %v2644 = vshrl.u32 %v2469, 16
      %v2646 = vshll.u32 %v2469, 16
      %v2648 = vrot.slane %v2646, 1
      %v2649 = vor.u32 %v2644, %v2648
      %v2651 = vshll.u32 %v2517, 16
      %v2653 = vrot.slane %v2651, 1
      %v2654 = vsel %vm893, %v2649, %v2653
      %v2656 = vshrl.u32 %v2470, 16
      %v2658 = vshll.u32 %v2470, 16
      %v2660 = vrot.slane %v2658, 1
      %v2661 = vor.u32 %v2656, %v2660
      %v2663 = vshll.u32 %v2518, 16
      %v2665 = vrot.slane %v2663, 1
      %v2666 = vsel %vm893, %v2661, %v2665
      %v2668 = vshrl.u32 %v2471, 16
      %v2670 = vshll.u32 %v2471, 16
      %v2672 = vrot.slane %v2670, 1
      %v2673 = vor.u32 %v2668, %v2672
      %v2675 = vshll.u32 %v2519, 16
      %v2677 = vrot.slane %v2675, 1
      %v2678 = vsel %vm893, %v2673, %v2677
      %v2680 = vshrl.u32 %v2472, 16
      %v2682 = vshll.u32 %v2472, 16
      %v2684 = vrot.slane %v2682, 1
      %v2685 = vor.u32 %v2680, %v2684
      %v2687 = vshll.u32 %v2520, 16
      %v2689 = vrot.slane %v2687, 1
      %v2690 = vsel %vm893, %v2685, %v2689
      %v2692 = vshrl.u32 %v2473, 16
      %v2694 = vshll.u32 %v2473, 16
      %v2696 = vrot.slane %v2694, 1
      %v2697 = vor.u32 %v2692, %v2696
      %v2699 = vshll.u32 %v2521, 16
      %v2701 = vrot.slane %v2699, 1
      %v2702 = vsel %vm893, %v2697, %v2701
      %v2704 = vshrl.u32 %v2474, 16
      %v2706 = vshll.u32 %v2474, 16
      %v2708 = vrot.slane %v2706, 1
      %v2709 = vor.u32 %v2704, %v2708
      %v2711 = vshll.u32 %v2522, 16
      %v2713 = vrot.slane %v2711, 1
      %v2714 = vsel %vm893, %v2709, %v2713
      %2715 = vrot.lane.b32.xlu0 %v2534, 4
      %v2716 = vpop.permute.xlu0 %2715
      %2717 = vrot.lane.b32.xlu0 %v2546, 4
      %v2718 = vpop.permute.xlu0 %2717
      %2719 = vrot.lane.b32.xlu0 %v2558, 4
      %v2720 = vpop.permute.xlu0 %2719
      %2721 = vrot.lane.b32.xlu0 %v2570, 4
      %v2722 = vpop.permute.xlu0 %2721
      %2723 = vrot.lane.b32.xlu0 %v2582, 4
      %v2724 = vpop.permute.xlu0 %2723
      %2725 = vrot.lane.b32.xlu0 %v2594, 4
      %v2726 = vpop.permute.xlu0 %2725
      %2727 = vrot.lane.b32.xlu0 %v2606, 4
      %v2728 = vpop.permute.xlu0 %2727
      %2729 = vrot.lane.b32.xlu0 %v2618, 4
      %v2730 = vpop.permute.xlu0 %2729
      %2731 = vrot.lane.b32.xlu0 %v2630, 4
      %v2732 = vpop.permute.xlu0 %2731
      %2733 = vrot.lane.b32.xlu0 %v2642, 4
      %v2734 = vpop.permute.xlu0 %2733
      %2735 = vrot.lane.b32.xlu0 %v2654, 4
      %v2736 = vpop.permute.xlu0 %2735
      %2737 = vrot.lane.b32.xlu0 %v2666, 4
      %v2738 = vpop.permute.xlu0 %2737
      %2739 = vrot.lane.b32.xlu0 %v2678, 4
      %v2740 = vpop.permute.xlu0 %2739
      %2741 = vrot.lane.b32.xlu0 %v2690, 4
      %v2742 = vpop.permute.xlu0 %2741
      %2743 = vrot.lane.b32.xlu0 %v2702, 4
      %v2744 = vpop.permute.xlu0 %2743
      %2745 = vrot.lane.b32.xlu0 %v2714, 4
      %v2746 = vpop.permute.xlu0 %2745
      %v2763 = vunpack.c.l.b16 %v2379
      %v2764 = vunpack.c.l.b16 %v2380
      %v2765 = vunpack.c.l.b16 %v2381
      %v2766 = vunpack.c.l.b16 %v2382
      %v2767 = vunpack.c.l.b16 %v2383
      %v2768 = vunpack.c.l.b16 %v2384
      %v2769 = vunpack.c.l.b16 %v2385
      %v2770 = vunpack.c.l.b16 %v2386
      %v2771 = vunpack.c.l.b16 %v2387
      %v2772 = vunpack.c.l.b16 %v2388
      %v2773 = vunpack.c.l.b16 %v2389
      %v2774 = vunpack.c.l.b16 %v2390
      %v2775 = vunpack.c.l.b16 %v2391
      %v2776 = vunpack.c.l.b16 %v2392
      %v2777 = vunpack.c.l.b16 %v2393
      %v2778 = vunpack.c.l.b16 %v2394
      %v2779 = vpack.c.b16 %v2428, %v2763
      %v2780 = vpack.c.b16 %v2430, %v2764
      %v2781 = vpack.c.b16 %v2432, %v2765
      %v2782 = vpack.c.b16 %v2434, %v2766
      %v2783 = vpack.c.b16 %v2436, %v2767
      %v2784 = vpack.c.b16 %v2438, %v2768
      %v2785 = vpack.c.b16 %v2440, %v2769
      %v2786 = vpack.c.b16 %v2442, %v2770
      %v2787 = vpack.c.b16 %v2444, %v2771
      %v2788 = vpack.c.b16 %v2446, %v2772
      %v2789 = vpack.c.b16 %v2448, %v2773
      %v2790 = vpack.c.b16 %v2450, %v2774
      %v2791 = vpack.c.b16 %v2452, %v2775
      %v2792 = vpack.c.b16 %v2454, %v2776
      %v2793 = vpack.c.b16 %v2456, %v2777
      %v2794 = vpack.c.b16 %v2458, %v2778
      %v2795 = vrot.slane %v2779, 1
      %v2796 = vrot.slane %v2507, 1
      %v2797 = vsel %vm1166, %v2795, %v2796
      %v2798 = vrot.slane %v2780, 1
      %v2799 = vrot.slane %v2508, 1
      %v2800 = vsel %vm1166, %v2798, %v2799
      %v2801 = vrot.slane %v2781, 1
      %v2802 = vrot.slane %v2509, 1
      %v2803 = vsel %vm1166, %v2801, %v2802
      %v2804 = vrot.slane %v2782, 1
      %v2805 = vrot.slane %v2510, 1
      %v2806 = vsel %vm1166, %v2804, %v2805
      %v2807 = vrot.slane %v2783, 1
      %v2808 = vrot.slane %v2511, 1
      %v2809 = vsel %vm1166, %v2807, %v2808
      %v2810 = vrot.slane %v2784, 1
      %v2811 = vrot.slane %v2512, 1
      %v2812 = vsel %vm1166, %v2810, %v2811
      %v2813 = vrot.slane %v2785, 1
      %v2814 = vrot.slane %v2513, 1
      %v2815 = vsel %vm1166, %v2813, %v2814
      %v2816 = vrot.slane %v2786, 1
      %v2817 = vrot.slane %v2514, 1
      %v2818 = vsel %vm1166, %v2816, %v2817
      %v2819 = vrot.slane %v2787, 1
      %v2820 = vrot.slane %v2515, 1
      %v2821 = vsel %vm1166, %v2819, %v2820
      %v2822 = vrot.slane %v2788, 1
      %v2823 = vrot.slane %v2516, 1
      %v2824 = vsel %vm1166, %v2822, %v2823
      %v2825 = vrot.slane %v2789, 1
      %v2826 = vrot.slane %v2517, 1
      %v2827 = vsel %vm1166, %v2825, %v2826
      %v2828 = vrot.slane %v2790, 1
      %v2829 = vrot.slane %v2518, 1
      %v2830 = vsel %vm1166, %v2828, %v2829
      %v2831 = vrot.slane %v2791, 1
      %v2832 = vrot.slane %v2519, 1
      %v2833 = vsel %vm1166, %v2831, %v2832
      %v2834 = vrot.slane %v2792, 1
      %v2835 = vrot.slane %v2520, 1
      %v2836 = vsel %vm1166, %v2834, %v2835
      %v2837 = vrot.slane %v2793, 1
      %v2838 = vrot.slane %v2521, 1
      %v2839 = vsel %vm1166, %v2837, %v2838
      %v2840 = vrot.slane %v2794, 1
      %v2841 = vrot.slane %v2522, 1
      %v2842 = vsel %vm1166, %v2840, %v2841
      %2843 = vrot.lane.b32.xlu0 %v2797, 8
      %v2844 = vpop.permute.xlu0 %2843
      %2845 = vrot.lane.b32.xlu0 %v2800, 8
      %v2846 = vpop.permute.xlu0 %2845
      %2847 = vrot.lane.b32.xlu0 %v2803, 8
      %v2848 = vpop.permute.xlu0 %2847
      %2849 = vrot.lane.b32.xlu0 %v2806, 8
      %v2850 = vpop.permute.xlu0 %2849
      %2851 = vrot.lane.b32.xlu0 %v2809, 8
      %v2852 = vpop.permute.xlu0 %2851
      %2853 = vrot.lane.b32.xlu0 %v2812, 8
      %v2854 = vpop.permute.xlu0 %2853
      %2855 = vrot.lane.b32.xlu0 %v2815, 8
      %v2856 = vpop.permute.xlu0 %2855
      %2857 = vrot.lane.b32.xlu0 %v2818, 8
      %v2858 = vpop.permute.xlu0 %2857
      %2859 = vrot.lane.b32.xlu0 %v2821, 8
      %v2860 = vpop.permute.xlu0 %2859
      %2861 = vrot.lane.b32.xlu0 %v2824, 8
      %v2862 = vpop.permute.xlu0 %2861
      %2863 = vrot.lane.b32.xlu0 %v2827, 8
      %v2864 = vpop.permute.xlu0 %2863
      %2865 = vrot.lane.b32.xlu0 %v2830, 8
      %v2866 = vpop.permute.xlu0 %2865
      %2867 = vrot.lane.b32.xlu0 %v2833, 8
      %v2868 = vpop.permute.xlu0 %2867
      %2869 = vrot.lane.b32.xlu0 %v2836, 8
      %v2870 = vpop.permute.xlu0 %2869
      %2871 = vrot.lane.b32.xlu0 %v2839, 8
      %v2872 = vpop.permute.xlu0 %2871
      %2873 = vrot.lane.b32.xlu0 %v2842, 8
      %v2874 = vpop.permute.xlu0 %2873
      %v2876 = vsel %vm1247, %v2459, %v2716
      %v2878 = vsel %vm1247, %v2460, %v2718
      %v2880 = vsel %vm1247, %v2461, %v2720
      %v2882 = vsel %vm1247, %v2462, %v2722
      %v2884 = vsel %vm1247, %v2463, %v2724
      %v2886 = vsel %vm1247, %v2464, %v2726
      %v2888 = vsel %vm1247, %v2465, %v2728
      %v2890 = vsel %vm1247, %v2466, %v2730
      %v2892 = vsel %vm1247, %v2467, %v2732
      %v2894 = vsel %vm1247, %v2468, %v2734
      %v2896 = vsel %vm1247, %v2469, %v2736
      %v2898 = vsel %vm1247, %v2470, %v2738
      %v2900 = vsel %vm1247, %v2471, %v2740
      %v2902 = vsel %vm1247, %v2472, %v2742
      %v2904 = vsel %vm1247, %v2473, %v2744
      %v2906 = vsel %vm1247, %v2474, %v2746
      %v2908 = vsel %vm1280, %v2876, %v2844
      %v2910 = vsel %vm1280, %v2878, %v2846
      %v2912 = vsel %vm1280, %v2880, %v2848
      %v2914 = vsel %vm1280, %v2882, %v2850
      %v2916 = vsel %vm1280, %v2884, %v2852
      %v2918 = vsel %vm1280, %v2886, %v2854
      %v2920 = vsel %vm1280, %v2888, %v2856
      %v2922 = vsel %vm1280, %v2890, %v2858
      %v2924 = vsel %vm1280, %v2892, %v2860
      %v2926 = vsel %vm1280, %v2894, %v2862
      %v2928 = vsel %vm1280, %v2896, %v2864
      %v2930 = vsel %vm1280, %v2898, %v2866
      %v2932 = vsel %vm1280, %v2900, %v2868
      %v2934 = vsel %vm1280, %v2902, %v2870
      %v2936 = vsel %vm1280, %v2904, %v2872
      %v2938 = vsel %vm1280, %v2906, %v2874
      %s2939 = scalar_lea.vmem %s1, 16
      %v2940 = vld [vmem:[%s2939] sm:$0xf]
      %v2941 = vld [vmem:[%s2939 + $0x4] sm:$0x3]
      %v2944 = vunpack.c.l.b16 %v2940
      %v2945 = vunpack.c.l.b16 %v2941
      %v2946 = vpack.c.b16 %v2945, %v2944
      %v2947 = vsel %vm1931, %v2908, 0
      %v2949 = vsel %vm1931, %v2910, 0
      %v2951 = vsel %vm1931, %v2912, 0
      %v2953 = vsel %vm1931, %v2914, 0
      %v2955 = vsel %vm1931, %v2916, 0
      %v2957 = vsel %vm1931, %v2918, 0
      %v2959 = vsel %vm1931, %v2920, 0
      %v2961 = vsel %vm1931, %v2922, 0
      %v2963 = vsel %vm1931, %v2924, 0
      %v2965 = vsel %vm1931, %v2926, 0
      %v2967 = vsel %vm1931, %v2928, 0
      %v2969 = vsel %vm1931, %v2930, 0
      %v2971 = vsel %vm1931, %v2932, 0
      %v2973 = vsel %vm1931, %v2934, 0
      %v2975 = vsel %vm1931, %v2936, 0
      %v2977 = vsel %vm1931, %v2938, 0
      %v2980 = vsel %vm1964, %v2946, 0
      %2982 = vmatprep.subr.bf16.mxu0 0
      %2983 = vmatpush1.bf16.msra.mxu0 %v2980
      %2984 = vmatprep.subr.bf16.mxu0 0
      %2985 = vmatpush1.bf16.msra.mxu0 0
      %2986 = vmatprep.subr.bf16.mxu0 0
      %2987 = vmatpush1.bf16.msra.mxu0 0
      %2988 = vmatprep.subr.bf16.mxu0 0
      %2989 = vmatpush1.bf16.msra.mxu0 0
      %2990 = vmatprep.subr.bf16.mxu0 0
      %2991 = vmatpush1.bf16.msra.mxu0 0
      %2992 = vmatprep.subr.bf16.mxu0 0
      %2993 = vmatpush1.bf16.msra.mxu0 0
      %2994 = vmatprep.subr.bf16.mxu0 0
      %2995 = vmatpush1.bf16.msra.mxu0 0
      %2996 = vmatprep.subr.bf16.mxu0 0
      %2997 = vmatpush1.bf16.msra.mxu0 0
      %2998 = vmatprep.subr.bf16.mxu0 0
      %2999 = vmatpush1.bf16.msra.mxu0 0
      %3000 = vmatprep.subr.bf16.mxu0 0
      %3001 = vmatpush1.bf16.msra.mxu0 0
      %3002 = vmatprep.subr.bf16.mxu0 0
      %3003 = vmatpush1.bf16.msra.mxu0 0
      %3004 = vmatprep.subr.bf16.mxu0 0
      %3005 = vmatpush1.bf16.msra.mxu0 0
      %3006 = vmatprep.subr.bf16.mxu0 0
      %3007 = vmatpush1.bf16.msra.mxu0 0
      %3008 = vmatprep.subr.bf16.mxu0 0
      %3009 = vmatpush1.bf16.msra.mxu0 0
      %3010 = vmatprep.subr.bf16.mxu0 0
      %3011 = vmatpush1.bf16.msra.mxu0 0
      %3012 = vmatprep.subr.bf16.mxu0 0
      %3013 = vmatpush1.bf16.msra.mxu0 0
      %3014 = vmatprep.mubr.bf16.mxu0 0
      %3015 = vmatmul.mubr.bf16.gmra.mrb[0].mxu0 %v2947
      %v3016 = vpop.f32.mrb[0].mxu0
      %v3017 = vadd.f32 0.0, %v3016
      %v3018 = vpop.f32.mrb[0].mxu0
      %v3019 = vpop.f32.mrb[0].mxu0
      %v3020 = vadd.f32 0.0, %v3019
      %v3021 = vpop.f32.mrb[0].mxu0
      %3022 = vmatprep.mubr.bf16.mxu0 0
      %3023 = vmatmul.mubr.bf16.gmra.mrb[0].mxu0 %v2949
      %v3024 = vpop.f32.mrb[0].mxu0
      %v3025 = vadd.f32 0.0, %v3024
      %v3026 = vpop.f32.mrb[0].mxu0
      %v3027 = vpop.f32.mrb[0].mxu0
      %v3028 = vadd.f32 0.0, %v3027
      %v3029 = vpop.f32.mrb[0].mxu0
      %3030 = vmatprep.mubr.bf16.mxu0 0
      %3031 = vmatmul.mubr.bf16.gmra.mrb[0].mxu0 %v2951
      %v3032 = vpop.f32.mrb[0].mxu0
      %v3033 = vadd.f32 0.0, %v3032
      %v3034 = vpop.f32.mrb[0].mxu0
      %v3035 = vpop.f32.mrb[0].mxu0
      %v3036 = vadd.f32 0.0, %v3035
      %v3037 = vpop.f32.mrb[0].mxu0
      %3038 = vmatprep.mubr.bf16.mxu0 0
      %3039 = vmatmul.mubr.bf16.gmra.mrb[0].mxu0 %v2953
      %v3040 = vpop.f32.mrb[0].mxu0
      %v3041 = vadd.f32 0.0, %v3040
      %v3042 = vpop.f32.mrb[0].mxu0
      %v3043 = vpop.f32.mrb[0].mxu0
      %v3044 = vadd.f32 0.0, %v3043
      %v3045 = vpop.f32.mrb[0].mxu0
      %3046 = vmatprep.mubr.bf16.mxu0 0
      %3047 = vmatmul.mubr.bf16.gmra.mrb[0].mxu0 %v2955
      %v3048 = vpop.f32.mrb[0].mxu0
      %v3049 = vadd.f32 0.0, %v3048
      %v3050 = vpop.f32.mrb[0].mxu0
      %v3051 = vpop.f32.mrb[0].mxu0
      %v3052 = vadd.f32 0.0, %v3051
      %v3053 = vpop.f32.mrb[0].mxu0
      %3054 = vmatprep.mubr.bf16.mxu0 0
      %3055 = vmatmul.mubr.bf16.gmra.mrb[0].mxu0 %v2957
      %v3056 = vpop.f32.mrb[0].mxu0
      %v3057 = vadd.f32 0.0, %v3056
      %v3058 = vpop.f32.mrb[0].mxu0
      %v3059 = vpop.f32.mrb[0].mxu0
      %v3060 = vadd.f32 0.0, %v3059
      %v3061 = vpop.f32.mrb[0].mxu0
      %3062 = vmatprep.mubr.bf16.mxu0 0
      %3063 = vmatmul.mubr.bf16.gmra.mrb[0].mxu0 %v2959
      %v3064 = vpop.f32.mrb[0].mxu0
      %v3065 = vadd.f32 0.0, %v3064
      %v3066 = vpop.f32.mrb[0].mxu0
      %v3067 = vpop.f32.mrb[0].mxu0
      %v3068 = vadd.f32 0.0, %v3067
      %v3069 = vpop.f32.mrb[0].mxu0
      %3070 = vmatprep.mubr.bf16.mxu0 0
      %3071 = vmatmul.mubr.bf16.gmra.mrb[0].mxu0 %v2961
      %v3072 = vpop.f32.mrb[0].mxu0
      %v3073 = vadd.f32 0.0, %v3072
      %v3074 = vpop.f32.mrb[0].mxu0
      %v3075 = vpop.f32.mrb[0].mxu0
      %v3076 = vadd.f32 0.0, %v3075
      %v3077 = vpop.f32.mrb[0].mxu0
      %3078 = vmatprep.mubr.bf16.mxu0 0
      %3079 = vmatmul.mubr.bf16.gmra.mrb[0].mxu0 %v2963
      %v3080 = vpop.f32.mrb[0].mxu0
      %v3081 = vadd.f32 0.0, %v3080
      %v3082 = vpop.f32.mrb[0].mxu0
      %v3083 = vpop.f32.mrb[0].mxu0
      %v3084 = vadd.f32 0.0, %v3083
      %v3085 = vpop.f32.mrb[0].mxu0
      %3086 = vmatprep.mubr.bf16.mxu0 0
      %3087 = vmatmul.mubr.bf16.gmra.mrb[0].mxu0 %v2965
      %v3088 = vpop.f32.mrb[0].mxu0
      %v3089 = vadd.f32 0.0, %v3088
      %v3090 = vpop.f32.mrb[0].mxu0
      %v3091 = vpop.f32.mrb[0].mxu0
      %v3092 = vadd.f32 0.0, %v3091
      %v3093 = vpop.f32.mrb[0].mxu0
      %3094 = vmatprep.mubr.bf16.mxu0 0
      %3095 = vmatmul.mubr.bf16.gmra.mrb[0].mxu0 %v2967
      %v3096 = vpop.f32.mrb[0].mxu0
      %v3097 = vadd.f32 0.0, %v3096
      %v3098 = vpop.f32.mrb[0].mxu0
      %v3099 = vpop.f32.mrb[0].mxu0
      %v3100 = vadd.f32 0.0, %v3099
      %v3101 = vpop.f32.mrb[0].mxu0
      %3102 = vmatprep.mubr.bf16.mxu0 0
      %3103 = vmatmul.mubr.bf16.gmra.mrb[0].mxu0 %v2969
      %v3104 = vpop.f32.mrb[0].mxu0
      %v3105 = vadd.f32 0.0, %v3104
      %v3106 = vpop.f32.mrb[0].mxu0
      %v3107 = vpop.f32.mrb[0].mxu0
      %v3108 = vadd.f32 0.0, %v3107
      %v3109 = vpop.f32.mrb[0].mxu0
      %3110 = vmatprep.mubr.bf16.mxu0 0
      %3111 = vmatmul.mubr.bf16.gmra.mrb[0].mxu0 %v2971
      %v3112 = vpop.f32.mrb[0].mxu0
      %v3113 = vadd.f32 0.0, %v3112
      %v3114 = vpop.f32.mrb[0].mxu0
      %v3115 = vpop.f32.mrb[0].mxu0
      %v3116 = vadd.f32 0.0, %v3115
      %v3117 = vpop.f32.mrb[0].mxu0
      %3118 = vmatprep.mubr.bf16.mxu0 0
      %3119 = vmatmul.mubr.bf16.gmra.mrb[0].mxu0 %v2973
      %v3120 = vpop.f32.mrb[0].mxu0
      %v3121 = vadd.f32 0.0, %v3120
      %v3122 = vpop.f32.mrb[0].mxu0
      %v3123 = vpop.f32.mrb[0].mxu0
      %v3124 = vadd.f32 0.0, %v3123
      %v3125 = vpop.f32.mrb[0].mxu0
      %3126 = vmatprep.mubr.bf16.mxu0 0
      %3127 = vmatmul.mubr.bf16.gmra.mrb[0].mxu0 %v2975
      %v3128 = vpop.f32.mrb[0].mxu0
      %v3129 = vadd.f32 0.0, %v3128
      %v3130 = vpop.f32.mrb[0].mxu0
      %v3131 = vpop.f32.mrb[0].mxu0
      %v3132 = vadd.f32 0.0, %v3131
      %v3133 = vpop.f32.mrb[0].mxu0
      %3134 = vmatprep.mubr.bf16.mxu0 0
      %3135 = vmatmul.mubr.bf16.gmra.mrb[0].mxu0 %v2977
      %v3136 = vpop.f32.mrb[0].mxu0
      %v3137 = vadd.f32 0.0, %v3136
      %v3138 = vpop.f32.mrb[0].mxu0
      %v3139 = vpop.f32.mrb[0].mxu0
      %v3140 = vadd.f32 0.0, %v3139
      %v3141 = vpop.f32.mrb[0].mxu0
      %3142 = vdwg.mxu0
      %v3143 = vadd.f32 %v2204, %v3017
      %v3144 = vadd.f32 %v2207, %v3020
      %v3145 = vadd.f32 %v2212, %v3025
      %v3146 = vadd.f32 %v2215, %v3028
      %v3147 = vadd.f32 %v2220, %v3033
      %v3148 = vadd.f32 %v2223, %v3036
      %v3149 = vadd.f32 %v2228, %v3041
      %v3150 = vadd.f32 %v2231, %v3044
      %v3151 = vadd.f32 %v2236, %v3049
      %v3152 = vadd.f32 %v2239, %v3052
      %v3153 = vadd.f32 %v2244, %v3057
      %v3154 = vadd.f32 %v2247, %v3060
      %v3155 = vadd.f32 %v2252, %v3065
      %v3156 = vadd.f32 %v2255, %v3068
      %v3157 = vadd.f32 %v2260, %v3073
      %v3158 = vadd.f32 %v2263, %v3076
      %v3159 = vadd.f32 %v2268, %v3081
      %v3160 = vadd.f32 %v2271, %v3084
      %v3161 = vadd.f32 %v2276, %v3089
      %v3162 = vadd.f32 %v2279, %v3092
      %v3163 = vadd.f32 %v2284, %v3097
      %v3164 = vadd.f32 %v2287, %v3100
      %v3165 = vadd.f32 %v2292, %v3105
      %v3166 = vadd.f32 %v2295, %v3108
      %v3167 = vadd.f32 %v2300, %v3113
      %v3168 = vadd.f32 %v2303, %v3116
      %v3169 = vadd.f32 %v2308, %v3121
      %v3170 = vadd.f32 %v2311, %v3124
      %v3171 = vadd.f32 %v2316, %v3129
      %v3172 = vadd.f32 %v2319, %v3132
      %v3173 = vadd.f32 %v2324, %v3137
      %v3174 = vadd.f32 %v2327, %v3140
      %v3175 = vld [vmem:[%s2] sm:$0x1]
      %v3177 = vlaneseq
      %v3178 = vshrl.u32 %v3177, 7
      %v3179 = vsub.s32 0, %v3178
      %v3180 = vrot.slane %v3175, %v3179
      %v3182 = vadd.f32 %v3143, %v3180
      %v3183 = vadd.f32 %v3144, %v3180
      %v3184 = vadd.f32 %v3145, %v3180
      %v3185 = vadd.f32 %v3146, %v3180
      %v3186 = vadd.f32 %v3147, %v3180
      %v3187 = vadd.f32 %v3148, %v3180
      %v3188 = vadd.f32 %v3149, %v3180
      %v3189 = vadd.f32 %v3150, %v3180
      %v3190 = vadd.f32 %v3151, %v3180
      %v3191 = vadd.f32 %v3152, %v3180
      %v3192 = vadd.f32 %v3153, %v3180
      %v3193 = vadd.f32 %v3154, %v3180
      %v3194 = vadd.f32 %v3155, %v3180
      %v3195 = vadd.f32 %v3156, %v3180
      %v3196 = vadd.f32 %v3157, %v3180
      %v3197 = vadd.f32 %v3158, %v3180
      %v3198 = vadd.f32 %v3159, %v3180
      %v3199 = vadd.f32 %v3160, %v3180
      %v3200 = vadd.f32 %v3161, %v3180
      %v3201 = vadd.f32 %v3162, %v3180
      %v3202 = vadd.f32 %v3163, %v3180
      %v3203 = vadd.f32 %v3164, %v3180
      %v3204 = vadd.f32 %v3165, %v3180
      %v3205 = vadd.f32 %v3166, %v3180
      %v3206 = vadd.f32 %v3167, %v3180
      %v3207 = vadd.f32 %v3168, %v3180
      %v3208 = vadd.f32 %v3169, %v3180
      %v3209 = vadd.f32 %v3170, %v3180
      %v3210 = vadd.f32 %v3171, %v3180
      %v3211 = vadd.f32 %v3172, %v3180
      %v3212 = vadd.f32 %v3173, %v3180
      %v3213 = vadd.f32 %v3174, %v3180
      %v3214 = vmax.f32 %v3182, 0.0
      %v3215 = vmax.f32 %v3183, 0.0
      %v3216 = vmax.f32 %v3184, 0.0
      %v3217 = vmax.f32 %v3185, 0.0
      %v3218 = vmax.f32 %v3186, 0.0
      %v3219 = vmax.f32 %v3187, 0.0
      %v3220 = vmax.f32 %v3188, 0.0
      %v3221 = vmax.f32 %v3189, 0.0
      %v3222 = vmax.f32 %v3190, 0.0
      %v3223 = vmax.f32 %v3191, 0.0
      %v3224 = vmax.f32 %v3192, 0.0
      %v3225 = vmax.f32 %v3193, 0.0
      %v3226 = vmax.f32 %v3194, 0.0
      %v3227 = vmax.f32 %v3195, 0.0
      %v3228 = vmax.f32 %v3196, 0.0
      %v3229 = vmax.f32 %v3197, 0.0
      %v3230 = vmax.f32 %v3198, 0.0
      %v3231 = vmax.f32 %v3199, 0.0
      %v3232 = vmax.f32 %v3200, 0.0
      %v3233 = vmax.f32 %v3201, 0.0
      %v3234 = vmax.f32 %v3202, 0.0
      %v3235 = vmax.f32 %v3203, 0.0
      %v3236 = vmax.f32 %v3204, 0.0
      %v3237 = vmax.f32 %v3205, 0.0
      %v3238 = vmax.f32 %v3206, 0.0
      %v3239 = vmax.f32 %v3207, 0.0
      %v3240 = vmax.f32 %v3208, 0.0
      %v3241 = vmax.f32 %v3209, 0.0
      %v3242 = vmax.f32 %v3210, 0.0
      %v3243 = vmax.f32 %v3211, 0.0
      %v3244 = vmax.f32 %v3212, 0.0
      %v3245 = vmax.f32 %v3213, 0.0
      %v3246 = vpack.c.bf16 %v3215, %v3214
      %v3247 = vpack.c.bf16 %v3217, %v3216
      %v3248 = vpack.c.bf16 %v3219, %v3218
      %v3249 = vpack.c.bf16 %v3221, %v3220
      %v3250 = vpack.c.bf16 %v3223, %v3222
      %v3251 = vpack.c.bf16 %v3225, %v3224
      %v3252 = vpack.c.bf16 %v3227, %v3226
      %v3253 = vpack.c.bf16 %v3229, %v3228
      %v3254 = vpack.c.bf16 %v3231, %v3230
      %v3255 = vpack.c.bf16 %v3233, %v3232
      %v3256 = vpack.c.bf16 %v3235, %v3234
      %v3257 = vpack.c.bf16 %v3237, %v3236
      %v3258 = vpack.c.bf16 %v3239, %v3238
      %v3259 = vpack.c.bf16 %v3241, %v3240
      %v3260 = vpack.c.bf16 %v3243, %v3242
      %v3261 = vpack.c.bf16 %v3245, %v3244
      %v3278 = vunpack.c.l.b16 %v3246
      %v3279 = vunpack.c.h.b16 %v3246
      %v3280 = vunpack.c.l.b16 %v3247
      %v3281 = vunpack.c.h.b16 %v3247
      %v3282 = vunpack.c.l.b16 %v3248
      %v3283 = vunpack.c.h.b16 %v3248
      %v3284 = vunpack.c.l.b16 %v3249
      %v3285 = vunpack.c.h.b16 %v3249
      %v3286 = vunpack.c.l.b16 %v3250
      %v3287 = vunpack.c.h.b16 %v3250
      %v3288 = vunpack.c.l.b16 %v3251
      %v3289 = vunpack.c.h.b16 %v3251
      %v3290 = vunpack.c.l.b16 %v3252
      %v3291 = vunpack.c.h.b16 %v3252
      %v3292 = vunpack.c.l.b16 %v3253
      %v3293 = vunpack.c.h.b16 %v3253
      %v3294 = vunpack.c.l.b16 %v3254
      %v3295 = vunpack.c.h.b16 %v3254
      %v3296 = vunpack.c.l.b16 %v3255
      %v3297 = vunpack.c.h.b16 %v3255
      %v3298 = vunpack.c.l.b16 %v3256
      %v3299 = vunpack.c.h.b16 %v3256
      %v3300 = vunpack.c.l.b16 %v3257
      %v3301 = vunpack.c.h.b16 %v3257
      %v3302 = vunpack.c.l.b16 %v3258
      %v3303 = vunpack.c.h.b16 %v3258
      %v3304 = vunpack.c.l.b16 %v3259
      %v3305 = vunpack.c.h.b16 %v3259
      %v3306 = vunpack.c.l.b16 %v3260
      %v3307 = vunpack.c.h.b16 %v3260
      %v3308 = vunpack.c.l.b16 %v3261
      %v3309 = vunpack.c.h.b16 %v3261
      %v3310 = vpack.c.b16 %v3278, %v3278
      %v3311 = vpack.c.b16 %v3279, %v3279
      %v3312 = vpack.c.b16 %v3280, %v3280
      %v3313 = vpack.c.b16 %v3281, %v3281
      %v3314 = vpack.c.b16 %v3282, %v3282
      %v3315 = vpack.c.b16 %v3283, %v3283
      %v3316 = vpack.c.b16 %v3284, %v3284
      %v3317 = vpack.c.b16 %v3285, %v3285
      %v3318 = vpack.c.b16 %v3286, %v3286
      %v3319 = vpack.c.b16 %v3287, %v3287
      %v3320 = vpack.c.b16 %v3288, %v3288
      %v3321 = vpack.c.b16 %v3289, %v3289
      %v3322 = vpack.c.b16 %v3290, %v3290
      %v3323 = vpack.c.b16 %v3291, %v3291
      %v3324 = vpack.c.b16 %v3292, %v3292
      %v3325 = vpack.c.b16 %v3293, %v3293
      %v3326 = vpack.c.b16 %v3294, %v3294
      %v3327 = vpack.c.b16 %v3295, %v3295
      %v3328 = vpack.c.b16 %v3296, %v3296
      %v3329 = vpack.c.b16 %v3297, %v3297
      %v3330 = vpack.c.b16 %v3298, %v3298
      %v3331 = vpack.c.b16 %v3299, %v3299
      %v3332 = vpack.c.b16 %v3300, %v3300
      %v3333 = vpack.c.b16 %v3301, %v3301
      %v3334 = vpack.c.b16 %v3302, %v3302
      %v3335 = vpack.c.b16 %v3303, %v3303
      %v3336 = vpack.c.b16 %v3304, %v3304
      %v3337 = vpack.c.b16 %v3305, %v3305
      %v3338 = vpack.c.b16 %v3306, %v3306
      %v3339 = vpack.c.b16 %v3307, %v3307
      %v3340 = vpack.c.b16 %v3308, %v3308
      %v3341 = vpack.c.b16 %v3309, %v3309
      %3374 = vst.msk [vmem:[%s170] sm:$0xf] %vm172, %v3310
      %3375 = vst.msk [vmem:[%s170 + $0x4] sm:$0xf] %vm172, %v3311
      %3376 = vst.msk [vmem:[%s170 + $0x8] sm:$0xf] %vm172, %v3312
      %3377 = vst.msk [vmem:[%s170 + $0xc] sm:$0xf] %vm172, %v3313
      %3378 = vst.msk [vmem:[%s170 + $0x10] sm:$0xf] %vm172, %v3314
      %3379 = vst.msk [vmem:[%s170 + $0x14] sm:$0xf] %vm172, %v3315
      %3380 = vst.msk [vmem:[%s170 + $0x18] sm:$0xf] %vm172, %v3316
      %3381 = vst.msk [vmem:[%s170 + $0x1c] sm:$0xf] %vm172, %v3317
      %3382 = vst.msk [vmem:[%s170 + $0x20] sm:$0xf] %vm172, %v3318
      %3383 = vst.msk [vmem:[%s170 + $0x24] sm:$0xf] %vm172, %v3319
      %3384 = vst.msk [vmem:[%s170 + $0x28] sm:$0xf] %vm172, %v3320
      %3385 = vst.msk [vmem:[%s170 + $0x2c] sm:$0xf] %vm172, %v3321
      %3386 = vst.msk [vmem:[%s170 + $0x30] sm:$0xf] %vm172, %v3322
      %3387 = vst.msk [vmem:[%s170 + $0x34] sm:$0xf] %vm172, %v3323
      %3388 = vst.msk [vmem:[%s170 + $0x38] sm:$0xf] %vm172, %v3324
      %3389 = vst.msk [vmem:[%s170 + $0x3c] sm:$0xf] %vm172, %v3325
      %3390 = vst.msk [vmem:[%s170 + $0x40] sm:$0xf] %vm172, %v3326
      %3391 = vst.msk [vmem:[%s170 + $0x44] sm:$0xf] %vm172, %v3327
      %3392 = vst.msk [vmem:[%s170 + $0x48] sm:$0xf] %vm172, %v3328
      %3393 = vst.msk [vmem:[%s170 + $0x4c] sm:$0xf] %vm172, %v3329
      %3394 = vst.msk [vmem:[%s170 + $0x50] sm:$0xf] %vm172, %v3330
      %3395 = vst.msk [vmem:[%s170 + $0x54] sm:$0xf] %vm172, %v3331
      %3396 = vst.msk [vmem:[%s170 + $0x58] sm:$0xf] %vm172, %v3332
      %3397 = vst.msk [vmem:[%s170 + $0x5c] sm:$0xf] %vm172, %v3333
      %3398 = vst.msk [vmem:[%s170 + $0x60] sm:$0xf] %vm172, %v3334
      %3399 = vst.msk [vmem:[%s170 + $0x64] sm:$0xf] %vm172, %v3335
      %3400 = vst.msk [vmem:[%s170 + $0x68] sm:$0xf] %vm172, %v3336
      %3401 = vst.msk [vmem:[%s170 + $0x6c] sm:$0xf] %vm172, %v3337
      %3402 = vst.msk [vmem:[%s170 + $0x70] sm:$0xf] %vm172, %v3338
      %3403 = vst.msk [vmem:[%s170 + $0x74] sm:$0xf] %vm172, %v3339
      %3404 = vst.msk [vmem:[%s170 + $0x78] sm:$0xf] %vm172, %v3340
      %3405 = vst.msk [vmem:[%s170 + $0x7c] sm:$0xf] %vm172, %v3341
      %p3406 = scmp.lt.s32.totalorder %s14, 1
      %s3407 = scalar_select %p3406, %s14, 1
      %s3408 = smul.addr %s3407, 32
      %s3409 = smul.addr %s3408, 4
      %s3410 = scalar_lea.vmem %s3, %s3409
      // Predicated region
      $region33: #{bottleneck_forward.4} parent=31 // pred_check
        %p3411 = pneg %p100
      $region34: #{bottleneck_forward.4} parent=31 // pred_check_branch
        %3413 = sbr.rel (%p3411) target = $region36
      $region35: #{bottleneck_forward.4} parent=31 // pred_region
        _
      $region36: #{bottleneck_forward.4} parent=31 // pred_fallthru
        _
    $region32: #{bottleneck_forward.4} parent=5 // pred_fallthru
      _
    %p3414 = scmp.le.s32.totalorder 2, %s9
    // Predicated region
    $region37: #{bottleneck_forward.4} parent=5 // pred_check
      %p3415 = pneg %p3414
    $region38: #{bottleneck_forward.4} parent=5 // pred_check_branch
      %3417 = sbr.rel (%p3415) target = $region40
    $region39: #{bottleneck_forward.4} parent=5 // pred_region
      %s3418 = ssub.s32 %s9, 2
      // Predicated region
      $region41: #{bottleneck_forward.4} parent=39 // pred_check
        %p3419 = pneg %p106
      $region42: #{bottleneck_forward.4} parent=39 // pred_check_branch
        %3421 = sbr.rel (%p3419) target = $region44
      $region43: #{bottleneck_forward.4} parent=39 // pred_region
        %p3422 = scmp.lt.s32.totalorder %s15, 1
        %s3423 = scalar_select %p3422, %s15, 1
        %s3424 = smul.addr %s3423, 32
        %s3425 = smul.addr %s3424, 4
        %s3426 = scalar_lea.vmem %s3, %s3425
      $region44: #{bottleneck_forward.4} parent=39 // pred_fallthru
        _
    $region40: #{bottleneck_forward.4} parent=5 // pred_fallthru
      _
  $region6: #{bottleneck_forward.4} parent=0 // loop_footer
    %s13 = sadd.s32 1, %s9
  $region7: #{bottleneck_forward.4} parent=0 // loop_footer_branch
    %8 = sbr.rel target = $region3
  $region8: #{bottleneck_forward.4} parent=0 // loop_exit
    _

</llo_original>
